<compile_context>
chip_gen: v7x
topology: tpu7x:2x2x1
jax: 0.10.0
libtpu: 0.0.40
codegen_flags: <defaults>
</compile_context>

<pallas_src>
import functools
import math

import jax
import jax.numpy as jnp
from jax.experimental import pallas as pl
from jax.experimental.pallas import tpu as pltpu

EPS = 1e-5  # nn.LayerNorm default
_MIB = 1024 * 1024


def _vmem_limit_cap():
    """Generation-aware VMEM ceiling: ~3/4 of per-core VMEM (48 MiB v7x, 96 MiB v5e/v6e)."""
    try:
        info = pltpu.get_tpu_info()
        cap = int(getattr(info, "vmem_capacity_bytes", 64 * _MIB))
        if cap < 16 * _MIB:
            cap = 64 * _MIB
        return max(32 * _MIB, (cap * 3) // 4)
    except Exception:
        return 48 * _MIB  # safe default on every generation


_VMEM_CAP = _vmem_limit_cap()
# Larger blocks where VMEM allows: 8 MiB on 128 MiB-VMEM chips (v5e/v6e), 4 MiB on v7x.
_TARGET_BLOCK_BYTES = 8 * _MIB if _VMEM_CAP >= 72 * _MIB else 4 * _MIB


# ----------------------------- kernels ---------------------------------------


def _ln_kernel(x_ref, w_ref, b_ref, o_ref):
    # x_ref: (TILE_ROWS, H); w_ref/b_ref: (1, H) f32, resident across the grid.
    x = x_ref[...].astype(jnp.float32)
    mean = jnp.mean(x, axis=-1, keepdims=True)
    xc = x - mean
    var = jnp.mean(xc * xc, axis=-1, keepdims=True)
    y = xc * jax.lax.rsqrt(var + EPS)
    y = y * w_ref[...] + b_ref[...]
    o_ref[...] = y.astype(o_ref.dtype)


def _ln_packed_kernel(x_ref, w_ref, b_ref, seg_ref, segT_ref, o_ref, *, inv_h):
    # Lane-dense path for H < 128: each packed row holds k logical rows of width H.
    # x_ref: (TILE_ROWS, k*H); seg_ref: (k*H, k) one-hot segment selector; segT_ref: (k, k*H).
    # Segmented reduce / broadcast done with tiny MXU matmuls (full-precision).
    hi = jax.lax.Precision.HIGHEST
    x = x_ref[...].astype(jnp.float32)
    seg_sum = jnp.dot(x, seg_ref[...], precision=hi, preferred_element_type=jnp.float32)
    mean_full = jnp.dot(seg_sum * inv_h, segT_ref[...], precision=hi,
                        preferred_element_type=jnp.float32)
    xc = x - mean_full
    seg_sq = jnp.dot(xc * xc, seg_ref[...], precision=hi, preferred_element_type=jnp.float32)
    rstd = jax.lax.rsqrt(seg_sq * inv_h + EPS)
    rstd_full = jnp.dot(rstd, segT_ref[...], precision=hi, preferred_element_type=jnp.float32)
    y = xc * rstd_full * w_ref[...] + b_ref[...]
    o_ref[...] = y.astype(o_ref.dtype)


# ----------------------------- tiling ----------------------------------------


def _choose_tile_rows(rows, width, in_itemsize):
    """Row tile sized for ~_TARGET_BLOCK_BYTES of input, capped only by the VMEM budget."""
    if rows <= 8:
        return rows
    bytes_per_row_in = width * in_itemsize
    # Per-row VMEM estimate: double-buffered in + out blocks plus ~6 f32 temporaries.
    vmem_per_row = width * (8 * in_itemsize + 24)
    max_tr = max(8, ((_VMEM_CAP - 4 * _MIB) // vmem_per_row) // 8 * 8)
    tr = max(8, (_TARGET_BLOCK_BYTES // max(1, bytes_per_row_in)) // 8 * 8)
    tr = min(tr, max_tr)
    rows_up8 = -(-rows // 8) * 8
    tr = min(tr, rows_up8)
    if tr >= rows:
        return rows
    return max(8, tr)


def _even_out_grid(rows, tr):
    """For small grids, make the number of row blocks even so the 'parallel' axis
    splits evenly across the 2 TensorCores of a v7x chip (no-op cost on 1-TC chips)."""
    if rows < 16 or tr < 8:
        return tr
    g = -(-rows // tr)
    if g % 2 == 0 or g >= 16:
        return tr
    new_tr = -(-(-(-rows // (g + 1))) // 8) * 8
    if 8 <= new_tr < rows and (-(-rows // new_tr)) % 2 == 0:
        return new_tr
    return tr


def _pack_factor(rows, h):
    """If H < 128, pick k so the packed width k*H is a multiple of 128 and k divides rows."""
    if h >= 128 or rows <= 0:
        return 1
    k0 = 128 // math.gcd(h, 128)
    for m in (8, 4, 2, 1):
        k = k0 * m
        if k > 1 and k * h <= 1024 and rows % k == 0:
            return k
    return 1


# ----------------------------- wrapper ----------------------------------------


@jax.jit
def layernorm_pallas(x, weight, bias):
    """Semantics of nn.LayerNorm(normalized_shape) applied over the trailing dims of x."""
    orig_shape = x.shape
    h = 1
    for d in weight.shape:
        h *= int(d)
    x2 = x.reshape(-1, h)
    rows = x2.shape[0]
    itemsize = jnp.dtype(x.dtype).itemsize

    k = _pack_factor(rows, h)
    width = k * h
    n_rows = rows // k
    if k > 1:
        x2 = x2.reshape(n_rows, width)  # free: memory layout identical, lane-dense blocks

    w_f32 = weight.reshape(1, h).astype(jnp.float32)
    b_f32 = bias.reshape(1, h).astype(jnp.float32)
    if k > 1:
        w_f32 = jnp.tile(w_f32, (1, k))
        b_f32 = jnp.tile(b_f32, (1, k))

    tile_rows = _choose_tile_rows(n_rows, width, itemsize)
    tile_rows = _even_out_grid(n_rows, tile_rows)
    grid_rows = pl.cdiv(n_rows, tile_rows)

    # VMEM budget: double-buffered in + out blocks, f32 working set, slack; generation cap.
    blk_in = tile_rows * width * itemsize
    blk_f32 = tile_rows * width * 4
    vmem_limit = int(min(_VMEM_CAP, max(32 * _MIB, 4 * blk_in + 6 * blk_f32 + 4 * _MIB)))

    x_spec = pl.BlockSpec((tile_rows, width), lambda i: (i, 0))
    param_spec = pl.BlockSpec((1, width), lambda i: (0, 0))
    out_spec = pl.BlockSpec((tile_rows, width), lambda i: (i, 0))
    cparams = pltpu.CompilerParams(
        dimension_semantics=("parallel",),
        vmem_limit_bytes=vmem_limit,
    )

    if k > 1:
        lane = jnp.arange(width, dtype=jnp.int32) // h
        seg = (lane[:, None] == jnp.arange(k, dtype=jnp.int32)[None, :]).astype(jnp.float32)
        out = pl.pallas_call(
            functools.partial(_ln_packed_kernel, inv_h=1.0 / h),
            out_shape=jax.ShapeDtypeStruct((n_rows, width), x.dtype),
            grid_spec=pltpu.PrefetchScalarGridSpec(
                num_scalar_prefetch=0,
                grid=(grid_rows,),
                in_specs=[
                    x_spec,
                    param_spec,
                    param_spec,
                    pl.BlockSpec((width, k), lambda i: (0, 0)),
                    pl.BlockSpec((k, width), lambda i: (0, 0)),
                ],
                out_specs=out_spec,
            ),
            compiler_params=cparams,
        )(x2, w_f32, b_f32, seg, seg.T)
    else:
        out = pl.pallas_call(
            _ln_kernel,
            out_shape=jax.ShapeDtypeStruct((n_rows, width), x.dtype),
            grid_spec=pltpu.PrefetchScalarGridSpec(
                num_scalar_prefetch=0,
                grid=(grid_rows,),
                in_specs=[x_spec, param_spec, param_spec],
                out_specs=out_spec,
            ),
            compiler_params=cparams,
        )(x2, w_f32, b_f32)

    # TODO(synk): add a chunked-H (grid over H, two-pass/Welford) fallback for H so large
    # that a single (8, H) f32 working set no longer fits the 64 MiB v7x VMEM.
    return out.reshape(orig_shape)


# ----------------------------- reference & test --------------------------------


def layernorm_ref(x, weight, bias):
    h = 1
    for d in weight.shape:
        h *= int(d)
    xf = x.reshape(-1, h).astype(jnp.float32)
    mean = jnp.mean(xf, axis=-1, keepdims=True)
    var = jnp.mean((xf - mean) ** 2, axis=-1, keepdims=True)
    y = (xf - mean) * jax.lax.rsqrt(var + EPS)
    y = y * weight.reshape(1, h).astype(jnp.float32) + bias.reshape(1, h).astype(jnp.float32)
    return y.astype(x.dtype).reshape(x.shape)


if __name__ == "__main__":
    key = jax.random.PRNGKey(0)
    k1, k2, k3, k4 = jax.random.split(key, 4)

    # Case 1: narrow hidden (H=32 < 128) -> lane-dense packed path; nn.LayerNorm default affine.
    B, S, H = 2, 8, 32
    x = jax.random.normal(k1, (B, S, H), dtype=jnp.float32)
    weight = jnp.ones((H,), dtype=jnp.float32)   # nn.LayerNorm default init
    bias = jnp.zeros((H,), dtype=jnp.float32)
    out = jax.block_until_ready(layernorm_pallas(x, weight, bias))
    ref = layernorm_ref(x, weight, bias)
    assert out.shape == x.shape and out.dtype == x.dtype
    assert jnp.allclose(out, ref, atol=1e-5, rtol=1e-5), "packed-path mismatch vs reference"

    # Case 2: wide hidden (H=160 >= 128), non-trivial affine params -> plain row path.
    B2, S2, H2 = 2, 3, 160
    x2 = jax.random.normal(k2, (B2, S2, H2), dtype=jnp.float32)
    w2 = jax.random.normal(k3, (H2,), dtype=jnp.float32)
    b2 = jax.random.normal(k4, (H2,), dtype=jnp.float32)
    out2 = jax.block_until_ready(layernorm_pallas(x2, w2, b2))
    ref2 = layernorm_ref(x2, w2, b2)
    assert jnp.allclose(out2, ref2, atol=1e-5, rtol=1e-5), "row-path mismatch vs reference"

    print("KERNEL_OK")
</pallas_src>

<mosaic_0001>
module attributes {stable_mosaic.version = 11 : i64} {
  func.func @_ln_packed_kernel(%arg0: i32, %arg1: memref<1x512xf32, #tpu.memory_space<vmem>>, %arg2: memref<1x512xf32, #tpu.memory_space<vmem>>, %arg3: memref<1x512xf32, #tpu.memory_space<vmem>>, %arg4: memref<512x16xf32, #tpu.memory_space<vmem>>, %arg5: memref<16x512xf32, #tpu.memory_space<vmem>>, %arg6: memref<1x512xf32, #tpu.memory_space<vmem>>) attributes {dimension_semantics = [#tpu.dimension_semantics<parallel>], iteration_bounds = array<i64: 1>, scalar_prefetch = 0 : i64, scratch_operands = 0 : i64, tpu.core_type = #tpu.core_type<tc>, window_params = [{transform_indices = @transform_0, window_bounds = array<i64: 1, 512>}, {pipeline_mode = #tpu.pipeline_mode<synchronous>, transform_indices = @transform_1, window_bounds = array<i64: 1, 512>}, {pipeline_mode = #tpu.pipeline_mode<synchronous>, transform_indices = @transform_2, window_bounds = array<i64: 1, 512>}, {pipeline_mode = #tpu.pipeline_mode<synchronous>, transform_indices = @transform_3, window_bounds = array<i64: 512, 16>}, {pipeline_mode = #tpu.pipeline_mode<synchronous>, transform_indices = @transform_4, window_bounds = array<i64: 16, 512>}, {transform_indices = @transform_5, window_bounds = array<i64: 1, 512>}]} {
    %c0 = arith.constant 0 : index
    %c0_0 = arith.constant 0 : index
    %0 = vector.load %arg1[%c0, %c0_0] : memref<1x512xf32, #tpu.memory_space<vmem>>, vector<1x512xf32>
    %c0_1 = arith.constant 0 : index
    %c0_2 = arith.constant 0 : index
    %1 = vector.load %arg4[%c0_1, %c0_2] : memref<512x16xf32, #tpu.memory_space<vmem>>, vector<512x16xf32>
    %cst = arith.constant dense<0.000000e+00> : vector<1x16xf32>
    %2 = tpu.matmul %0, %1, %cst {dimension_numbers = #tpu.dot_dimension_numbers<[1], [0], [0], [1], [0, 0, 1, 1], [], []>, precision = #tpu.contract_precision<fp32>} : vector<1x512xf32>, vector<512x16xf32>, vector<1x16xf32> -> vector<1x16xf32>
    %cst_3 = arith.constant 3.125000e-02 : f32
    %3 = vector.broadcast %cst_3 : f32 to vector<1x16xf32>
    %4 = arith.mulf %2, %3 : vector<1x16xf32>
    %c0_4 = arith.constant 0 : index
    %c0_5 = arith.constant 0 : index
    %5 = vector.load %arg5[%c0_4, %c0_5] : memref<16x512xf32, #tpu.memory_space<vmem>>, vector<16x512xf32>
    %cst_6 = arith.constant dense<0.000000e+00> : vector<1x512xf32>
    %6 = tpu.matmul %4, %5, %cst_6 {dimension_numbers = #tpu.dot_dimension_numbers<[1], [0], [0], [1], [0, 0, 1, 1], [], []>, precision = #tpu.contract_precision<fp32>} : vector<1x16xf32>, vector<16x512xf32>, vector<1x512xf32> -> vector<1x512xf32>
    %7 = arith.subf %0, %6 : vector<1x512xf32>
    %8 = arith.mulf %7, %7 : vector<1x512xf32>
    %c0_7 = arith.constant 0 : index
    %c0_8 = arith.constant 0 : index
    %9 = vector.load %arg4[%c0_7, %c0_8] : memref<512x16xf32, #tpu.memory_space<vmem>>, vector<512x16xf32>
    %cst_9 = arith.constant dense<0.000000e+00> : vector<1x16xf32>
    %10 = tpu.matmul %8, %9, %cst_9 {dimension_numbers = #tpu.dot_dimension_numbers<[1], [0], [0], [1], [0, 0, 1, 1], [], []>, precision = #tpu.contract_precision<fp32>} : vector<1x512xf32>, vector<512x16xf32>, vector<1x16xf32> -> vector<1x16xf32>
    %cst_10 = arith.constant 3.125000e-02 : f32
    %11 = vector.broadcast %cst_10 : f32 to vector<1x16xf32>
    %12 = arith.mulf %10, %11 : vector<1x16xf32>
    %cst_11 = arith.constant 9.99999974E-6 : f32
    %13 = vector.broadcast %cst_11 : f32 to vector<1x16xf32>
    %14 = arith.addf %12, %13 : vector<1x16xf32>
    %15 = math.rsqrt %14 : vector<1x16xf32>
    %c0_12 = arith.constant 0 : index
    %c0_13 = arith.constant 0 : index
    %16 = vector.load %arg5[%c0_12, %c0_13] : memref<16x512xf32, #tpu.memory_space<vmem>>, vector<16x512xf32>
    %cst_14 = arith.constant dense<0.000000e+00> : vector<1x512xf32>
    %17 = tpu.matmul %15, %16, %cst_14 {dimension_numbers = #tpu.dot_dimension_numbers<[1], [0], [0], [1], [0, 0, 1, 1], [], []>, precision = #tpu.contract_precision<fp32>} : vector<1x16xf32>, vector<16x512xf32>, vector<1x512xf32> -> vector<1x512xf32>
    %18 = arith.mulf %7, %17 : vector<1x512xf32>
    %c0_15 = arith.constant 0 : index
    %c0_16 = arith.constant 0 : index
    %19 = vector.load %arg2[%c0_15, %c0_16] : memref<1x512xf32, #tpu.memory_space<vmem>>, vector<1x512xf32>
    %20 = arith.mulf %18, %19 : vector<1x512xf32>
    %c0_17 = arith.constant 0 : index
    %c0_18 = arith.constant 0 : index
    %21 = vector.load %arg3[%c0_17, %c0_18] : memref<1x512xf32, #tpu.memory_space<vmem>>, vector<1x512xf32>
    %22 = arith.addf %20, %21 : vector<1x512xf32>
    %c0_19 = arith.constant 0 : index
    %c0_20 = arith.constant 0 : index
    %23 = vector.load %arg6[%c0_19, %c0_20] : memref<1x512xf32, #tpu.memory_space<vmem>>, vector<1x512xf32>
    tpu.vector_store %arg6[%c0_19, %c0_20], %22 {strides = array<i32>} : memref<1x512xf32, #tpu.memory_space<vmem>>, vector<1x512xf32>,
    return
  }
  func.func @transform_0(%arg0: i32) -> (i32, i32) {
    %c0_i32 = arith.constant 0 : i32
    %c0_i32_0 = arith.constant 0 : i32
    return %arg0, %c0_i32 : i32, i32
  }
  func.func @transform_1(%arg0: i32) -> (i32, i32) {
    %c0_i32 = arith.constant 0 : i32
    %c0_i32_0 = arith.constant 0 : i32
    %c0_i32_1 = arith.constant 0 : i32
    return %c0_i32, %c0_i32_0 : i32, i32
  }
  func.func @transform_2(%arg0: i32) -> (i32, i32) {
    %c0_i32 = arith.constant 0 : i32
    %c0_i32_0 = arith.constant 0 : i32
    %c0_i32_1 = arith.constant 0 : i32
    return %c0_i32, %c0_i32_0 : i32, i32
  }
  func.func @transform_3(%arg0: i32) -> (i32, i32) {
    %c0_i32 = arith.constant 0 : i32
    %c0_i32_0 = arith.constant 0 : i32
    %c0_i32_1 = arith.constant 0 : i32
    return %c0_i32, %c0_i32_0 : i32, i32
  }
  func.func @transform_4(%arg0: i32) -> (i32, i32) {
    %c0_i32 = arith.constant 0 : i32
    %c0_i32_0 = arith.constant 0 : i32
    %c0_i32_1 = arith.constant 0 : i32
    return %c0_i32, %c0_i32_0 : i32, i32
  }
  func.func @transform_5(%arg0: i32) -> (i32, i32) {
    %c0_i32 = arith.constant 0 : i32
    %c0_i32_0 = arith.constant 0 : i32
    return %arg0, %c0_i32 : i32, i32
  }
}

</mosaic_0001>

<llo_original>
// kernel: layernorm_pallas.1
$region0: #{layernorm_pallas.1}
  #allocation0 [shape = 'u32[]', space=smem, size = 0x4, offset = 0x4, fixed_abs, tag = 'smem constant byte address 0x4 - core index']
  #allocation1 [shape = 'u32[144,128]{1,0:T(1,128)}', space=vmem, size = 0x12000, scoped, tag = 'internal scratch']
  %s0 = inlined_call_operand.vmem [shape: f32[1,512], index: 0, kind: input, shape index: {}]
  %s1 = inlined_call_operand.vmem [shape: f32[1,512], index: 1, kind: input, shape index: {}]
  %s2 = inlined_call_operand.vmem [shape: f32[1,512], index: 2, kind: input, shape index: {}]
  %s3 = inlined_call_operand.vmem [shape: f32[512,16], index: 3, kind: input, shape index: {}]
  %s4 = inlined_call_operand.vmem [shape: f32[16,512], index: 4, kind: input, shape index: {}]
  %s5 = inlined_call_operand.vmem [shape: f32[1,512], index: 5, kind: output, shape index: {}]
  %s6 = sld [smem:[#allocation0]]
  $region30: #{layernorm_pallas.1} parent=0
    _
  %s8 = ssub.s32 1, %s6
  %s9 = scalar_select 0, %s8, %s6
  // Predicated region
  $region2: #{layernorm_pallas.1} parent=0 // pred_check
    _
  $region3: #{layernorm_pallas.1} parent=0 // pred_check_branch
    %11 = sbr.rel (0) target = $region5
  $region4: #{layernorm_pallas.1} parent=0 // pred_region
    _
  $region5: #{layernorm_pallas.1} parent=0 // pred_fallthru
    _
  // Predicated region
  $region6: #{layernorm_pallas.1} parent=0 // pred_check
    _
  $region7: #{layernorm_pallas.1} parent=0 // pred_check_branch
    %13 = sbr.rel (0) target = $region9
  $region8: #{layernorm_pallas.1} parent=0 // pred_region
    _
  $region9: #{layernorm_pallas.1} parent=0 // pred_fallthru
    _
  // Predicated region
  $region10: #{layernorm_pallas.1} parent=0 // pred_check
    _
  $region11: #{layernorm_pallas.1} parent=0 // pred_check_branch
    %15 = sbr.rel (0) target = $region13
  $region12: #{layernorm_pallas.1} parent=0 // pred_region
    _
  $region13: #{layernorm_pallas.1} parent=0 // pred_fallthru
    _
  // Predicated region
  $region14: #{layernorm_pallas.1} parent=0 // pred_check
    _
  $region15: #{layernorm_pallas.1} parent=0 // pred_check_branch
    %17 = sbr.rel (0) target = $region17
  $region16: #{layernorm_pallas.1} parent=0 // pred_region
    _
  $region17: #{layernorm_pallas.1} parent=0 // pred_fallthru
    _
  // Predicated region
  $region18: #{layernorm_pallas.1} parent=0 // pred_check
    _
  $region19: #{layernorm_pallas.1} parent=0 // pred_check_branch
    %19 = sbr.rel (0) target = $region21
  $region20: #{layernorm_pallas.1} parent=0 // pred_region
    _
  $region21: #{layernorm_pallas.1} parent=0 // pred_fallthru
    _
  %v20 = vld [vmem:[%s0] sm:$0xf]
  %v21 = vld [vmem:[%s3] sm:$0xff]
  %v22 = vld [vmem:[%s3 + $0x8] sm:$0xff]
  %v23 = vld [vmem:[%s3 + $0x10] sm:$0xff]
  %v24 = vld [vmem:[%s3 + $0x18] sm:$0xff]
  %v25 = vld [vmem:[%s3 + $0x20] sm:$0xff]
  %v26 = vld [vmem:[%s3 + $0x28] sm:$0xff]
  %v27 = vld [vmem:[%s3 + $0x30] sm:$0xff]
  %v28 = vld [vmem:[%s3 + $0x38] sm:$0xff]
  %v29 = vld [vmem:[%s3 + $0x40] sm:$0xff]
  %v30 = vld [vmem:[%s3 + $0x48] sm:$0xff]
  %v31 = vld [vmem:[%s3 + $0x50] sm:$0xff]
  %v32 = vld [vmem:[%s3 + $0x58] sm:$0xff]
  %v33 = vld [vmem:[%s3 + $0x60] sm:$0xff]
  %v34 = vld [vmem:[%s3 + $0x68] sm:$0xff]
  %v35 = vld [vmem:[%s3 + $0x70] sm:$0xff]
  %v36 = vld [vmem:[%s3 + $0x78] sm:$0xff]
  %v37 = vld [vmem:[%s3 + $0x80] sm:$0xff]
  %v38 = vld [vmem:[%s3 + $0x88] sm:$0xff]
  %v39 = vld [vmem:[%s3 + $0x90] sm:$0xff]
  %v40 = vld [vmem:[%s3 + $0x98] sm:$0xff]
  %v41 = vld [vmem:[%s3 + $0xa0] sm:$0xff]
  %v42 = vld [vmem:[%s3 + $0xa8] sm:$0xff]
  %v43 = vld [vmem:[%s3 + $0xb0] sm:$0xff]
  %v44 = vld [vmem:[%s3 + $0xb8] sm:$0xff]
  %v45 = vld [vmem:[%s3 + $0xc0] sm:$0xff]
  %v46 = vld [vmem:[%s3 + $0xc8] sm:$0xff]
  %v47 = vld [vmem:[%s3 + $0xd0] sm:$0xff]
  %v48 = vld [vmem:[%s3 + $0xd8] sm:$0xff]
  %v49 = vld [vmem:[%s3 + $0xe0] sm:$0xff]
  %v50 = vld [vmem:[%s3 + $0xe8] sm:$0xff]
  %v51 = vld [vmem:[%s3 + $0xf0] sm:$0xff]
  %v52 = vld [vmem:[%s3 + $0xf8] sm:$0xff]
  %v53 = vld [vmem:[%s3 + $0x100] sm:$0xff]
  %v54 = vld [vmem:[%s3 + $0x108] sm:$0xff]
  %v55 = vld [vmem:[%s3 + $0x110] sm:$0xff]
  %v56 = vld [vmem:[%s3 + $0x118] sm:$0xff]
  %v57 = vld [vmem:[%s3 + $0x120] sm:$0xff]
  %v58 = vld [vmem:[%s3 + $0x128] sm:$0xff]
  %v59 = vld [vmem:[%s3 + $0x130] sm:$0xff]
  %v60 = vld [vmem:[%s3 + $0x138] sm:$0xff]
  %v61 = vld [vmem:[%s3 + $0x140] sm:$0xff]
  %v62 = vld [vmem:[%s3 + $0x148] sm:$0xff]
  %v63 = vld [vmem:[%s3 + $0x150] sm:$0xff]
  %v64 = vld [vmem:[%s3 + $0x158] sm:$0xff]
  %v65 = vld [vmem:[%s3 + $0x160] sm:$0xff]
  %v66 = vld [vmem:[%s3 + $0x168] sm:$0xff]
  %v67 = vld [vmem:[%s3 + $0x170] sm:$0xff]
  %v68 = vld [vmem:[%s3 + $0x178] sm:$0xff]
  %v69 = vld [vmem:[%s3 + $0x180] sm:$0xff]
  %v70 = vld [vmem:[%s3 + $0x188] sm:$0xff]
  %v71 = vld [vmem:[%s3 + $0x190] sm:$0xff]
  %v72 = vld [vmem:[%s3 + $0x198] sm:$0xff]
  %v73 = vld [vmem:[%s3 + $0x1a0] sm:$0xff]
  %v74 = vld [vmem:[%s3 + $0x1a8] sm:$0xff]
  %v75 = vld [vmem:[%s3 + $0x1b0] sm:$0xff]
  %v76 = vld [vmem:[%s3 + $0x1b8] sm:$0xff]
  %v77 = vld [vmem:[%s3 + $0x1c0] sm:$0xff]
  %v78 = vld [vmem:[%s3 + $0x1c8] sm:$0xff]
  %v79 = vld [vmem:[%s3 + $0x1d0] sm:$0xff]
  %v80 = vld [vmem:[%s3 + $0x1d8] sm:$0xff]
  %v81 = vld [vmem:[%s3 + $0x1e0] sm:$0xff]
  %v82 = vld [vmem:[%s3 + $0x1e8] sm:$0xff]
  %v83 = vld [vmem:[%s3 + $0x1f0] sm:$0xff]
  %v84 = vld [vmem:[%s3 + $0x1f8] sm:$0xff]
  %v86 = vlaneseq
  %v87 = vshrl.u32 %v86, 7
  %v88 = vsub.s32 0, %v87
  %v89 = vrot.slane %v20, %v88
  %v90 = vlaneseq
  %v91 = vshrl.u32 %v90, 7
  %v92 = vsub.s32 1, %v91
  %v93 = vrot.slane %v20, %v92
  %v94 = vlaneseq
  %v95 = vshrl.u32 %v94, 7
  %v96 = vsub.s32 2, %v95
  %v97 = vrot.slane %v20, %v96
  %v98 = vlaneseq
  %v99 = vshrl.u32 %v98, 7
  %v100 = vsub.s32 3, %v99
  %v101 = vrot.slane %v20, %v100
  %106 = vmatprep.subr.mxu0 0.0
  %v107 = vand.u32 %v21, 4294901760
  %108 = vmatpush1.msra.mxu0 %v107
  %109 = vmatprep.subr.mxu0 0.0
  %v110 = vand.u32 %v22, 4294901760
  %111 = vmatpush1.msra.mxu0 %v110
  %112 = vmatprep.subr.mxu0 0.0
  %v113 = vand.u32 %v23, 4294901760
  %114 = vmatpush1.msra.mxu0 %v113
  %115 = vmatprep.subr.mxu0 0.0
  %v116 = vand.u32 %v24, 4294901760
  %117 = vmatpush1.msra.mxu0 %v116
  %118 = vmatprep.subr.mxu0 0.0
  %v119 = vand.u32 %v25, 4294901760
  %120 = vmatpush1.msra.mxu0 %v119
  %121 = vmatprep.subr.mxu0 0.0
  %v122 = vand.u32 %v26, 4294901760
  %123 = vmatpush1.msra.mxu0 %v122
  %124 = vmatprep.subr.mxu0 0.0
  %v125 = vand.u32 %v27, 4294901760
  %126 = vmatpush1.msra.mxu0 %v125
  %127 = vmatprep.subr.mxu0 0.0
  %v128 = vand.u32 %v28, 4294901760
  %129 = vmatpush1.msra.mxu0 %v128
  %130 = vmatprep.subr.mxu0 0.0
  %v131 = vand.u32 %v29, 4294901760
  %132 = vmatpush1.msra.mxu0 %v131
  %133 = vmatprep.subr.mxu0 0.0
  %v134 = vand.u32 %v30, 4294901760
  %135 = vmatpush1.msra.mxu0 %v134
  %136 = vmatprep.subr.mxu0 0.0
  %v137 = vand.u32 %v31, 4294901760
  %138 = vmatpush1.msra.mxu0 %v137
  %139 = vmatprep.subr.mxu0 0.0
  %v140 = vand.u32 %v32, 4294901760
  %141 = vmatpush1.msra.mxu0 %v140
  %142 = vmatprep.subr.mxu0 0.0
  %v143 = vand.u32 %v33, 4294901760
  %144 = vmatpush1.msra.mxu0 %v143
  %145 = vmatprep.subr.mxu0 0.0
  %v146 = vand.u32 %v34, 4294901760
  %147 = vmatpush1.msra.mxu0 %v146
  %148 = vmatprep.subr.mxu0 0.0
  %v149 = vand.u32 %v35, 4294901760
  %150 = vmatpush1.msra.mxu0 %v149
  %151 = vmatprep.subr.mxu0 0.0
  %v152 = vand.u32 %v36, 4294901760
  %153 = vmatpush1.msra.mxu0 %v152
  %154 = vmatprep.subr.mxu0 0.0
  %v155 = vand.u32 %v37, 4294901760
  %156 = vmatpush1.msra.mxu0 %v155
  %157 = vmatprep.subr.mxu0 0.0
  %v158 = vand.u32 %v38, 4294901760
  %159 = vmatpush1.msra.mxu0 %v158
  %160 = vmatprep.subr.mxu0 0.0
  %v161 = vand.u32 %v39, 4294901760
  %162 = vmatpush1.msra.mxu0 %v161
  %163 = vmatprep.subr.mxu0 0.0
  %v164 = vand.u32 %v40, 4294901760
  %165 = vmatpush1.msra.mxu0 %v164
  %166 = vmatprep.subr.mxu0 0.0
  %v167 = vand.u32 %v41, 4294901760
  %168 = vmatpush1.msra.mxu0 %v167
  %169 = vmatprep.subr.mxu0 0.0
  %v170 = vand.u32 %v42, 4294901760
  %171 = vmatpush1.msra.mxu0 %v170
  %172 = vmatprep.subr.mxu0 0.0
  %v173 = vand.u32 %v43, 4294901760
  %174 = vmatpush1.msra.mxu0 %v173
  %175 = vmatprep.subr.mxu0 0.0
  %v176 = vand.u32 %v44, 4294901760
  %177 = vmatpush1.msra.mxu0 %v176
  %178 = vmatprep.subr.mxu0 0.0
  %v179 = vand.u32 %v45, 4294901760
  %180 = vmatpush1.msra.mxu0 %v179
  %181 = vmatprep.subr.mxu0 0.0
  %v182 = vand.u32 %v46, 4294901760
  %183 = vmatpush1.msra.mxu0 %v182
  %184 = vmatprep.subr.mxu0 0.0
  %v185 = vand.u32 %v47, 4294901760
  %186 = vmatpush1.msra.mxu0 %v185
  %187 = vmatprep.subr.mxu0 0.0
  %v188 = vand.u32 %v48, 4294901760
  %189 = vmatpush1.msra.mxu0 %v188
  %190 = vmatprep.subr.mxu0 0.0
  %v191 = vand.u32 %v49, 4294901760
  %192 = vmatpush1.msra.mxu0 %v191
  %193 = vmatprep.subr.mxu0 0.0
  %v194 = vand.u32 %v50, 4294901760
  %195 = vmatpush1.msra.mxu0 %v194
  %196 = vmatprep.subr.mxu0 0.0
  %v197 = vand.u32 %v51, 4294901760
  %198 = vmatpush1.msra.mxu0 %v197
  %199 = vmatprep.subr.mxu0 0.0
  %v200 = vand.u32 %v52, 4294901760
  %201 = vmatpush1.msra.mxu0 %v200
  %v202 = vand.u32 %v93, 4294901760
  %v203 = vsub.f32 %v93, %v202
  %v204 = vand.u32 %v203, 4294901760
  %v205 = vsub.f32 %v203, %v204
  %v206 = vand.u32 %v205, 4294901760
  %207 = vmatprep.mubr.f32.mxu0 %v206
  %v208 = vand.u32 %v89, 4294901760
  %v209 = vsub.f32 %v89, %v208
  %v210 = vand.u32 %v209, 4294901760
  %v211 = vsub.f32 %v209, %v210
  %v212 = vand.u32 %v211, 4294901760
  %213 = vmatmul.mubr.f32.gmra.mrb[0].mxu0 %v212
  %v214 = vpop.f32.mrb[0].mxu0
  %v215 = vadd.f32 0.0, %v214
  %v216 = vpop.f32.mrb[0].mxu0
  %217 = vdwg.mxu0
  %218 = vmatprep.subr.mxu0 0.0
  %v219 = vand.u32 %v21, 4294901760
  %v220 = vsub.f32 %v21, %v219
  %v221 = vand.u32 %v220, 4294901760
  %v222 = vsub.f32 %v220, %v221
  %v223 = vand.u32 %v222, 4294901760
  %224 = vmatpush1.msra.mxu0 %v223
  %225 = vmatprep.subr.mxu0 0.0
  %v226 = vand.u32 %v22, 4294901760
  %v227 = vsub.f32 %v22, %v226
  %v228 = vand.u32 %v227, 4294901760
  %v229 = vsub.f32 %v227, %v228
  %v230 = vand.u32 %v229, 4294901760
  %231 = vmatpush1.msra.mxu0 %v230
  %232 = vmatprep.subr.mxu0 0.0
  %v233 = vand.u32 %v23, 4294901760
  %v234 = vsub.f32 %v23, %v233
  %v235 = vand.u32 %v234, 4294901760
  %v236 = vsub.f32 %v234, %v235
  %v237 = vand.u32 %v236, 4294901760
  %238 = vmatpush1.msra.mxu0 %v237
  %239 = vmatprep.subr.mxu0 0.0
  %v240 = vand.u32 %v24, 4294901760
  %v241 = vsub.f32 %v24, %v240
  %v242 = vand.u32 %v241, 4294901760
  %v243 = vsub.f32 %v241, %v242
  %v244 = vand.u32 %v243, 4294901760
  %245 = vmatpush1.msra.mxu0 %v244
  %246 = vmatprep.subr.mxu0 0.0
  %v247 = vand.u32 %v25, 4294901760
  %v248 = vsub.f32 %v25, %v247
  %v249 = vand.u32 %v248, 4294901760
  %v250 = vsub.f32 %v248, %v249
  %v251 = vand.u32 %v250, 4294901760
  %252 = vmatpush1.msra.mxu0 %v251
  %253 = vmatprep.subr.mxu0 0.0
  %v254 = vand.u32 %v26, 4294901760
  %v255 = vsub.f32 %v26, %v254
  %v256 = vand.u32 %v255, 4294901760
  %v257 = vsub.f32 %v255, %v256
  %v258 = vand.u32 %v257, 4294901760
  %259 = vmatpush1.msra.mxu0 %v258
  %260 = vmatprep.subr.mxu0 0.0
  %v261 = vand.u32 %v27, 4294901760
  %v262 = vsub.f32 %v27, %v261
  %v263 = vand.u32 %v262, 4294901760
  %v264 = vsub.f32 %v262, %v263
  %v265 = vand.u32 %v264, 4294901760
  %266 = vmatpush1.msra.mxu0 %v265
  %267 = vmatprep.subr.mxu0 0.0
  %v268 = vand.u32 %v28, 4294901760
  %v269 = vsub.f32 %v28, %v268
  %v270 = vand.u32 %v269, 4294901760
  %v271 = vsub.f32 %v269, %v270
  %v272 = vand.u32 %v271, 4294901760
  %273 = vmatpush1.msra.mxu0 %v272
  %274 = vmatprep.subr.mxu0 0.0
  %v275 = vand.u32 %v29, 4294901760
  %v276 = vsub.f32 %v29, %v275
  %v277 = vand.u32 %v276, 4294901760
  %v278 = vsub.f32 %v276, %v277
  %v279 = vand.u32 %v278, 4294901760
  %280 = vmatpush1.msra.mxu0 %v279
  %281 = vmatprep.subr.mxu0 0.0
  %v282 = vand.u32 %v30, 4294901760
  %v283 = vsub.f32 %v30, %v282
  %v284 = vand.u32 %v283, 4294901760
  %v285 = vsub.f32 %v283, %v284
  %v286 = vand.u32 %v285, 4294901760
  %287 = vmatpush1.msra.mxu0 %v286
  %288 = vmatprep.subr.mxu0 0.0
  %v289 = vand.u32 %v31, 4294901760
  %v290 = vsub.f32 %v31, %v289
  %v291 = vand.u32 %v290, 4294901760
  %v292 = vsub.f32 %v290, %v291
  %v293 = vand.u32 %v292, 4294901760
  %294 = vmatpush1.msra.mxu0 %v293
  %295 = vmatprep.subr.mxu0 0.0
  %v296 = vand.u32 %v32, 4294901760
  %v297 = vsub.f32 %v32, %v296
  %v298 = vand.u32 %v297, 4294901760
  %v299 = vsub.f32 %v297, %v298
  %v300 = vand.u32 %v299, 4294901760
  %301 = vmatpush1.msra.mxu0 %v300
  %302 = vmatprep.subr.mxu0 0.0
  %v303 = vand.u32 %v33, 4294901760
  %v304 = vsub.f32 %v33, %v303
  %v305 = vand.u32 %v304, 4294901760
  %v306 = vsub.f32 %v304, %v305
  %v307 = vand.u32 %v306, 4294901760
  %308 = vmatpush1.msra.mxu0 %v307
  %309 = vmatprep.subr.mxu0 0.0
  %v310 = vand.u32 %v34, 4294901760
  %v311 = vsub.f32 %v34, %v310
  %v312 = vand.u32 %v311, 4294901760
  %v313 = vsub.f32 %v311, %v312
  %v314 = vand.u32 %v313, 4294901760
  %315 = vmatpush1.msra.mxu0 %v314
  %316 = vmatprep.subr.mxu0 0.0
  %v317 = vand.u32 %v35, 4294901760
  %v318 = vsub.f32 %v35, %v317
  %v319 = vand.u32 %v318, 4294901760
  %v320 = vsub.f32 %v318, %v319
  %v321 = vand.u32 %v320, 4294901760
  %322 = vmatpush1.msra.mxu0 %v321
  %323 = vmatprep.subr.mxu0 0.0
  %v324 = vand.u32 %v36, 4294901760
  %v325 = vsub.f32 %v36, %v324
  %v326 = vand.u32 %v325, 4294901760
  %v327 = vsub.f32 %v325, %v326
  %v328 = vand.u32 %v327, 4294901760
  %329 = vmatpush1.msra.mxu0 %v328
  %330 = vmatprep.subr.mxu0 0.0
  %v331 = vand.u32 %v37, 4294901760
  %v332 = vsub.f32 %v37, %v331
  %v333 = vand.u32 %v332, 4294901760
  %v334 = vsub.f32 %v332, %v333
  %v335 = vand.u32 %v334, 4294901760
  %336 = vmatpush1.msra.mxu0 %v335
  %337 = vmatprep.subr.mxu0 0.0
  %v338 = vand.u32 %v38, 4294901760
  %v339 = vsub.f32 %v38, %v338
  %v340 = vand.u32 %v339, 4294901760
  %v341 = vsub.f32 %v339, %v340
  %v342 = vand.u32 %v341, 4294901760
  %343 = vmatpush1.msra.mxu0 %v342
  %344 = vmatprep.subr.mxu0 0.0
  %v345 = vand.u32 %v39, 4294901760
  %v346 = vsub.f32 %v39, %v345
  %v347 = vand.u32 %v346, 4294901760
  %v348 = vsub.f32 %v346, %v347
  %v349 = vand.u32 %v348, 4294901760
  %350 = vmatpush1.msra.mxu0 %v349
  %351 = vmatprep.subr.mxu0 0.0
  %v352 = vand.u32 %v40, 4294901760
  %v353 = vsub.f32 %v40, %v352
  %v354 = vand.u32 %v353, 4294901760
  %v355 = vsub.f32 %v353, %v354
  %v356 = vand.u32 %v355, 4294901760
  %357 = vmatpush1.msra.mxu0 %v356
  %358 = vmatprep.subr.mxu0 0.0
  %v359 = vand.u32 %v41, 4294901760
  %v360 = vsub.f32 %v41, %v359
  %v361 = vand.u32 %v360, 4294901760
  %v362 = vsub.f32 %v360, %v361
  %v363 = vand.u32 %v362, 4294901760
  %364 = vmatpush1.msra.mxu0 %v363
  %365 = vmatprep.subr.mxu0 0.0
  %v366 = vand.u32 %v42, 4294901760
  %v367 = vsub.f32 %v42, %v366
  %v368 = vand.u32 %v367, 4294901760
  %v369 = vsub.f32 %v367, %v368
  %v370 = vand.u32 %v369, 4294901760
  %371 = vmatpush1.msra.mxu0 %v370
  %372 = vmatprep.subr.mxu0 0.0
  %v373 = vand.u32 %v43, 4294901760
  %v374 = vsub.f32 %v43, %v373
  %v375 = vand.u32 %v374, 4294901760
  %v376 = vsub.f32 %v374, %v375
  %v377 = vand.u32 %v376, 4294901760
  %378 = vmatpush1.msra.mxu0 %v377
  %379 = vmatprep.subr.mxu0 0.0
  %v380 = vand.u32 %v44, 4294901760
  %v381 = vsub.f32 %v44, %v380
  %v382 = vand.u32 %v381, 4294901760
  %v383 = vsub.f32 %v381, %v382
  %v384 = vand.u32 %v383, 4294901760
  %385 = vmatpush1.msra.mxu0 %v384
  %386 = vmatprep.subr.mxu0 0.0
  %v387 = vand.u32 %v45, 4294901760
  %v388 = vsub.f32 %v45, %v387
  %v389 = vand.u32 %v388, 4294901760
  %v390 = vsub.f32 %v388, %v389
  %v391 = vand.u32 %v390, 4294901760
  %392 = vmatpush1.msra.mxu0 %v391
  %393 = vmatprep.subr.mxu0 0.0
  %v394 = vand.u32 %v46, 4294901760
  %v395 = vsub.f32 %v46, %v394
  %v396 = vand.u32 %v395, 4294901760
  %v397 = vsub.f32 %v395, %v396
  %v398 = vand.u32 %v397, 4294901760
  %399 = vmatpush1.msra.mxu0 %v398
  %400 = vmatprep.subr.mxu0 0.0
  %v401 = vand.u32 %v47, 4294901760
  %v402 = vsub.f32 %v47, %v401
  %v403 = vand.u32 %v402, 4294901760
  %v404 = vsub.f32 %v402, %v403
  %v405 = vand.u32 %v404, 4294901760
  %406 = vmatpush1.msra.mxu0 %v405
  %407 = vmatprep.subr.mxu0 0.0
  %v408 = vand.u32 %v48, 4294901760
  %v409 = vsub.f32 %v48, %v408
  %v410 = vand.u32 %v409, 4294901760
  %v411 = vsub.f32 %v409, %v410
  %v412 = vand.u32 %v411, 4294901760
  %413 = vmatpush1.msra.mxu0 %v412
  %414 = vmatprep.subr.mxu0 0.0
  %v415 = vand.u32 %v49, 4294901760
  %v416 = vsub.f32 %v49, %v415
  %v417 = vand.u32 %v416, 4294901760
  %v418 = vsub.f32 %v416, %v417
  %v419 = vand.u32 %v418, 4294901760
  %420 = vmatpush1.msra.mxu0 %v419
  %421 = vmatprep.subr.mxu0 0.0
  %v422 = vand.u32 %v50, 4294901760
  %v423 = vsub.f32 %v50, %v422
  %v424 = vand.u32 %v423, 4294901760
  %v425 = vsub.f32 %v423, %v424
  %v426 = vand.u32 %v425, 4294901760
  %427 = vmatpush1.msra.mxu0 %v426
  %428 = vmatprep.subr.mxu0 0.0
  %v429 = vand.u32 %v51, 4294901760
  %v430 = vsub.f32 %v51, %v429
  %v431 = vand.u32 %v430, 4294901760
  %v432 = vsub.f32 %v430, %v431
  %v433 = vand.u32 %v432, 4294901760
  %434 = vmatpush1.msra.mxu0 %v433
  %435 = vmatprep.subr.mxu0 0.0
  %v436 = vand.u32 %v52, 4294901760
  %v437 = vsub.f32 %v52, %v436
  %v438 = vand.u32 %v437, 4294901760
  %v439 = vsub.f32 %v437, %v438
  %v440 = vand.u32 %v439, 4294901760
  %441 = vmatpush1.msra.mxu0 %v440
  %v442 = vand.u32 %v93, 4294901760
  %443 = vmatprep.mubr.f32.mxu0 %v442
  %v444 = vand.u32 %v89, 4294901760
  %445 = vmatmul.mubr.f32.gmra.mrb[0].mxu0 %v444
  %v446 = vpop.f32.mrb[0].mxu0
  %v447 = vadd.f32 %v215, %v446
  %v448 = vpop.f32.mrb[0].mxu0
  %449 = vdwg.mxu0
  %450 = vmatprep.subr.mxu0 0.0
  %v451 = vand.u32 %v21, 4294901760
  %v452 = vsub.f32 %v21, %v451
  %453 = vmatpush1.msra.mxu0 %v452
  %454 = vmatprep.subr.mxu0 0.0
  %v455 = vand.u32 %v22, 4294901760
  %v456 = vsub.f32 %v22, %v455
  %457 = vmatpush1.msra.mxu0 %v456
  %458 = vmatprep.subr.mxu0 0.0
  %v459 = vand.u32 %v23, 4294901760
  %v460 = vsub.f32 %v23, %v459
  %461 = vmatpush1.msra.mxu0 %v460
  %462 = vmatprep.subr.mxu0 0.0
  %v463 = vand.u32 %v24, 4294901760
  %v464 = vsub.f32 %v24, %v463
  %465 = vmatpush1.msra.mxu0 %v464
  %466 = vmatprep.subr.mxu0 0.0
  %v467 = vand.u32 %v25, 4294901760
  %v468 = vsub.f32 %v25, %v467
  %469 = vmatpush1.msra.mxu0 %v468
  %470 = vmatprep.subr.mxu0 0.0
  %v471 = vand.u32 %v26, 4294901760
  %v472 = vsub.f32 %v26, %v471
  %473 = vmatpush1.msra.mxu0 %v472
  %474 = vmatprep.subr.mxu0 0.0
  %v475 = vand.u32 %v27, 4294901760
  %v476 = vsub.f32 %v27, %v475
  %477 = vmatpush1.msra.mxu0 %v476
  %478 = vmatprep.subr.mxu0 0.0
  %v479 = vand.u32 %v28, 4294901760
  %v480 = vsub.f32 %v28, %v479
  %481 = vmatpush1.msra.mxu0 %v480
  %482 = vmatprep.subr.mxu0 0.0
  %v483 = vand.u32 %v29, 4294901760
  %v484 = vsub.f32 %v29, %v483
  %485 = vmatpush1.msra.mxu0 %v484
  %486 = vmatprep.subr.mxu0 0.0
  %v487 = vand.u32 %v30, 4294901760
  %v488 = vsub.f32 %v30, %v487
  %489 = vmatpush1.msra.mxu0 %v488
  %490 = vmatprep.subr.mxu0 0.0
  %v491 = vand.u32 %v31, 4294901760
  %v492 = vsub.f32 %v31, %v491
  %493 = vmatpush1.msra.mxu0 %v492
  %494 = vmatprep.subr.mxu0 0.0
  %v495 = vand.u32 %v32, 4294901760
  %v496 = vsub.f32 %v32, %v495
  %497 = vmatpush1.msra.mxu0 %v496
  %498 = vmatprep.subr.mxu0 0.0
  %v499 = vand.u32 %v33, 4294901760
  %v500 = vsub.f32 %v33, %v499
  %501 = vmatpush1.msra.mxu0 %v500
  %502 = vmatprep.subr.mxu0 0.0
  %v503 = vand.u32 %v34, 4294901760
  %v504 = vsub.f32 %v34, %v503
  %505 = vmatpush1.msra.mxu0 %v504
  %506 = vmatprep.subr.mxu0 0.0
  %v507 = vand.u32 %v35, 4294901760
  %v508 = vsub.f32 %v35, %v507
  %509 = vmatpush1.msra.mxu0 %v508
  %510 = vmatprep.subr.mxu0 0.0
  %v511 = vand.u32 %v36, 4294901760
  %v512 = vsub.f32 %v36, %v511
  %513 = vmatpush1.msra.mxu0 %v512
  %514 = vmatprep.subr.mxu0 0.0
  %v515 = vand.u32 %v37, 4294901760
  %v516 = vsub.f32 %v37, %v515
  %517 = vmatpush1.msra.mxu0 %v516
  %518 = vmatprep.subr.mxu0 0.0
  %v519 = vand.u32 %v38, 4294901760
  %v520 = vsub.f32 %v38, %v519
  %521 = vmatpush1.msra.mxu0 %v520
  %522 = vmatprep.subr.mxu0 0.0
  %v523 = vand.u32 %v39, 4294901760
  %v524 = vsub.f32 %v39, %v523
  %525 = vmatpush1.msra.mxu0 %v524
  %526 = vmatprep.subr.mxu0 0.0
  %v527 = vand.u32 %v40, 4294901760
  %v528 = vsub.f32 %v40, %v527
  %529 = vmatpush1.msra.mxu0 %v528
  %530 = vmatprep.subr.mxu0 0.0
  %v531 = vand.u32 %v41, 4294901760
  %v532 = vsub.f32 %v41, %v531
  %533 = vmatpush1.msra.mxu0 %v532
  %534 = vmatprep.subr.mxu0 0.0
  %v535 = vand.u32 %v42, 4294901760
  %v536 = vsub.f32 %v42, %v535
  %537 = vmatpush1.msra.mxu0 %v536
  %538 = vmatprep.subr.mxu0 0.0
  %v539 = vand.u32 %v43, 4294901760
  %v540 = vsub.f32 %v43, %v539
  %541 = vmatpush1.msra.mxu0 %v540
  %542 = vmatprep.subr.mxu0 0.0
  %v543 = vand.u32 %v44, 4294901760
  %v544 = vsub.f32 %v44, %v543
  %545 = vmatpush1.msra.mxu0 %v544
  %546 = vmatprep.subr.mxu0 0.0
  %v547 = vand.u32 %v45, 4294901760
  %v548 = vsub.f32 %v45, %v547
  %549 = vmatpush1.msra.mxu0 %v548
  %550 = vmatprep.subr.mxu0 0.0
  %v551 = vand.u32 %v46, 4294901760
  %v552 = vsub.f32 %v46, %v551
  %553 = vmatpush1.msra.mxu0 %v552
  %554 = vmatprep.subr.mxu0 0.0
  %v555 = vand.u32 %v47, 4294901760
  %v556 = vsub.f32 %v47, %v555
  %557 = vmatpush1.msra.mxu0 %v556
  %558 = vmatprep.subr.mxu0 0.0
  %v559 = vand.u32 %v48, 4294901760
  %v560 = vsub.f32 %v48, %v559
  %561 = vmatpush1.msra.mxu0 %v560
  %562 = vmatprep.subr.mxu0 0.0
  %v563 = vand.u32 %v49, 4294901760
  %v564 = vsub.f32 %v49, %v563
  %565 = vmatpush1.msra.mxu0 %v564
  %566 = vmatprep.subr.mxu0 0.0
  %v567 = vand.u32 %v50, 4294901760
  %v568 = vsub.f32 %v50, %v567
  %569 = vmatpush1.msra.mxu0 %v568
  %570 = vmatprep.subr.mxu0 0.0
  %v571 = vand.u32 %v51, 4294901760
  %v572 = vsub.f32 %v51, %v571
  %573 = vmatpush1.msra.mxu0 %v572
  %574 = vmatprep.subr.mxu0 0.0
  %v575 = vand.u32 %v52, 4294901760
  %v576 = vsub.f32 %v52, %v575
  %577 = vmatpush1.msra.mxu0 %v576
  %v578 = vand.u32 %v93, 4294901760
  %v579 = vsub.f32 %v93, %v578
  %580 = vmatprep.mubr.f32.mxu0 %v579
  %v581 = vand.u32 %v89, 4294901760
  %v582 = vsub.f32 %v89, %v581
  %583 = vmatmul.mubr.f32.gmra.mrb[0].mxu0 %v582
  %v584 = vpop.f32.mrb[0].mxu0
  %v585 = vadd.f32 %v447, %v584
  %v586 = vpop.f32.mrb[0].mxu0
  %587 = vdwg.mxu0
  %588 = vmatprep.subr.mxu0 0.0
  %v589 = vand.u32 %v21, 4294901760
  %590 = vmatpush1.msra.mxu0 %v589
  %591 = vmatprep.subr.mxu0 0.0
  %v592 = vand.u32 %v22, 4294901760
  %593 = vmatpush1.msra.mxu0 %v592
  %594 = vmatprep.subr.mxu0 0.0
  %v595 = vand.u32 %v23, 4294901760
  %596 = vmatpush1.msra.mxu0 %v595
  %597 = vmatprep.subr.mxu0 0.0
  %v598 = vand.u32 %v24, 4294901760
  %599 = vmatpush1.msra.mxu0 %v598
  %600 = vmatprep.subr.mxu0 0.0
  %v601 = vand.u32 %v25, 4294901760
  %602 = vmatpush1.msra.mxu0 %v601
  %603 = vmatprep.subr.mxu0 0.0
  %v604 = vand.u32 %v26, 4294901760
  %605 = vmatpush1.msra.mxu0 %v604
  %606 = vmatprep.subr.mxu0 0.0
  %v607 = vand.u32 %v27, 4294901760
  %608 = vmatpush1.msra.mxu0 %v607
  %609 = vmatprep.subr.mxu0 0.0
  %v610 = vand.u32 %v28, 4294901760
  %611 = vmatpush1.msra.mxu0 %v610
  %612 = vmatprep.subr.mxu0 0.0
  %v613 = vand.u32 %v29, 4294901760
  %614 = vmatpush1.msra.mxu0 %v613
  %615 = vmatprep.subr.mxu0 0.0
  %v616 = vand.u32 %v30, 4294901760
  %617 = vmatpush1.msra.mxu0 %v616
  %618 = vmatprep.subr.mxu0 0.0
  %v619 = vand.u32 %v31, 4294901760
  %620 = vmatpush1.msra.mxu0 %v619
  %621 = vmatprep.subr.mxu0 0.0
  %v622 = vand.u32 %v32, 4294901760
  %623 = vmatpush1.msra.mxu0 %v622
  %624 = vmatprep.subr.mxu0 0.0
  %v625 = vand.u32 %v33, 4294901760
  %626 = vmatpush1.msra.mxu0 %v625
  %627 = vmatprep.subr.mxu0 0.0
  %v628 = vand.u32 %v34, 4294901760
  %629 = vmatpush1.msra.mxu0 %v628
  %630 = vmatprep.subr.mxu0 0.0
  %v631 = vand.u32 %v35, 4294901760
  %632 = vmatpush1.msra.mxu0 %v631
  %633 = vmatprep.subr.mxu0 0.0
  %v634 = vand.u32 %v36, 4294901760
  %635 = vmatpush1.msra.mxu0 %v634
  %636 = vmatprep.subr.mxu0 0.0
  %v637 = vand.u32 %v37, 4294901760
  %638 = vmatpush1.msra.mxu0 %v637
  %639 = vmatprep.subr.mxu0 0.0
  %v640 = vand.u32 %v38, 4294901760
  %641 = vmatpush1.msra.mxu0 %v640
  %642 = vmatprep.subr.mxu0 0.0
  %v643 = vand.u32 %v39, 4294901760
  %644 = vmatpush1.msra.mxu0 %v643
  %645 = vmatprep.subr.mxu0 0.0
  %v646 = vand.u32 %v40, 4294901760
  %647 = vmatpush1.msra.mxu0 %v646
  %648 = vmatprep.subr.mxu0 0.0
  %v649 = vand.u32 %v41, 4294901760
  %650 = vmatpush1.msra.mxu0 %v649
  %651 = vmatprep.subr.mxu0 0.0
  %v652 = vand.u32 %v42, 4294901760
  %653 = vmatpush1.msra.mxu0 %v652
  %654 = vmatprep.subr.mxu0 0.0
  %v655 = vand.u32 %v43, 4294901760
  %656 = vmatpush1.msra.mxu0 %v655
  %657 = vmatprep.subr.mxu0 0.0
  %v658 = vand.u32 %v44, 4294901760
  %659 = vmatpush1.msra.mxu0 %v658
  %660 = vmatprep.subr.mxu0 0.0
  %v661 = vand.u32 %v45, 4294901760
  %662 = vmatpush1.msra.mxu0 %v661
  %663 = vmatprep.subr.mxu0 0.0
  %v664 = vand.u32 %v46, 4294901760
  %665 = vmatpush1.msra.mxu0 %v664
  %666 = vmatprep.subr.mxu0 0.0
  %v667 = vand.u32 %v47, 4294901760
  %668 = vmatpush1.msra.mxu0 %v667
  %669 = vmatprep.subr.mxu0 0.0
  %v670 = vand.u32 %v48, 4294901760
  %671 = vmatpush1.msra.mxu0 %v670
  %672 = vmatprep.subr.mxu0 0.0
  %v673 = vand.u32 %v49, 4294901760
  %674 = vmatpush1.msra.mxu0 %v673
  %675 = vmatprep.subr.mxu0 0.0
  %v676 = vand.u32 %v50, 4294901760
  %677 = vmatpush1.msra.mxu0 %v676
  %678 = vmatprep.subr.mxu0 0.0
  %v679 = vand.u32 %v51, 4294901760
  %680 = vmatpush1.msra.mxu0 %v679
  %681 = vmatprep.subr.mxu0 0.0
  %v682 = vand.u32 %v52, 4294901760
  %683 = vmatpush1.msra.mxu0 %v682
  %v684 = vand.u32 %v93, 4294901760
  %v685 = vsub.f32 %v93, %v684
  %v686 = vand.u32 %v685, 4294901760
  %687 = vmatprep.mubr.f32.mxu0 %v686
  %v688 = vand.u32 %v89, 4294901760
  %v689 = vsub.f32 %v89, %v688
  %v690 = vand.u32 %v689, 4294901760
  %691 = vmatmul.mubr.f32.gmra.mrb[0].mxu0 %v690
  %v692 = vpop.f32.mrb[0].mxu0
  %v693 = vadd.f32 %v585, %v692
  %v694 = vpop.f32.mrb[0].mxu0
  %695 = vdwg.mxu0
  %696 = vmatprep.subr.mxu0 0.0
  %v697 = vand.u32 %v21, 4294901760
  %v698 = vsub.f32 %v21, %v697
  %v699 = vand.u32 %v698, 4294901760
  %700 = vmatpush1.msra.mxu0 %v699
  %701 = vmatprep.subr.mxu0 0.0
  %v702 = vand.u32 %v22, 4294901760
  %v703 = vsub.f32 %v22, %v702
  %v704 = vand.u32 %v703, 4294901760
  %705 = vmatpush1.msra.mxu0 %v704
  %706 = vmatprep.subr.mxu0 0.0
  %v707 = vand.u32 %v23, 4294901760
  %v708 = vsub.f32 %v23, %v707
  %v709 = vand.u32 %v708, 4294901760
  %710 = vmatpush1.msra.mxu0 %v709
  %711 = vmatprep.subr.mxu0 0.0
  %v712 = vand.u32 %v24, 4294901760
  %v713 = vsub.f32 %v24, %v712
  %v714 = vand.u32 %v713, 4294901760
  %715 = vmatpush1.msra.mxu0 %v714
  %716 = vmatprep.subr.mxu0 0.0
  %v717 = vand.u32 %v25, 4294901760
  %v718 = vsub.f32 %v25, %v717
  %v719 = vand.u32 %v718, 4294901760
  %720 = vmatpush1.msra.mxu0 %v719
  %721 = vmatprep.subr.mxu0 0.0
  %v722 = vand.u32 %v26, 4294901760
  %v723 = vsub.f32 %v26, %v722
  %v724 = vand.u32 %v723, 4294901760
  %725 = vmatpush1.msra.mxu0 %v724
  %726 = vmatprep.subr.mxu0 0.0
  %v727 = vand.u32 %v27, 4294901760
  %v728 = vsub.f32 %v27, %v727
  %v729 = vand.u32 %v728, 4294901760
  %730 = vmatpush1.msra.mxu0 %v729
  %731 = vmatprep.subr.mxu0 0.0
  %v732 = vand.u32 %v28, 4294901760
  %v733 = vsub.f32 %v28, %v732
  %v734 = vand.u32 %v733, 4294901760
  %735 = vmatpush1.msra.mxu0 %v734
  %736 = vmatprep.subr.mxu0 0.0
  %v737 = vand.u32 %v29, 4294901760
  %v738 = vsub.f32 %v29, %v737
  %v739 = vand.u32 %v738, 4294901760
  %740 = vmatpush1.msra.mxu0 %v739
  %741 = vmatprep.subr.mxu0 0.0
  %v742 = vand.u32 %v30, 4294901760
  %v743 = vsub.f32 %v30, %v742
  %v744 = vand.u32 %v743, 4294901760
  %745 = vmatpush1.msra.mxu0 %v744
  %746 = vmatprep.subr.mxu0 0.0
  %v747 = vand.u32 %v31, 4294901760
  %v748 = vsub.f32 %v31, %v747
  %v749 = vand.u32 %v748, 4294901760
  %750 = vmatpush1.msra.mxu0 %v749
  %751 = vmatprep.subr.mxu0 0.0
  %v752 = vand.u32 %v32, 4294901760
  %v753 = vsub.f32 %v32, %v752
  %v754 = vand.u32 %v753, 4294901760
  %755 = vmatpush1.msra.mxu0 %v754
  %756 = vmatprep.subr.mxu0 0.0
  %v757 = vand.u32 %v33, 4294901760
  %v758 = vsub.f32 %v33, %v757
  %v759 = vand.u32 %v758, 4294901760
  %760 = vmatpush1.msra.mxu0 %v759
  %761 = vmatprep.subr.mxu0 0.0
  %v762 = vand.u32 %v34, 4294901760
  %v763 = vsub.f32 %v34, %v762
  %v764 = vand.u32 %v763, 4294901760
  %765 = vmatpush1.msra.mxu0 %v764
  %766 = vmatprep.subr.mxu0 0.0
  %v767 = vand.u32 %v35, 4294901760
  %v768 = vsub.f32 %v35, %v767
  %v769 = vand.u32 %v768, 4294901760
  %770 = vmatpush1.msra.mxu0 %v769
  %771 = vmatprep.subr.mxu0 0.0
  %v772 = vand.u32 %v36, 4294901760
  %v773 = vsub.f32 %v36, %v772
  %v774 = vand.u32 %v773, 4294901760
  %775 = vmatpush1.msra.mxu0 %v774
  %776 = vmatprep.subr.mxu0 0.0
  %v777 = vand.u32 %v37, 4294901760
  %v778 = vsub.f32 %v37, %v777
  %v779 = vand.u32 %v778, 4294901760
  %780 = vmatpush1.msra.mxu0 %v779
  %781 = vmatprep.subr.mxu0 0.0
  %v782 = vand.u32 %v38, 4294901760
  %v783 = vsub.f32 %v38, %v782
  %v784 = vand.u32 %v783, 4294901760
  %785 = vmatpush1.msra.mxu0 %v784
  %786 = vmatprep.subr.mxu0 0.0
  %v787 = vand.u32 %v39, 4294901760
  %v788 = vsub.f32 %v39, %v787
  %v789 = vand.u32 %v788, 4294901760
  %790 = vmatpush1.msra.mxu0 %v789
  %791 = vmatprep.subr.mxu0 0.0
  %v792 = vand.u32 %v40, 4294901760
  %v793 = vsub.f32 %v40, %v792
  %v794 = vand.u32 %v793, 4294901760
  %795 = vmatpush1.msra.mxu0 %v794
  %796 = vmatprep.subr.mxu0 0.0
  %v797 = vand.u32 %v41, 4294901760
  %v798 = vsub.f32 %v41, %v797
  %v799 = vand.u32 %v798, 4294901760
  %800 = vmatpush1.msra.mxu0 %v799
  %801 = vmatprep.subr.mxu0 0.0
  %v802 = vand.u32 %v42, 4294901760
  %v803 = vsub.f32 %v42, %v802
  %v804 = vand.u32 %v803, 4294901760
  %805 = vmatpush1.msra.mxu0 %v804
  %806 = vmatprep.subr.mxu0 0.0
  %v807 = vand.u32 %v43, 4294901760
  %v808 = vsub.f32 %v43, %v807
  %v809 = vand.u32 %v808, 4294901760
  %810 = vmatpush1.msra.mxu0 %v809
  %811 = vmatprep.subr.mxu0 0.0
  %v812 = vand.u32 %v44, 4294901760
  %v813 = vsub.f32 %v44, %v812
  %v814 = vand.u32 %v813, 4294901760
  %815 = vmatpush1.msra.mxu0 %v814
  %816 = vmatprep.subr.mxu0 0.0
  %v817 = vand.u32 %v45, 4294901760
  %v818 = vsub.f32 %v45, %v817
  %v819 = vand.u32 %v818, 4294901760
  %820 = vmatpush1.msra.mxu0 %v819
  %821 = vmatprep.subr.mxu0 0.0
  %v822 = vand.u32 %v46, 4294901760
  %v823 = vsub.f32 %v46, %v822
  %v824 = vand.u32 %v823, 4294901760
  %825 = vmatpush1.msra.mxu0 %v824
  %826 = vmatprep.subr.mxu0 0.0
  %v827 = vand.u32 %v47, 4294901760
  %v828 = vsub.f32 %v47, %v827
  %v829 = vand.u32 %v828, 4294901760
  %830 = vmatpush1.msra.mxu0 %v829
  %831 = vmatprep.subr.mxu0 0.0
  %v832 = vand.u32 %v48, 4294901760
  %v833 = vsub.f32 %v48, %v832
  %v834 = vand.u32 %v833, 4294901760
  %835 = vmatpush1.msra.mxu0 %v834
  %836 = vmatprep.subr.mxu0 0.0
  %v837 = vand.u32 %v49, 4294901760
  %v838 = vsub.f32 %v49, %v837
  %v839 = vand.u32 %v838, 4294901760
  %840 = vmatpush1.msra.mxu0 %v839
  %841 = vmatprep.subr.mxu0 0.0
  %v842 = vand.u32 %v50, 4294901760
  %v843 = vsub.f32 %v50, %v842
  %v844 = vand.u32 %v843, 4294901760
  %845 = vmatpush1.msra.mxu0 %v844
  %846 = vmatprep.subr.mxu0 0.0
  %v847 = vand.u32 %v51, 4294901760
  %v848 = vsub.f32 %v51, %v847
  %v849 = vand.u32 %v848, 4294901760
  %850 = vmatpush1.msra.mxu0 %v849
  %851 = vmatprep.subr.mxu0 0.0
  %v852 = vand.u32 %v52, 4294901760
  %v853 = vsub.f32 %v52, %v852
  %v854 = vand.u32 %v853, 4294901760
  %855 = vmatpush1.msra.mxu0 %v854
  %v856 = vand.u32 %v93, 4294901760
  %857 = vmatprep.mubr.f32.mxu0 %v856
  %v858 = vand.u32 %v89, 4294901760
  %859 = vmatmul.mubr.f32.gmra.mrb[0].mxu0 %v858
  %v860 = vpop.f32.mrb[0].mxu0
  %v861 = vadd.f32 %v693, %v860
  %v862 = vpop.f32.mrb[0].mxu0
  %863 = vdwg.mxu0
  %864 = vmatprep.subr.mxu0 0.0
  %v865 = vand.u32 %v21, 4294901760
  %866 = vmatpush1.msra.mxu0 %v865
  %867 = vmatprep.subr.mxu0 0.0
  %v868 = vand.u32 %v22, 4294901760
  %869 = vmatpush1.msra.mxu0 %v868
  %870 = vmatprep.subr.mxu0 0.0
  %v871 = vand.u32 %v23, 4294901760
  %872 = vmatpush1.msra.mxu0 %v871
  %873 = vmatprep.subr.mxu0 0.0
  %v874 = vand.u32 %v24, 4294901760
  %875 = vmatpush1.msra.mxu0 %v874
  %876 = vmatprep.subr.mxu0 0.0
  %v877 = vand.u32 %v25, 4294901760
  %878 = vmatpush1.msra.mxu0 %v877
  %879 = vmatprep.subr.mxu0 0.0
  %v880 = vand.u32 %v26, 4294901760
  %881 = vmatpush1.msra.mxu0 %v880
  %882 = vmatprep.subr.mxu0 0.0
  %v883 = vand.u32 %v27, 4294901760
  %884 = vmatpush1.msra.mxu0 %v883
  %885 = vmatprep.subr.mxu0 0.0
  %v886 = vand.u32 %v28, 4294901760
  %887 = vmatpush1.msra.mxu0 %v886
  %888 = vmatprep.subr.mxu0 0.0
  %v889 = vand.u32 %v29, 4294901760
  %890 = vmatpush1.msra.mxu0 %v889
  %891 = vmatprep.subr.mxu0 0.0
  %v892 = vand.u32 %v30, 4294901760
  %893 = vmatpush1.msra.mxu0 %v892
  %894 = vmatprep.subr.mxu0 0.0
  %v895 = vand.u32 %v31, 4294901760
  %896 = vmatpush1.msra.mxu0 %v895
  %897 = vmatprep.subr.mxu0 0.0
  %v898 = vand.u32 %v32, 4294901760
  %899 = vmatpush1.msra.mxu0 %v898
  %900 = vmatprep.subr.mxu0 0.0
  %v901 = vand.u32 %v33, 4294901760
  %902 = vmatpush1.msra.mxu0 %v901
  %903 = vmatprep.subr.mxu0 0.0
  %v904 = vand.u32 %v34, 4294901760
  %905 = vmatpush1.msra.mxu0 %v904
  %906 = vmatprep.subr.mxu0 0.0
  %v907 = vand.u32 %v35, 4294901760
  %908 = vmatpush1.msra.mxu0 %v907
  %909 = vmatprep.subr.mxu0 0.0
  %v910 = vand.u32 %v36, 4294901760
  %911 = vmatpush1.msra.mxu0 %v910
  %912 = vmatprep.subr.mxu0 0.0
  %v913 = vand.u32 %v37, 4294901760
  %914 = vmatpush1.msra.mxu0 %v913
  %915 = vmatprep.subr.mxu0 0.0
  %v916 = vand.u32 %v38, 4294901760
  %917 = vmatpush1.msra.mxu0 %v916
  %918 = vmatprep.subr.mxu0 0.0
  %v919 = vand.u32 %v39, 4294901760
  %920 = vmatpush1.msra.mxu0 %v919
  %921 = vmatprep.subr.mxu0 0.0
  %v922 = vand.u32 %v40, 4294901760
  %923 = vmatpush1.msra.mxu0 %v922
  %924 = vmatprep.subr.mxu0 0.0
  %v925 = vand.u32 %v41, 4294901760
  %926 = vmatpush1.msra.mxu0 %v925
  %927 = vmatprep.subr.mxu0 0.0
  %v928 = vand.u32 %v42, 4294901760
  %929 = vmatpush1.msra.mxu0 %v928
  %930 = vmatprep.subr.mxu0 0.0
  %v931 = vand.u32 %v43, 4294901760
  %932 = vmatpush1.msra.mxu0 %v931
  %933 = vmatprep.subr.mxu0 0.0
  %v934 = vand.u32 %v44, 4294901760
  %935 = vmatpush1.msra.mxu0 %v934
  %936 = vmatprep.subr.mxu0 0.0
  %v937 = vand.u32 %v45, 4294901760
  %938 = vmatpush1.msra.mxu0 %v937
  %939 = vmatprep.subr.mxu0 0.0
  %v940 = vand.u32 %v46, 4294901760
  %941 = vmatpush1.msra.mxu0 %v940
  %942 = vmatprep.subr.mxu0 0.0
  %v943 = vand.u32 %v47, 4294901760
  %944 = vmatpush1.msra.mxu0 %v943
  %945 = vmatprep.subr.mxu0 0.0
  %v946 = vand.u32 %v48, 4294901760
  %947 = vmatpush1.msra.mxu0 %v946
  %948 = vmatprep.subr.mxu0 0.0
  %v949 = vand.u32 %v49, 4294901760
  %950 = vmatpush1.msra.mxu0 %v949
  %951 = vmatprep.subr.mxu0 0.0
  %v952 = vand.u32 %v50, 4294901760
  %953 = vmatpush1.msra.mxu0 %v952
  %954 = vmatprep.subr.mxu0 0.0
  %v955 = vand.u32 %v51, 4294901760
  %956 = vmatpush1.msra.mxu0 %v955
  %957 = vmatprep.subr.mxu0 0.0
  %v958 = vand.u32 %v52, 4294901760
  %959 = vmatpush1.msra.mxu0 %v958
  %v960 = vand.u32 %v93, 4294901760
  %961 = vmatprep.mubr.f32.mxu0 %v960
  %v962 = vand.u32 %v89, 4294901760
  %963 = vmatmul.mubr.f32.gmra.mrb[0].mxu0 %v962
  %v964 = vpop.f32.mrb[0].mxu0
  %v965 = vadd.f32 %v861, %v964
  %v966 = vpop.f32.mrb[0].mxu0
  %967 = vdwg.mxu0
  %968 = vmatprep.subr.mxu0 0.0
  %v969 = vand.u32 %v53, 4294901760
  %970 = vmatpush1.msra.mxu0 %v969
  %971 = vmatprep.subr.mxu0 0.0
  %v972 = vand.u32 %v54, 4294901760
  %973 = vmatpush1.msra.mxu0 %v972
  %974 = vmatprep.subr.mxu0 0.0
  %v975 = vand.u32 %v55, 4294901760
  %976 = vmatpush1.msra.mxu0 %v975
  %977 = vmatprep.subr.mxu0 0.0
  %v978 = vand.u32 %v56, 4294901760
  %979 = vmatpush1.msra.mxu0 %v978
  %980 = vmatprep.subr.mxu0 0.0
  %v981 = vand.u32 %v57, 4294901760
  %982 = vmatpush1.msra.mxu0 %v981
  %983 = vmatprep.subr.mxu0 0.0
  %v984 = vand.u32 %v58, 4294901760
  %985 = vmatpush1.msra.mxu0 %v984
  %986 = vmatprep.subr.mxu0 0.0
  %v987 = vand.u32 %v59, 4294901760
  %988 = vmatpush1.msra.mxu0 %v987
  %989 = vmatprep.subr.mxu0 0.0
  %v990 = vand.u32 %v60, 4294901760
  %991 = vmatpush1.msra.mxu0 %v990
  %992 = vmatprep.subr.mxu0 0.0
  %v993 = vand.u32 %v61, 4294901760
  %994 = vmatpush1.msra.mxu0 %v993
  %995 = vmatprep.subr.mxu0 0.0
  %v996 = vand.u32 %v62, 4294901760
  %997 = vmatpush1.msra.mxu0 %v996
  %998 = vmatprep.subr.mxu0 0.0
  %v999 = vand.u32 %v63, 4294901760
  %1000 = vmatpush1.msra.mxu0 %v999
  %1001 = vmatprep.subr.mxu0 0.0
  %v1002 = vand.u32 %v64, 4294901760
  %1003 = vmatpush1.msra.mxu0 %v1002
  %1004 = vmatprep.subr.mxu0 0.0
  %v1005 = vand.u32 %v65, 4294901760
  %1006 = vmatpush1.msra.mxu0 %v1005
  %1007 = vmatprep.subr.mxu0 0.0
  %v1008 = vand.u32 %v66, 4294901760
  %1009 = vmatpush1.msra.mxu0 %v1008
  %1010 = vmatprep.subr.mxu0 0.0
  %v1011 = vand.u32 %v67, 4294901760
  %1012 = vmatpush1.msra.mxu0 %v1011
  %1013 = vmatprep.subr.mxu0 0.0
  %v1014 = vand.u32 %v68, 4294901760
  %1015 = vmatpush1.msra.mxu0 %v1014
  %1016 = vmatprep.subr.mxu0 0.0
  %v1017 = vand.u32 %v69, 4294901760
  %1018 = vmatpush1.msra.mxu0 %v1017
  %1019 = vmatprep.subr.mxu0 0.0
  %v1020 = vand.u32 %v70, 4294901760
  %1021 = vmatpush1.msra.mxu0 %v1020
  %1022 = vmatprep.subr.mxu0 0.0
  %v1023 = vand.u32 %v71, 4294901760
  %1024 = vmatpush1.msra.mxu0 %v1023
  %1025 = vmatprep.subr.mxu0 0.0
  %v1026 = vand.u32 %v72, 4294901760
  %1027 = vmatpush1.msra.mxu0 %v1026
  %1028 = vmatprep.subr.mxu0 0.0
  %v1029 = vand.u32 %v73, 4294901760
  %1030 = vmatpush1.msra.mxu0 %v1029
  %1031 = vmatprep.subr.mxu0 0.0
  %v1032 = vand.u32 %v74, 4294901760
  %1033 = vmatpush1.msra.mxu0 %v1032
  %1034 = vmatprep.subr.mxu0 0.0
  %v1035 = vand.u32 %v75, 4294901760
  %1036 = vmatpush1.msra.mxu0 %v1035
  %1037 = vmatprep.subr.mxu0 0.0
  %v1038 = vand.u32 %v76, 4294901760
  %1039 = vmatpush1.msra.mxu0 %v1038
  %1040 = vmatprep.subr.mxu0 0.0
  %v1041 = vand.u32 %v77, 4294901760
  %1042 = vmatpush1.msra.mxu0 %v1041
  %1043 = vmatprep.subr.mxu0 0.0
  %v1044 = vand.u32 %v78, 4294901760
  %1045 = vmatpush1.msra.mxu0 %v1044
  %1046 = vmatprep.subr.mxu0 0.0
  %v1047 = vand.u32 %v79, 4294901760
  %1048 = vmatpush1.msra.mxu0 %v1047
  %1049 = vmatprep.subr.mxu0 0.0
  %v1050 = vand.u32 %v80, 4294901760
  %1051 = vmatpush1.msra.mxu0 %v1050
  %1052 = vmatprep.subr.mxu0 0.0
  %v1053 = vand.u32 %v81, 4294901760
  %1054 = vmatpush1.msra.mxu0 %v1053
  %1055 = vmatprep.subr.mxu0 0.0
  %v1056 = vand.u32 %v82, 4294901760
  %1057 = vmatpush1.msra.mxu0 %v1056
  %1058 = vmatprep.subr.mxu0 0.0
  %v1059 = vand.u32 %v83, 4294901760
  %1060 = vmatpush1.msra.mxu0 %v1059
  %1061 = vmatprep.subr.mxu0 0.0
  %v1062 = vand.u32 %v84, 4294901760
  %1063 = vmatpush1.msra.mxu0 %v1062
  %v1064 = vand.u32 %v101, 4294901760
  %v1065 = vsub.f32 %v101, %v1064
  %v1066 = vand.u32 %v1065, 4294901760
  %v1067 = vsub.f32 %v1065, %v1066
  %v1068 = vand.u32 %v1067, 4294901760
  %1069 = vmatprep.mubr.f32.mxu0 %v1068
  %v1070 = vand.u32 %v97, 4294901760
  %v1071 = vsub.f32 %v97, %v1070
  %v1072 = vand.u32 %v1071, 4294901760
  %v1073 = vsub.f32 %v1071, %v1072
  %v1074 = vand.u32 %v1073, 4294901760
  %1075 = vmatmul.mubr.f32.gmra.mrb[0].mxu0 %v1074
  %v1076 = vpop.f32.mrb[0].mxu0
  %v1077 = vadd.f32 %v965, %v1076
  %v1078 = vpop.f32.mrb[0].mxu0
  %1079 = vdwg.mxu0
  %1080 = vmatprep.subr.mxu0 0.0
  %v1081 = vand.u32 %v53, 4294901760
  %v1082 = vsub.f32 %v53, %v1081
  %v1083 = vand.u32 %v1082, 4294901760
  %v1084 = vsub.f32 %v1082, %v1083
  %v1085 = vand.u32 %v1084, 4294901760
  %1086 = vmatpush1.msra.mxu0 %v1085
  %1087 = vmatprep.subr.mxu0 0.0
  %v1088 = vand.u32 %v54, 4294901760
  %v1089 = vsub.f32 %v54, %v1088
  %v1090 = vand.u32 %v1089, 4294901760
  %v1091 = vsub.f32 %v1089, %v1090
  %v1092 = vand.u32 %v1091, 4294901760
  %1093 = vmatpush1.msra.mxu0 %v1092
  %1094 = vmatprep.subr.mxu0 0.0
  %v1095 = vand.u32 %v55, 4294901760
  %v1096 = vsub.f32 %v55, %v1095
  %v1097 = vand.u32 %v1096, 4294901760
  %v1098 = vsub.f32 %v1096, %v1097
  %v1099 = vand.u32 %v1098, 4294901760
  %1100 = vmatpush1.msra.mxu0 %v1099
  %1101 = vmatprep.subr.mxu0 0.0
  %v1102 = vand.u32 %v56, 4294901760
  %v1103 = vsub.f32 %v56, %v1102
  %v1104 = vand.u32 %v1103, 4294901760
  %v1105 = vsub.f32 %v1103, %v1104
  %v1106 = vand.u32 %v1105, 4294901760
  %1107 = vmatpush1.msra.mxu0 %v1106
  %1108 = vmatprep.subr.mxu0 0.0
  %v1109 = vand.u32 %v57, 4294901760
  %v1110 = vsub.f32 %v57, %v1109
  %v1111 = vand.u32 %v1110, 4294901760
  %v1112 = vsub.f32 %v1110, %v1111
  %v1113 = vand.u32 %v1112, 4294901760
  %1114 = vmatpush1.msra.mxu0 %v1113
  %1115 = vmatprep.subr.mxu0 0.0
  %v1116 = vand.u32 %v58, 4294901760
  %v1117 = vsub.f32 %v58, %v1116
  %v1118 = vand.u32 %v1117, 4294901760
  %v1119 = vsub.f32 %v1117, %v1118
  %v1120 = vand.u32 %v1119, 4294901760
  %1121 = vmatpush1.msra.mxu0 %v1120
  %1122 = vmatprep.subr.mxu0 0.0
  %v1123 = vand.u32 %v59, 4294901760
  %v1124 = vsub.f32 %v59, %v1123
  %v1125 = vand.u32 %v1124, 4294901760
  %v1126 = vsub.f32 %v1124, %v1125
  %v1127 = vand.u32 %v1126, 4294901760
  %1128 = vmatpush1.msra.mxu0 %v1127
  %1129 = vmatprep.subr.mxu0 0.0
  %v1130 = vand.u32 %v60, 4294901760
  %v1131 = vsub.f32 %v60, %v1130
  %v1132 = vand.u32 %v1131, 4294901760
  %v1133 = vsub.f32 %v1131, %v1132
  %v1134 = vand.u32 %v1133, 4294901760
  %1135 = vmatpush1.msra.mxu0 %v1134
  %1136 = vmatprep.subr.mxu0 0.0
  %v1137 = vand.u32 %v61, 4294901760
  %v1138 = vsub.f32 %v61, %v1137
  %v1139 = vand.u32 %v1138, 4294901760
  %v1140 = vsub.f32 %v1138, %v1139
  %v1141 = vand.u32 %v1140, 4294901760
  %1142 = vmatpush1.msra.mxu0 %v1141
  %1143 = vmatprep.subr.mxu0 0.0
  %v1144 = vand.u32 %v62, 4294901760
  %v1145 = vsub.f32 %v62, %v1144
  %v1146 = vand.u32 %v1145, 4294901760
  %v1147 = vsub.f32 %v1145, %v1146
  %v1148 = vand.u32 %v1147, 4294901760
  %1149 = vmatpush1.msra.mxu0 %v1148
  %1150 = vmatprep.subr.mxu0 0.0
  %v1151 = vand.u32 %v63, 4294901760
  %v1152 = vsub.f32 %v63, %v1151
  %v1153 = vand.u32 %v1152, 4294901760
  %v1154 = vsub.f32 %v1152, %v1153
  %v1155 = vand.u32 %v1154, 4294901760
  %1156 = vmatpush1.msra.mxu0 %v1155
  %1157 = vmatprep.subr.mxu0 0.0
  %v1158 = vand.u32 %v64, 4294901760
  %v1159 = vsub.f32 %v64, %v1158
  %v1160 = vand.u32 %v1159, 4294901760
  %v1161 = vsub.f32 %v1159, %v1160
  %v1162 = vand.u32 %v1161, 4294901760
  %1163 = vmatpush1.msra.mxu0 %v1162
  %1164 = vmatprep.subr.mxu0 0.0
  %v1165 = vand.u32 %v65, 4294901760
  %v1166 = vsub.f32 %v65, %v1165
  %v1167 = vand.u32 %v1166, 4294901760
  %v1168 = vsub.f32 %v1166, %v1167
  %v1169 = vand.u32 %v1168, 4294901760
  %1170 = vmatpush1.msra.mxu0 %v1169
  %1171 = vmatprep.subr.mxu0 0.0
  %v1172 = vand.u32 %v66, 4294901760
  %v1173 = vsub.f32 %v66, %v1172
  %v1174 = vand.u32 %v1173, 4294901760
  %v1175 = vsub.f32 %v1173, %v1174
  %v1176 = vand.u32 %v1175, 4294901760
  %1177 = vmatpush1.msra.mxu0 %v1176
  %1178 = vmatprep.subr.mxu0 0.0
  %v1179 = vand.u32 %v67, 4294901760
  %v1180 = vsub.f32 %v67, %v1179
  %v1181 = vand.u32 %v1180, 4294901760
  %v1182 = vsub.f32 %v1180, %v1181
  %v1183 = vand.u32 %v1182, 4294901760
  %1184 = vmatpush1.msra.mxu0 %v1183
  %1185 = vmatprep.subr.mxu0 0.0
  %v1186 = vand.u32 %v68, 4294901760
  %v1187 = vsub.f32 %v68, %v1186
  %v1188 = vand.u32 %v1187, 4294901760
  %v1189 = vsub.f32 %v1187, %v1188
  %v1190 = vand.u32 %v1189, 4294901760
  %1191 = vmatpush1.msra.mxu0 %v1190
  %1192 = vmatprep.subr.mxu0 0.0
  %v1193 = vand.u32 %v69, 4294901760
  %v1194 = vsub.f32 %v69, %v1193
  %v1195 = vand.u32 %v1194, 4294901760
  %v1196 = vsub.f32 %v1194, %v1195
  %v1197 = vand.u32 %v1196, 4294901760
  %1198 = vmatpush1.msra.mxu0 %v1197
  %1199 = vmatprep.subr.mxu0 0.0
  %v1200 = vand.u32 %v70, 4294901760
  %v1201 = vsub.f32 %v70, %v1200
  %v1202 = vand.u32 %v1201, 4294901760
  %v1203 = vsub.f32 %v1201, %v1202
  %v1204 = vand.u32 %v1203, 4294901760
  %1205 = vmatpush1.msra.mxu0 %v1204
  %1206 = vmatprep.subr.mxu0 0.0
  %v1207 = vand.u32 %v71, 4294901760
  %v1208 = vsub.f32 %v71, %v1207
  %v1209 = vand.u32 %v1208, 4294901760
  %v1210 = vsub.f32 %v1208, %v1209
  %v1211 = vand.u32 %v1210, 4294901760
  %1212 = vmatpush1.msra.mxu0 %v1211
  %1213 = vmatprep.subr.mxu0 0.0
  %v1214 = vand.u32 %v72, 4294901760
  %v1215 = vsub.f32 %v72, %v1214
  %v1216 = vand.u32 %v1215, 4294901760
  %v1217 = vsub.f32 %v1215, %v1216
  %v1218 = vand.u32 %v1217, 4294901760
  %1219 = vmatpush1.msra.mxu0 %v1218
  %1220 = vmatprep.subr.mxu0 0.0
  %v1221 = vand.u32 %v73, 4294901760
  %v1222 = vsub.f32 %v73, %v1221
  %v1223 = vand.u32 %v1222, 4294901760
  %v1224 = vsub.f32 %v1222, %v1223
  %v1225 = vand.u32 %v1224, 4294901760
  %1226 = vmatpush1.msra.mxu0 %v1225
  %1227 = vmatprep.subr.mxu0 0.0
  %v1228 = vand.u32 %v74, 4294901760
  %v1229 = vsub.f32 %v74, %v1228
  %v1230 = vand.u32 %v1229, 4294901760
  %v1231 = vsub.f32 %v1229, %v1230
  %v1232 = vand.u32 %v1231, 4294901760
  %1233 = vmatpush1.msra.mxu0 %v1232
  %1234 = vmatprep.subr.mxu0 0.0
  %v1235 = vand.u32 %v75, 4294901760
  %v1236 = vsub.f32 %v75, %v1235
  %v1237 = vand.u32 %v1236, 4294901760
  %v1238 = vsub.f32 %v1236, %v1237
  %v1239 = vand.u32 %v1238, 4294901760
  %1240 = vmatpush1.msra.mxu0 %v1239
  %1241 = vmatprep.subr.mxu0 0.0
  %v1242 = vand.u32 %v76, 4294901760
  %v1243 = vsub.f32 %v76, %v1242
  %v1244 = vand.u32 %v1243, 4294901760
  %v1245 = vsub.f32 %v1243, %v1244
  %v1246 = vand.u32 %v1245, 4294901760
  %1247 = vmatpush1.msra.mxu0 %v1246
  %1248 = vmatprep.subr.mxu0 0.0
  %v1249 = vand.u32 %v77, 4294901760
  %v1250 = vsub.f32 %v77, %v1249
  %v1251 = vand.u32 %v1250, 4294901760
  %v1252 = vsub.f32 %v1250, %v1251
  %v1253 = vand.u32 %v1252, 4294901760
  %1254 = vmatpush1.msra.mxu0 %v1253
  %1255 = vmatprep.subr.mxu0 0.0
  %v1256 = vand.u32 %v78, 4294901760
  %v1257 = vsub.f32 %v78, %v1256
  %v1258 = vand.u32 %v1257, 4294901760
  %v1259 = vsub.f32 %v1257, %v1258
  %v1260 = vand.u32 %v1259, 4294901760
  %1261 = vmatpush1.msra.mxu0 %v1260
  %1262 = vmatprep.subr.mxu0 0.0
  %v1263 = vand.u32 %v79, 4294901760
  %v1264 = vsub.f32 %v79, %v1263
  %v1265 = vand.u32 %v1264, 4294901760
  %v1266 = vsub.f32 %v1264, %v1265
  %v1267 = vand.u32 %v1266, 4294901760
  %1268 = vmatpush1.msra.mxu0 %v1267
  %1269 = vmatprep.subr.mxu0 0.0
  %v1270 = vand.u32 %v80, 4294901760
  %v1271 = vsub.f32 %v80, %v1270
  %v1272 = vand.u32 %v1271, 4294901760
  %v1273 = vsub.f32 %v1271, %v1272
  %v1274 = vand.u32 %v1273, 4294901760
  %1275 = vmatpush1.msra.mxu0 %v1274
  %1276 = vmatprep.subr.mxu0 0.0
  %v1277 = vand.u32 %v81, 4294901760
  %v1278 = vsub.f32 %v81, %v1277
  %v1279 = vand.u32 %v1278, 4294901760
  %v1280 = vsub.f32 %v1278, %v1279
  %v1281 = vand.u32 %v1280, 4294901760
  %1282 = vmatpush1.msra.mxu0 %v1281
  %1283 = vmatprep.subr.mxu0 0.0
  %v1284 = vand.u32 %v82, 4294901760
  %v1285 = vsub.f32 %v82, %v1284
  %v1286 = vand.u32 %v1285, 4294901760
  %v1287 = vsub.f32 %v1285, %v1286
  %v1288 = vand.u32 %v1287, 4294901760
  %1289 = vmatpush1.msra.mxu0 %v1288
  %1290 = vmatprep.subr.mxu0 0.0
  %v1291 = vand.u32 %v83, 4294901760
  %v1292 = vsub.f32 %v83, %v1291
  %v1293 = vand.u32 %v1292, 4294901760
  %v1294 = vsub.f32 %v1292, %v1293
  %v1295 = vand.u32 %v1294, 4294901760
  %1296 = vmatpush1.msra.mxu0 %v1295
  %1297 = vmatprep.subr.mxu0 0.0
  %v1298 = vand.u32 %v84, 4294901760
  %v1299 = vsub.f32 %v84, %v1298
  %v1300 = vand.u32 %v1299, 4294901760
  %v1301 = vsub.f32 %v1299, %v1300
  %v1302 = vand.u32 %v1301, 4294901760
  %1303 = vmatpush1.msra.mxu0 %v1302
  %v1304 = vand.u32 %v101, 4294901760
  %1305 = vmatprep.mubr.f32.mxu0 %v1304
  %v1306 = vand.u32 %v97, 4294901760
  %1307 = vmatmul.mubr.f32.gmra.mrb[0].mxu0 %v1306
  %v1308 = vpop.f32.mrb[0].mxu0
  %v1309 = vadd.f32 %v1077, %v1308
  %v1310 = vpop.f32.mrb[0].mxu0
  %1311 = vdwg.mxu0
  %1312 = vmatprep.subr.mxu0 0.0
  %v1313 = vand.u32 %v53, 4294901760
  %v1314 = vsub.f32 %v53, %v1313
  %1315 = vmatpush1.msra.mxu0 %v1314
  %1316 = vmatprep.subr.mxu0 0.0
  %v1317 = vand.u32 %v54, 4294901760
  %v1318 = vsub.f32 %v54, %v1317
  %1319 = vmatpush1.msra.mxu0 %v1318
  %1320 = vmatprep.subr.mxu0 0.0
  %v1321 = vand.u32 %v55, 4294901760
  %v1322 = vsub.f32 %v55, %v1321
  %1323 = vmatpush1.msra.mxu0 %v1322
  %1324 = vmatprep.subr.mxu0 0.0
  %v1325 = vand.u32 %v56, 4294901760
  %v1326 = vsub.f32 %v56, %v1325
  %1327 = vmatpush1.msra.mxu0 %v1326
  %1328 = vmatprep.subr.mxu0 0.0
  %v1329 = vand.u32 %v57, 4294901760
  %v1330 = vsub.f32 %v57, %v1329
  %1331 = vmatpush1.msra.mxu0 %v1330
  %1332 = vmatprep.subr.mxu0 0.0
  %v1333 = vand.u32 %v58, 4294901760
  %v1334 = vsub.f32 %v58, %v1333
  %1335 = vmatpush1.msra.mxu0 %v1334
  %1336 = vmatprep.subr.mxu0 0.0
  %v1337 = vand.u32 %v59, 4294901760
  %v1338 = vsub.f32 %v59, %v1337
  %1339 = vmatpush1.msra.mxu0 %v1338
  %1340 = vmatprep.subr.mxu0 0.0
  %v1341 = vand.u32 %v60, 4294901760
  %v1342 = vsub.f32 %v60, %v1341
  %1343 = vmatpush1.msra.mxu0 %v1342
  %1344 = vmatprep.subr.mxu0 0.0
  %v1345 = vand.u32 %v61, 4294901760
  %v1346 = vsub.f32 %v61, %v1345
  %1347 = vmatpush1.msra.mxu0 %v1346
  %1348 = vmatprep.subr.mxu0 0.0
  %v1349 = vand.u32 %v62, 4294901760
  %v1350 = vsub.f32 %v62, %v1349
  %1351 = vmatpush1.msra.mxu0 %v1350
  %1352 = vmatprep.subr.mxu0 0.0
  %v1353 = vand.u32 %v63, 4294901760
  %v1354 = vsub.f32 %v63, %v1353
  %1355 = vmatpush1.msra.mxu0 %v1354
  %1356 = vmatprep.subr.mxu0 0.0
  %v1357 = vand.u32 %v64, 4294901760
  %v1358 = vsub.f32 %v64, %v1357
  %1359 = vmatpush1.msra.mxu0 %v1358
  %1360 = vmatprep.subr.mxu0 0.0
  %v1361 = vand.u32 %v65, 4294901760
  %v1362 = vsub.f32 %v65, %v1361
  %1363 = vmatpush1.msra.mxu0 %v1362
  %1364 = vmatprep.subr.mxu0 0.0
  %v1365 = vand.u32 %v66, 4294901760
  %v1366 = vsub.f32 %v66, %v1365
  %1367 = vmatpush1.msra.mxu0 %v1366
  %1368 = vmatprep.subr.mxu0 0.0
  %v1369 = vand.u32 %v67, 4294901760
  %v1370 = vsub.f32 %v67, %v1369
  %1371 = vmatpush1.msra.mxu0 %v1370
  %1372 = vmatprep.subr.mxu0 0.0
  %v1373 = vand.u32 %v68, 4294901760
  %v1374 = vsub.f32 %v68, %v1373
  %1375 = vmatpush1.msra.mxu0 %v1374
  %1376 = vmatprep.subr.mxu0 0.0
  %v1377 = vand.u32 %v69, 4294901760
  %v1378 = vsub.f32 %v69, %v1377
  %1379 = vmatpush1.msra.mxu0 %v1378
  %1380 = vmatprep.subr.mxu0 0.0
  %v1381 = vand.u32 %v70, 4294901760
  %v1382 = vsub.f32 %v70, %v1381
  %1383 = vmatpush1.msra.mxu0 %v1382
  %1384 = vmatprep.subr.mxu0 0.0
  %v1385 = vand.u32 %v71, 4294901760
  %v1386 = vsub.f32 %v71, %v1385
  %1387 = vmatpush1.msra.mxu0 %v1386
  %1388 = vmatprep.subr.mxu0 0.0
  %v1389 = vand.u32 %v72, 4294901760
  %v1390 = vsub.f32 %v72, %v1389
  %1391 = vmatpush1.msra.mxu0 %v1390
  %1392 = vmatprep.subr.mxu0 0.0
  %v1393 = vand.u32 %v73, 4294901760
  %v1394 = vsub.f32 %v73, %v1393
  %1395 = vmatpush1.msra.mxu0 %v1394
  %1396 = vmatprep.subr.mxu0 0.0
  %v1397 = vand.u32 %v74, 4294901760
  %v1398 = vsub.f32 %v74, %v1397
  %1399 = vmatpush1.msra.mxu0 %v1398
  %1400 = vmatprep.subr.mxu0 0.0
  %v1401 = vand.u32 %v75, 4294901760
  %v1402 = vsub.f32 %v75, %v1401
  %1403 = vmatpush1.msra.mxu0 %v1402
  %1404 = vmatprep.subr.mxu0 0.0
  %v1405 = vand.u32 %v76, 4294901760
  %v1406 = vsub.f32 %v76, %v1405
  %1407 = vmatpush1.msra.mxu0 %v1406
  %1408 = vmatprep.subr.mxu0 0.0
  %v1409 = vand.u32 %v77, 4294901760
  %v1410 = vsub.f32 %v77, %v1409
  %1411 = vmatpush1.msra.mxu0 %v1410
  %1412 = vmatprep.subr.mxu0 0.0
  %v1413 = vand.u32 %v78, 4294901760
  %v1414 = vsub.f32 %v78, %v1413
  %1415 = vmatpush1.msra.mxu0 %v1414
  %1416 = vmatprep.subr.mxu0 0.0
  %v1417 = vand.u32 %v79, 4294901760
  %v1418 = vsub.f32 %v79, %v1417
  %1419 = vmatpush1.msra.mxu0 %v1418
  %1420 = vmatprep.subr.mxu0 0.0
  %v1421 = vand.u32 %v80, 4294901760
  %v1422 = vsub.f32 %v80, %v1421
  %1423 = vmatpush1.msra.mxu0 %v1422
  %1424 = vmatprep.subr.mxu0 0.0
  %v1425 = vand.u32 %v81, 4294901760
  %v1426 = vsub.f32 %v81, %v1425
  %1427 = vmatpush1.msra.mxu0 %v1426
  %1428 = vmatprep.subr.mxu0 0.0
  %v1429 = vand.u32 %v82, 4294901760
  %v1430 = vsub.f32 %v82, %v1429
  %1431 = vmatpush1.msra.mxu0 %v1430
  %1432 = vmatprep.subr.mxu0 0.0
  %v1433 = vand.u32 %v83, 4294901760
  %v1434 = vsub.f32 %v83, %v1433
  %1435 = vmatpush1.msra.mxu0 %v1434
  %1436 = vmatprep.subr.mxu0 0.0
  %v1437 = vand.u32 %v84, 4294901760
  %v1438 = vsub.f32 %v84, %v1437
  %1439 = vmatpush1.msra.mxu0 %v1438
  %v1440 = vand.u32 %v101, 4294901760
  %v1441 = vsub.f32 %v101, %v1440
  %1442 = vmatprep.mubr.f32.mxu0 %v1441
  %v1443 = vand.u32 %v97, 4294901760
  %v1444 = vsub.f32 %v97, %v1443
  %1445 = vmatmul.mubr.f32.gmra.mrb[0].mxu0 %v1444
  %v1446 = vpop.f32.mrb[0].mxu0
  %v1447 = vadd.f32 %v1309, %v1446
  %v1448 = vpop.f32.mrb[0].mxu0
  %1449 = vdwg.mxu0
  %1450 = vmatprep.subr.mxu0 0.0
  %v1451 = vand.u32 %v53, 4294901760
  %1452 = vmatpush1.msra.mxu0 %v1451
  %1453 = vmatprep.subr.mxu0 0.0
  %v1454 = vand.u32 %v54, 4294901760
  %1455 = vmatpush1.msra.mxu0 %v1454
  %1456 = vmatprep.subr.mxu0 0.0
  %v1457 = vand.u32 %v55, 4294901760
  %1458 = vmatpush1.msra.mxu0 %v1457
  %1459 = vmatprep.subr.mxu0 0.0
  %v1460 = vand.u32 %v56, 4294901760
  %1461 = vmatpush1.msra.mxu0 %v1460
  %1462 = vmatprep.subr.mxu0 0.0
  %v1463 = vand.u32 %v57, 4294901760
  %1464 = vmatpush1.msra.mxu0 %v1463
  %1465 = vmatprep.subr.mxu0 0.0
  %v1466 = vand.u32 %v58, 4294901760
  %1467 = vmatpush1.msra.mxu0 %v1466
  %1468 = vmatprep.subr.mxu0 0.0
  %v1469 = vand.u32 %v59, 4294901760
  %1470 = vmatpush1.msra.mxu0 %v1469
  %1471 = vmatprep.subr.mxu0 0.0
  %v1472 = vand.u32 %v60, 4294901760
  %1473 = vmatpush1.msra.mxu0 %v1472
  %1474 = vmatprep.subr.mxu0 0.0
  %v1475 = vand.u32 %v61, 4294901760
  %1476 = vmatpush1.msra.mxu0 %v1475
  %1477 = vmatprep.subr.mxu0 0.0
  %v1478 = vand.u32 %v62, 4294901760
  %1479 = vmatpush1.msra.mxu0 %v1478
  %1480 = vmatprep.subr.mxu0 0.0
  %v1481 = vand.u32 %v63, 4294901760
  %1482 = vmatpush1.msra.mxu0 %v1481
  %1483 = vmatprep.subr.mxu0 0.0
  %v1484 = vand.u32 %v64, 4294901760
  %1485 = vmatpush1.msra.mxu0 %v1484
  %1486 = vmatprep.subr.mxu0 0.0
  %v1487 = vand.u32 %v65, 4294901760
  %1488 = vmatpush1.msra.mxu0 %v1487
  %1489 = vmatprep.subr.mxu0 0.0
  %v1490 = vand.u32 %v66, 4294901760
  %1491 = vmatpush1.msra.mxu0 %v1490
  %1492 = vmatprep.subr.mxu0 0.0
  %v1493 = vand.u32 %v67, 4294901760
  %1494 = vmatpush1.msra.mxu0 %v1493
  %1495 = vmatprep.subr.mxu0 0.0
  %v1496 = vand.u32 %v68, 4294901760
  %1497 = vmatpush1.msra.mxu0 %v1496
  %1498 = vmatprep.subr.mxu0 0.0
  %v1499 = vand.u32 %v69, 4294901760
  %1500 = vmatpush1.msra.mxu0 %v1499
  %1501 = vmatprep.subr.mxu0 0.0
  %v1502 = vand.u32 %v70, 4294901760
  %1503 = vmatpush1.msra.mxu0 %v1502
  %1504 = vmatprep.subr.mxu0 0.0
  %v1505 = vand.u32 %v71, 4294901760
  %1506 = vmatpush1.msra.mxu0 %v1505
  %1507 = vmatprep.subr.mxu0 0.0
  %v1508 = vand.u32 %v72, 4294901760
  %1509 = vmatpush1.msra.mxu0 %v1508
  %1510 = vmatprep.subr.mxu0 0.0
  %v1511 = vand.u32 %v73, 4294901760
  %1512 = vmatpush1.msra.mxu0 %v1511
  %1513 = vmatprep.subr.mxu0 0.0
  %v1514 = vand.u32 %v74, 4294901760
  %1515 = vmatpush1.msra.mxu0 %v1514
  %1516 = vmatprep.subr.mxu0 0.0
  %v1517 = vand.u32 %v75, 4294901760
  %1518 = vmatpush1.msra.mxu0 %v1517
  %1519 = vmatprep.subr.mxu0 0.0
  %v1520 = vand.u32 %v76, 4294901760
  %1521 = vmatpush1.msra.mxu0 %v1520
  %1522 = vmatprep.subr.mxu0 0.0
  %v1523 = vand.u32 %v77, 4294901760
  %1524 = vmatpush1.msra.mxu0 %v1523
  %1525 = vmatprep.subr.mxu0 0.0
  %v1526 = vand.u32 %v78, 4294901760
  %1527 = vmatpush1.msra.mxu0 %v1526
  %1528 = vmatprep.subr.mxu0 0.0
  %v1529 = vand.u32 %v79, 4294901760
  %1530 = vmatpush1.msra.mxu0 %v1529
  %1531 = vmatprep.subr.mxu0 0.0
  %v1532 = vand.u32 %v80, 4294901760
  %1533 = vmatpush1.msra.mxu0 %v1532
  %1534 = vmatprep.subr.mxu0 0.0
  %v1535 = vand.u32 %v81, 4294901760
  %1536 = vmatpush1.msra.mxu0 %v1535
  %1537 = vmatprep.subr.mxu0 0.0
  %v1538 = vand.u32 %v82, 4294901760
  %1539 = vmatpush1.msra.mxu0 %v1538
  %1540 = vmatprep.subr.mxu0 0.0
  %v1541 = vand.u32 %v83, 4294901760
  %1542 = vmatpush1.msra.mxu0 %v1541
  %1543 = vmatprep.subr.mxu0 0.0
  %v1544 = vand.u32 %v84, 4294901760
  %1545 = vmatpush1.msra.mxu0 %v1544
  %v1546 = vand.u32 %v101, 4294901760
  %v1547 = vsub.f32 %v101, %v1546
  %v1548 = vand.u32 %v1547, 4294901760
  %1549 = vmatprep.mubr.f32.mxu0 %v1548
  %v1550 = vand.u32 %v97, 4294901760
  %v1551 = vsub.f32 %v97, %v1550
  %v1552 = vand.u32 %v1551, 4294901760
  %1553 = vmatmul.mubr.f32.gmra.mrb[0].mxu0 %v1552
  %v1554 = vpop.f32.mrb[0].mxu0
  %v1555 = vadd.f32 %v1447, %v1554
  %v1556 = vpop.f32.mrb[0].mxu0
  %1557 = vdwg.mxu0
  %1558 = vmatprep.subr.mxu0 0.0
  %v1559 = vand.u32 %v53, 4294901760
  %v1560 = vsub.f32 %v53, %v1559
  %v1561 = vand.u32 %v1560, 4294901760
  %1562 = vmatpush1.msra.mxu0 %v1561
  %1563 = vmatprep.subr.mxu0 0.0
  %v1564 = vand.u32 %v54, 4294901760
  %v1565 = vsub.f32 %v54, %v1564
  %v1566 = vand.u32 %v1565, 4294901760
  %1567 = vmatpush1.msra.mxu0 %v1566
  %1568 = vmatprep.subr.mxu0 0.0
  %v1569 = vand.u32 %v55, 4294901760
  %v1570 = vsub.f32 %v55, %v1569
  %v1571 = vand.u32 %v1570, 4294901760
  %1572 = vmatpush1.msra.mxu0 %v1571
  %1573 = vmatprep.subr.mxu0 0.0
  %v1574 = vand.u32 %v56, 4294901760
  %v1575 = vsub.f32 %v56, %v1574
  %v1576 = vand.u32 %v1575, 4294901760
  %1577 = vmatpush1.msra.mxu0 %v1576
  %1578 = vmatprep.subr.mxu0 0.0
  %v1579 = vand.u32 %v57, 4294901760
  %v1580 = vsub.f32 %v57, %v1579
  %v1581 = vand.u32 %v1580, 4294901760
  %1582 = vmatpush1.msra.mxu0 %v1581
  %1583 = vmatprep.subr.mxu0 0.0
  %v1584 = vand.u32 %v58, 4294901760
  %v1585 = vsub.f32 %v58, %v1584
  %v1586 = vand.u32 %v1585, 4294901760
  %1587 = vmatpush1.msra.mxu0 %v1586
  %1588 = vmatprep.subr.mxu0 0.0
  %v1589 = vand.u32 %v59, 4294901760
  %v1590 = vsub.f32 %v59, %v1589
  %v1591 = vand.u32 %v1590, 4294901760
  %1592 = vmatpush1.msra.mxu0 %v1591
  %1593 = vmatprep.subr.mxu0 0.0
  %v1594 = vand.u32 %v60, 4294901760
  %v1595 = vsub.f32 %v60, %v1594
  %v1596 = vand.u32 %v1595, 4294901760
  %1597 = vmatpush1.msra.mxu0 %v1596
  %1598 = vmatprep.subr.mxu0 0.0
  %v1599 = vand.u32 %v61, 4294901760
  %v1600 = vsub.f32 %v61, %v1599
  %v1601 = vand.u32 %v1600, 4294901760
  %1602 = vmatpush1.msra.mxu0 %v1601
  %1603 = vmatprep.subr.mxu0 0.0
  %v1604 = vand.u32 %v62, 4294901760
  %v1605 = vsub.f32 %v62, %v1604
  %v1606 = vand.u32 %v1605, 4294901760
  %1607 = vmatpush1.msra.mxu0 %v1606
  %1608 = vmatprep.subr.mxu0 0.0
  %v1609 = vand.u32 %v63, 4294901760
  %v1610 = vsub.f32 %v63, %v1609
  %v1611 = vand.u32 %v1610, 4294901760
  %1612 = vmatpush1.msra.mxu0 %v1611
  %1613 = vmatprep.subr.mxu0 0.0
  %v1614 = vand.u32 %v64, 4294901760
  %v1615 = vsub.f32 %v64, %v1614
  %v1616 = vand.u32 %v1615, 4294901760
  %1617 = vmatpush1.msra.mxu0 %v1616
  %1618 = vmatprep.subr.mxu0 0.0
  %v1619 = vand.u32 %v65, 4294901760
  %v1620 = vsub.f32 %v65, %v1619
  %v1621 = vand.u32 %v1620, 4294901760
  %1622 = vmatpush1.msra.mxu0 %v1621
  %1623 = vmatprep.subr.mxu0 0.0
  %v1624 = vand.u32 %v66, 4294901760
  %v1625 = vsub.f32 %v66, %v1624
  %v1626 = vand.u32 %v1625, 4294901760
  %1627 = vmatpush1.msra.mxu0 %v1626
  %1628 = vmatprep.subr.mxu0 0.0
  %v1629 = vand.u32 %v67, 4294901760
  %v1630 = vsub.f32 %v67, %v1629
  %v1631 = vand.u32 %v1630, 4294901760
  %1632 = vmatpush1.msra.mxu0 %v1631
  %1633 = vmatprep.subr.mxu0 0.0
  %v1634 = vand.u32 %v68, 4294901760
  %v1635 = vsub.f32 %v68, %v1634
  %v1636 = vand.u32 %v1635, 4294901760
  %1637 = vmatpush1.msra.mxu0 %v1636
  %1638 = vmatprep.subr.mxu0 0.0
  %v1639 = vand.u32 %v69, 4294901760
  %v1640 = vsub.f32 %v69, %v1639
  %v1641 = vand.u32 %v1640, 4294901760
  %1642 = vmatpush1.msra.mxu0 %v1641
  %1643 = vmatprep.subr.mxu0 0.0
  %v1644 = vand.u32 %v70, 4294901760
  %v1645 = vsub.f32 %v70, %v1644
  %v1646 = vand.u32 %v1645, 4294901760
  %1647 = vmatpush1.msra.mxu0 %v1646
  %1648 = vmatprep.subr.mxu0 0.0
  %v1649 = vand.u32 %v71, 4294901760
  %v1650 = vsub.f32 %v71, %v1649
  %v1651 = vand.u32 %v1650, 4294901760
  %1652 = vmatpush1.msra.mxu0 %v1651
  %1653 = vmatprep.subr.mxu0 0.0
  %v1654 = vand.u32 %v72, 4294901760
  %v1655 = vsub.f32 %v72, %v1654
  %v1656 = vand.u32 %v1655, 4294901760
  %1657 = vmatpush1.msra.mxu0 %v1656
  %1658 = vmatprep.subr.mxu0 0.0
  %v1659 = vand.u32 %v73, 4294901760
  %v1660 = vsub.f32 %v73, %v1659
  %v1661 = vand.u32 %v1660, 4294901760
  %1662 = vmatpush1.msra.mxu0 %v1661
  %1663 = vmatprep.subr.mxu0 0.0
  %v1664 = vand.u32 %v74, 4294901760
  %v1665 = vsub.f32 %v74, %v1664
  %v1666 = vand.u32 %v1665, 4294901760
  %1667 = vmatpush1.msra.mxu0 %v1666
  %1668 = vmatprep.subr.mxu0 0.0
  %v1669 = vand.u32 %v75, 4294901760
  %v1670 = vsub.f32 %v75, %v1669
  %v1671 = vand.u32 %v1670, 4294901760
  %1672 = vmatpush1.msra.mxu0 %v1671
  %1673 = vmatprep.subr.mxu0 0.0
  %v1674 = vand.u32 %v76, 4294901760
  %v1675 = vsub.f32 %v76, %v1674
  %v1676 = vand.u32 %v1675, 4294901760
  %1677 = vmatpush1.msra.mxu0 %v1676
  %1678 = vmatprep.subr.mxu0 0.0
  %v1679 = vand.u32 %v77, 4294901760
  %v1680 = vsub.f32 %v77, %v1679
  %v1681 = vand.u32 %v1680, 4294901760
  %1682 = vmatpush1.msra.mxu0 %v1681
  %1683 = vmatprep.subr.mxu0 0.0
  %v1684 = vand.u32 %v78, 4294901760
  %v1685 = vsub.f32 %v78, %v1684
  %v1686 = vand.u32 %v1685, 4294901760
  %1687 = vmatpush1.msra.mxu0 %v1686
  %1688 = vmatprep.subr.mxu0 0.0
  %v1689 = vand.u32 %v79, 4294901760
  %v1690 = vsub.f32 %v79, %v1689
  %v1691 = vand.u32 %v1690, 4294901760
  %1692 = vmatpush1.msra.mxu0 %v1691
  %1693 = vmatprep.subr.mxu0 0.0
  %v1694 = vand.u32 %v80, 4294901760
  %v1695 = vsub.f32 %v80, %v1694
  %v1696 = vand.u32 %v1695, 4294901760
  %1697 = vmatpush1.msra.mxu0 %v1696
  %1698 = vmatprep.subr.mxu0 0.0
  %v1699 = vand.u32 %v81, 4294901760
  %v1700 = vsub.f32 %v81, %v1699
  %v1701 = vand.u32 %v1700, 4294901760
  %1702 = vmatpush1.msra.mxu0 %v1701
  %1703 = vmatprep.subr.mxu0 0.0
  %v1704 = vand.u32 %v82, 4294901760
  %v1705 = vsub.f32 %v82, %v1704
  %v1706 = vand.u32 %v1705, 4294901760
  %1707 = vmatpush1.msra.mxu0 %v1706
  %1708 = vmatprep.subr.mxu0 0.0
  %v1709 = vand.u32 %v83, 4294901760
  %v1710 = vsub.f32 %v83, %v1709
  %v1711 = vand.u32 %v1710, 4294901760
  %1712 = vmatpush1.msra.mxu0 %v1711
  %1713 = vmatprep.subr.mxu0 0.0
  %v1714 = vand.u32 %v84, 4294901760
  %v1715 = vsub.f32 %v84, %v1714
  %v1716 = vand.u32 %v1715, 4294901760
  %1717 = vmatpush1.msra.mxu0 %v1716
  %v1718 = vand.u32 %v101, 4294901760
  %1719 = vmatprep.mubr.f32.mxu0 %v1718
  %v1720 = vand.u32 %v97, 4294901760
  %1721 = vmatmul.mubr.f32.gmra.mrb[0].mxu0 %v1720
  %v1722 = vpop.f32.mrb[0].mxu0
  %v1723 = vadd.f32 %v1555, %v1722
  %v1724 = vpop.f32.mrb[0].mxu0
  %1725 = vdwg.mxu0
  %1726 = vmatprep.subr.mxu0 0.0
  %v1727 = vand.u32 %v53, 4294901760
  %1728 = vmatpush1.msra.mxu0 %v1727
  %1729 = vmatprep.subr.mxu0 0.0
  %v1730 = vand.u32 %v54, 4294901760
  %1731 = vmatpush1.msra.mxu0 %v1730
  %1732 = vmatprep.subr.mxu0 0.0
  %v1733 = vand.u32 %v55, 4294901760
  %1734 = vmatpush1.msra.mxu0 %v1733
  %1735 = vmatprep.subr.mxu0 0.0
  %v1736 = vand.u32 %v56, 4294901760
  %1737 = vmatpush1.msra.mxu0 %v1736
  %1738 = vmatprep.subr.mxu0 0.0
  %v1739 = vand.u32 %v57, 4294901760
  %1740 = vmatpush1.msra.mxu0 %v1739
  %1741 = vmatprep.subr.mxu0 0.0
  %v1742 = vand.u32 %v58, 4294901760
  %1743 = vmatpush1.msra.mxu0 %v1742
  %1744 = vmatprep.subr.mxu0 0.0
  %v1745 = vand.u32 %v59, 4294901760
  %1746 = vmatpush1.msra.mxu0 %v1745
  %1747 = vmatprep.subr.mxu0 0.0
  %v1748 = vand.u32 %v60, 4294901760
  %1749 = vmatpush1.msra.mxu0 %v1748
  %1750 = vmatprep.subr.mxu0 0.0
  %v1751 = vand.u32 %v61, 4294901760
  %1752 = vmatpush1.msra.mxu0 %v1751
  %1753 = vmatprep.subr.mxu0 0.0
  %v1754 = vand.u32 %v62, 4294901760
  %1755 = vmatpush1.msra.mxu0 %v1754
  %1756 = vmatprep.subr.mxu0 0.0
  %v1757 = vand.u32 %v63, 4294901760
  %1758 = vmatpush1.msra.mxu0 %v1757
  %1759 = vmatprep.subr.mxu0 0.0
  %v1760 = vand.u32 %v64, 4294901760
  %1761 = vmatpush1.msra.mxu0 %v1760
  %1762 = vmatprep.subr.mxu0 0.0
  %v1763 = vand.u32 %v65, 4294901760
  %1764 = vmatpush1.msra.mxu0 %v1763
  %1765 = vmatprep.subr.mxu0 0.0
  %v1766 = vand.u32 %v66, 4294901760
  %1767 = vmatpush1.msra.mxu0 %v1766
  %1768 = vmatprep.subr.mxu0 0.0
  %v1769 = vand.u32 %v67, 4294901760
  %1770 = vmatpush1.msra.mxu0 %v1769
  %1771 = vmatprep.subr.mxu0 0.0
  %v1772 = vand.u32 %v68, 4294901760
  %1773 = vmatpush1.msra.mxu0 %v1772
  %1774 = vmatprep.subr.mxu0 0.0
  %v1775 = vand.u32 %v69, 4294901760
  %1776 = vmatpush1.msra.mxu0 %v1775
  %1777 = vmatprep.subr.mxu0 0.0
  %v1778 = vand.u32 %v70, 4294901760
  %1779 = vmatpush1.msra.mxu0 %v1778
  %1780 = vmatprep.subr.mxu0 0.0
  %v1781 = vand.u32 %v71, 4294901760
  %1782 = vmatpush1.msra.mxu0 %v1781
  %1783 = vmatprep.subr.mxu0 0.0
  %v1784 = vand.u32 %v72, 4294901760
  %1785 = vmatpush1.msra.mxu0 %v1784
  %1786 = vmatprep.subr.mxu0 0.0
  %v1787 = vand.u32 %v73, 4294901760
  %1788 = vmatpush1.msra.mxu0 %v1787
  %1789 = vmatprep.subr.mxu0 0.0
  %v1790 = vand.u32 %v74, 4294901760
  %1791 = vmatpush1.msra.mxu0 %v1790
  %1792 = vmatprep.subr.mxu0 0.0
  %v1793 = vand.u32 %v75, 4294901760
  %1794 = vmatpush1.msra.mxu0 %v1793
  %1795 = vmatprep.subr.mxu0 0.0
  %v1796 = vand.u32 %v76, 4294901760
  %1797 = vmatpush1.msra.mxu0 %v1796
  %1798 = vmatprep.subr.mxu0 0.0
  %v1799 = vand.u32 %v77, 4294901760
  %1800 = vmatpush1.msra.mxu0 %v1799
  %1801 = vmatprep.subr.mxu0 0.0
  %v1802 = vand.u32 %v78, 4294901760
  %1803 = vmatpush1.msra.mxu0 %v1802
  %1804 = vmatprep.subr.mxu0 0.0
  %v1805 = vand.u32 %v79, 4294901760
  %1806 = vmatpush1.msra.mxu0 %v1805
  %1807 = vmatprep.subr.mxu0 0.0
  %v1808 = vand.u32 %v80, 4294901760
  %1809 = vmatpush1.msra.mxu0 %v1808
  %1810 = vmatprep.subr.mxu0 0.0
  %v1811 = vand.u32 %v81, 4294901760
  %1812 = vmatpush1.msra.mxu0 %v1811
  %1813 = vmatprep.subr.mxu0 0.0
  %v1814 = vand.u32 %v82, 4294901760
  %1815 = vmatpush1.msra.mxu0 %v1814
  %1816 = vmatprep.subr.mxu0 0.0
  %v1817 = vand.u32 %v83, 4294901760
  %1818 = vmatpush1.msra.mxu0 %v1817
  %1819 = vmatprep.subr.mxu0 0.0
  %v1820 = vand.u32 %v84, 4294901760
  %1821 = vmatpush1.msra.mxu0 %v1820
  %v1822 = vand.u32 %v101, 4294901760
  %1823 = vmatprep.mubr.f32.mxu0 %v1822
  %v1824 = vand.u32 %v97, 4294901760
  %1825 = vmatmul.mubr.f32.gmra.mrb[0].mxu0 %v1824
  %v1826 = vpop.f32.mrb[0].mxu0
  %v1827 = vadd.f32 %v1723, %v1826
  %v1828 = vpop.f32.mrb[0].mxu0
  %1829 = vdwg.mxu0
  %v1830 = vmul.f32 %v1827, 0.03125
  %v1831 = vld [vmem:[%s4] sm:$0xff]
  %v1832 = vld [vmem:[%s4 + $0x8] sm:$0xff]
  %v1833 = vld [vmem:[%s4 + $0x10] sm:$0xff]
  %v1834 = vld [vmem:[%s4 + $0x18] sm:$0xff]
  %v1835 = vld [vmem:[%s4 + $0x20] sm:$0xff]
  %v1836 = vld [vmem:[%s4 + $0x28] sm:$0xff]
  %v1837 = vld [vmem:[%s4 + $0x30] sm:$0xff]
  %v1838 = vld [vmem:[%s4 + $0x38] sm:$0xff]
  %vm1839 = vcmask 130048
  %v1841 = vsel %vm1839, %v1830, 0
  %v1843 = vand.u32 %v1832, 4294901760
  %1844 = vmatprep.subr.mxu0 %v1843
  %v1845 = vand.u32 %v1831, 4294901760
  %1846 = vmatpush1.msra.mxu0 %v1845
  %v1847 = vand.u32 %v1836, 4294901760
  %1848 = vmatprep.subr.mxu0 %v1847
  %v1849 = vand.u32 %v1835, 4294901760
  %1850 = vmatpush1.msra.mxu0 %v1849
  %1851 = vmatprep.subr.mxu0 0.0
  %1852 = vmatpush1.msra.mxu0 0.0
  %1853 = vmatprep.subr.mxu0 0.0
  %1854 = vmatpush1.msra.mxu0 0.0
  %1855 = vmatprep.subr.mxu0 0.0
  %1856 = vmatpush1.msra.mxu0 0.0
  %1857 = vmatprep.subr.mxu0 0.0
  %1858 = vmatpush1.msra.mxu0 0.0
  %1859 = vmatprep.subr.mxu0 0.0
  %1860 = vmatpush1.msra.mxu0 0.0
  %1861 = vmatprep.subr.mxu0 0.0
  %1862 = vmatpush1.msra.mxu0 0.0
  %1863 = vmatprep.subr.mxu0 0.0
  %1864 = vmatpush1.msra.mxu0 0.0
  %1865 = vmatprep.subr.mxu0 0.0
  %1866 = vmatpush1.msra.mxu0 0.0
  %1867 = vmatprep.subr.mxu0 0.0
  %1868 = vmatpush1.msra.mxu0 0.0
  %1869 = vmatprep.subr.mxu0 0.0
  %1870 = vmatpush1.msra.mxu0 0.0
  %1871 = vmatprep.subr.mxu0 0.0
  %1872 = vmatpush1.msra.mxu0 0.0
  %1873 = vmatprep.subr.mxu0 0.0
  %1874 = vmatpush1.msra.mxu0 0.0
  %1875 = vmatprep.subr.mxu0 0.0
  %1876 = vmatpush1.msra.mxu0 0.0
  %1877 = vmatprep.subr.mxu0 0.0
  %1878 = vmatpush1.msra.mxu0 0.0
  %1879 = vmatprep.subr.mxu0 0.0
  %1880 = vmatpush1.msra.mxu0 0.0
  %1881 = vmatprep.subr.mxu0 0.0
  %1882 = vmatpush1.msra.mxu0 0.0
  %1883 = vmatprep.subr.mxu0 0.0
  %1884 = vmatpush1.msra.mxu0 0.0
  %1885 = vmatprep.subr.mxu0 0.0
  %1886 = vmatpush1.msra.mxu0 0.0
  %1887 = vmatprep.subr.mxu0 0.0
  %1888 = vmatpush1.msra.mxu0 0.0
  %1889 = vmatprep.subr.mxu0 0.0
  %1890 = vmatpush1.msra.mxu0 0.0
  %1891 = vmatprep.subr.mxu0 0.0
  %1892 = vmatpush1.msra.mxu0 0.0
  %1893 = vmatprep.subr.mxu0 0.0
  %1894 = vmatpush1.msra.mxu0 0.0
  %1895 = vmatprep.subr.mxu0 0.0
  %1896 = vmatpush1.msra.mxu0 0.0
  %1897 = vmatprep.subr.mxu0 0.0
  %1898 = vmatpush1.msra.mxu0 0.0
  %1899 = vmatprep.subr.mxu0 0.0
  %1900 = vmatpush1.msra.mxu0 0.0
  %1901 = vmatprep.subr.mxu0 0.0
  %1902 = vmatpush1.msra.mxu0 0.0
  %1903 = vmatprep.subr.mxu0 0.0
  %1904 = vmatpush1.msra.mxu0 0.0
  %1905 = vmatprep.subr.mxu0 0.0
  %1906 = vmatpush1.msra.mxu0 0.0
  %1907 = vmatprep.subr.mxu0 0.0
  %1908 = vmatpush1.msra.mxu0 0.0
  %1909 = vmatprep.subr.mxu0 0.0
  %1910 = vmatpush1.msra.mxu0 0.0
  %1911 = vmatprep.mubr.f32.mxu0 0.0
  %v1912 = vand.u32 %v1841, 4294901760
  %v1913 = vsub.f32 %v1841, %v1912
  %v1914 = vand.u32 %v1913, 4294901760
  %v1915 = vsub.f32 %v1913, %v1914
  %v1916 = vand.u32 %v1915, 4294901760
  %1917 = vmatmul.mubr.f32.gmra.mrb[0].mxu0 %v1916
  %v1918 = vpop.f32.mrb[0].mxu0
  %v1919 = vadd.f32 0.0, %v1918
  %v1920 = vpop.f32.mrb[0].mxu0
  %v1921 = vadd.f32 0.0, %v1920
  %1922 = vdwg.mxu0
  %v1923 = vand.u32 %v1832, 4294901760
  %v1924 = vsub.f32 %v1832, %v1923
  %v1925 = vand.u32 %v1924, 4294901760
  %v1926 = vsub.f32 %v1924, %v1925
  %v1927 = vand.u32 %v1926, 4294901760
  %1928 = vmatprep.subr.mxu0 %v1927
  %v1929 = vand.u32 %v1831, 4294901760
  %v1930 = vsub.f32 %v1831, %v1929
  %v1931 = vand.u32 %v1930, 4294901760
  %v1932 = vsub.f32 %v1930, %v1931
  %v1933 = vand.u32 %v1932, 4294901760
  %1934 = vmatpush1.msra.mxu0 %v1933
  %v1935 = vand.u32 %v1836, 4294901760
  %v1936 = vsub.f32 %v1836, %v1935
  %v1937 = vand.u32 %v1936, 4294901760
  %v1938 = vsub.f32 %v1936, %v1937
  %v1939 = vand.u32 %v1938, 4294901760
  %1940 = vmatprep.subr.mxu0 %v1939
  %v1941 = vand.u32 %v1835, 4294901760
  %v1942 = vsub.f32 %v1835, %v1941
  %v1943 = vand.u32 %v1942, 4294901760
  %v1944 = vsub.f32 %v1942, %v1943
  %v1945 = vand.u32 %v1944, 4294901760
  %1946 = vmatpush1.msra.mxu0 %v1945
  %1947 = vmatprep.subr.mxu0 0.0
  %1948 = vmatpush1.msra.mxu0 0.0
  %1949 = vmatprep.subr.mxu0 0.0
  %1950 = vmatpush1.msra.mxu0 0.0
  %1951 = vmatprep.subr.mxu0 0.0
  %1952 = vmatpush1.msra.mxu0 0.0
  %1953 = vmatprep.subr.mxu0 0.0
  %1954 = vmatpush1.msra.mxu0 0.0
  %1955 = vmatprep.subr.mxu0 0.0
  %1956 = vmatpush1.msra.mxu0 0.0
  %1957 = vmatprep.subr.mxu0 0.0
  %1958 = vmatpush1.msra.mxu0 0.0
  %1959 = vmatprep.subr.mxu0 0.0
  %1960 = vmatpush1.msra.mxu0 0.0
  %1961 = vmatprep.subr.mxu0 0.0
  %1962 = vmatpush1.msra.mxu0 0.0
  %1963 = vmatprep.subr.mxu0 0.0
  %1964 = vmatpush1.msra.mxu0 0.0
  %1965 = vmatprep.subr.mxu0 0.0
  %1966 = vmatpush1.msra.mxu0 0.0
  %1967 = vmatprep.subr.mxu0 0.0
  %1968 = vmatpush1.msra.mxu0 0.0
  %1969 = vmatprep.subr.mxu0 0.0
  %1970 = vmatpush1.msra.mxu0 0.0
  %1971 = vmatprep.subr.mxu0 0.0
  %1972 = vmatpush1.msra.mxu0 0.0
  %1973 = vmatprep.subr.mxu0 0.0
  %1974 = vmatpush1.msra.mxu0 0.0
  %1975 = vmatprep.subr.mxu0 0.0
  %1976 = vmatpush1.msra.mxu0 0.0
  %1977 = vmatprep.subr.mxu0 0.0
  %1978 = vmatpush1.msra.mxu0 0.0
  %1979 = vmatprep.subr.mxu0 0.0
  %1980 = vmatpush1.msra.mxu0 0.0
  %1981 = vmatprep.subr.mxu0 0.0
  %1982 = vmatpush1.msra.mxu0 0.0
  %1983 = vmatprep.subr.mxu0 0.0
  %1984 = vmatpush1.msra.mxu0 0.0
  %1985 = vmatprep.subr.mxu0 0.0
  %1986 = vmatpush1.msra.mxu0 0.0
  %1987 = vmatprep.subr.mxu0 0.0
  %1988 = vmatpush1.msra.mxu0 0.0
  %1989 = vmatprep.subr.mxu0 0.0
  %1990 = vmatpush1.msra.mxu0 0.0
  %1991 = vmatprep.subr.mxu0 0.0
  %1992 = vmatpush1.msra.mxu0 0.0
  %1993 = vmatprep.subr.mxu0 0.0
  %1994 = vmatpush1.msra.mxu0 0.0
  %1995 = vmatprep.subr.mxu0 0.0
  %1996 = vmatpush1.msra.mxu0 0.0
  %1997 = vmatprep.subr.mxu0 0.0
  %1998 = vmatpush1.msra.mxu0 0.0
  %1999 = vmatprep.subr.mxu0 0.0
  %2000 = vmatpush1.msra.mxu0 0.0
  %2001 = vmatprep.subr.mxu0 0.0
  %2002 = vmatpush1.msra.mxu0 0.0
  %2003 = vmatprep.subr.mxu0 0.0
  %2004 = vmatpush1.msra.mxu0 0.0
  %2005 = vmatprep.subr.mxu0 0.0
  %2006 = vmatpush1.msra.mxu0 0.0
  %2007 = vmatprep.mubr.f32.mxu0 0.0
  %v2008 = vand.u32 %v1841, 4294901760
  %2009 = vmatmul.mubr.f32.gmra.mrb[0].mxu0 %v2008
  %v2010 = vpop.f32.mrb[0].mxu0
  %v2011 = vadd.f32 %v1919, %v2010
  %v2012 = vpop.f32.mrb[0].mxu0
  %v2013 = vadd.f32 %v1921, %v2012
  %2014 = vdwg.mxu0
  %v2015 = vand.u32 %v1832, 4294901760
  %v2016 = vsub.f32 %v1832, %v2015
  %2017 = vmatprep.subr.mxu0 %v2016
  %v2018 = vand.u32 %v1831, 4294901760
  %v2019 = vsub.f32 %v1831, %v2018
  %2020 = vmatpush1.msra.mxu0 %v2019
  %v2021 = vand.u32 %v1836, 4294901760
  %v2022 = vsub.f32 %v1836, %v2021
  %2023 = vmatprep.subr.mxu0 %v2022
  %v2024 = vand.u32 %v1835, 4294901760
  %v2025 = vsub.f32 %v1835, %v2024
  %2026 = vmatpush1.msra.mxu0 %v2025
  %2027 = vmatprep.subr.mxu0 0.0
  %2028 = vmatpush1.msra.mxu0 0.0
  %2029 = vmatprep.subr.mxu0 0.0
  %2030 = vmatpush1.msra.mxu0 0.0
  %2031 = vmatprep.subr.mxu0 0.0
  %2032 = vmatpush1.msra.mxu0 0.0
  %2033 = vmatprep.subr.mxu0 0.0
  %2034 = vmatpush1.msra.mxu0 0.0
  %2035 = vmatprep.subr.mxu0 0.0
  %2036 = vmatpush1.msra.mxu0 0.0
  %2037 = vmatprep.subr.mxu0 0.0
  %2038 = vmatpush1.msra.mxu0 0.0
  %2039 = vmatprep.subr.mxu0 0.0
  %2040 = vmatpush1.msra.mxu0 0.0
  %2041 = vmatprep.subr.mxu0 0.0
  %2042 = vmatpush1.msra.mxu0 0.0
  %2043 = vmatprep.subr.mxu0 0.0
  %2044 = vmatpush1.msra.mxu0 0.0
  %2045 = vmatprep.subr.mxu0 0.0
  %2046 = vmatpush1.msra.mxu0 0.0
  %2047 = vmatprep.subr.mxu0 0.0
  %2048 = vmatpush1.msra.mxu0 0.0
  %2049 = vmatprep.subr.mxu0 0.0
  %2050 = vmatpush1.msra.mxu0 0.0
  %2051 = vmatprep.subr.mxu0 0.0
  %2052 = vmatpush1.msra.mxu0 0.0
  %2053 = vmatprep.subr.mxu0 0.0
  %2054 = vmatpush1.msra.mxu0 0.0
  %2055 = vmatprep.subr.mxu0 0.0
  %2056 = vmatpush1.msra.mxu0 0.0
  %2057 = vmatprep.subr.mxu0 0.0
  %2058 = vmatpush1.msra.mxu0 0.0
  %2059 = vmatprep.subr.mxu0 0.0
  %2060 = vmatpush1.msra.mxu0 0.0
  %2061 = vmatprep.subr.mxu0 0.0
  %2062 = vmatpush1.msra.mxu0 0.0
  %2063 = vmatprep.subr.mxu0 0.0
  %2064 = vmatpush1.msra.mxu0 0.0
  %2065 = vmatprep.subr.mxu0 0.0
  %2066 = vmatpush1.msra.mxu0 0.0
  %2067 = vmatprep.subr.mxu0 0.0
  %2068 = vmatpush1.msra.mxu0 0.0
  %2069 = vmatprep.subr.mxu0 0.0
  %2070 = vmatpush1.msra.mxu0 0.0
  %2071 = vmatprep.subr.mxu0 0.0
  %2072 = vmatpush1.msra.mxu0 0.0
  %2073 = vmatprep.subr.mxu0 0.0
  %2074 = vmatpush1.msra.mxu0 0.0
  %2075 = vmatprep.subr.mxu0 0.0
  %2076 = vmatpush1.msra.mxu0 0.0
  %2077 = vmatprep.subr.mxu0 0.0
  %2078 = vmatpush1.msra.mxu0 0.0
  %2079 = vmatprep.subr.mxu0 0.0
  %2080 = vmatpush1.msra.mxu0 0.0
  %2081 = vmatprep.subr.mxu0 0.0
  %2082 = vmatpush1.msra.mxu0 0.0
  %2083 = vmatprep.subr.mxu0 0.0
  %2084 = vmatpush1.msra.mxu0 0.0
  %2085 = vmatprep.subr.mxu0 0.0
  %2086 = vmatpush1.msra.mxu0 0.0
  %2087 = vmatprep.mubr.f32.mxu0 0.0
  %v2088 = vand.u32 %v1841, 4294901760
  %v2089 = vsub.f32 %v1841, %v2088
  %2090 = vmatmul.mubr.f32.gmra.mrb[0].mxu0 %v2089
  %v2091 = vpop.f32.mrb[0].mxu0
  %v2092 = vadd.f32 %v2011, %v2091
  %v2093 = vpop.f32.mrb[0].mxu0
  %v2094 = vadd.f32 %v2013, %v2093
  %2095 = vdwg.mxu0
  %v2096 = vand.u32 %v1832, 4294901760
  %2097 = vmatprep.subr.mxu0 %v2096
  %v2098 = vand.u32 %v1831, 4294901760
  %2099 = vmatpush1.msra.mxu0 %v2098
  %v2100 = vand.u32 %v1836, 4294901760
  %2101 = vmatprep.subr.mxu0 %v2100
  %v2102 = vand.u32 %v1835, 4294901760
  %2103 = vmatpush1.msra.mxu0 %v2102
  %2104 = vmatprep.subr.mxu0 0.0
  %2105 = vmatpush1.msra.mxu0 0.0
  %2106 = vmatprep.subr.mxu0 0.0
  %2107 = vmatpush1.msra.mxu0 0.0
  %2108 = vmatprep.subr.mxu0 0.0
  %2109 = vmatpush1.msra.mxu0 0.0
  %2110 = vmatprep.subr.mxu0 0.0
  %2111 = vmatpush1.msra.mxu0 0.0
  %2112 = vmatprep.subr.mxu0 0.0
  %2113 = vmatpush1.msra.mxu0 0.0
  %2114 = vmatprep.subr.mxu0 0.0
  %2115 = vmatpush1.msra.mxu0 0.0
  %2116 = vmatprep.subr.mxu0 0.0
  %2117 = vmatpush1.msra.mxu0 0.0
  %2118 = vmatprep.subr.mxu0 0.0
  %2119 = vmatpush1.msra.mxu0 0.0
  %2120 = vmatprep.subr.mxu0 0.0
  %2121 = vmatpush1.msra.mxu0 0.0
  %2122 = vmatprep.subr.mxu0 0.0
  %2123 = vmatpush1.msra.mxu0 0.0
  %2124 = vmatprep.subr.mxu0 0.0
  %2125 = vmatpush1.msra.mxu0 0.0
  %2126 = vmatprep.subr.mxu0 0.0
  %2127 = vmatpush1.msra.mxu0 0.0
  %2128 = vmatprep.subr.mxu0 0.0
  %2129 = vmatpush1.msra.mxu0 0.0
  %2130 = vmatprep.subr.mxu0 0.0
  %2131 = vmatpush1.msra.mxu0 0.0
  %2132 = vmatprep.subr.mxu0 0.0
  %2133 = vmatpush1.msra.mxu0 0.0
  %2134 = vmatprep.subr.mxu0 0.0
  %2135 = vmatpush1.msra.mxu0 0.0
  %2136 = vmatprep.subr.mxu0 0.0
  %2137 = vmatpush1.msra.mxu0 0.0
  %2138 = vmatprep.subr.mxu0 0.0
  %2139 = vmatpush1.msra.mxu0 0.0
  %2140 = vmatprep.subr.mxu0 0.0
  %2141 = vmatpush1.msra.mxu0 0.0
  %2142 = vmatprep.subr.mxu0 0.0
  %2143 = vmatpush1.msra.mxu0 0.0
  %2144 = vmatprep.subr.mxu0 0.0
  %2145 = vmatpush1.msra.mxu0 0.0
  %2146 = vmatprep.subr.mxu0 0.0
  %2147 = vmatpush1.msra.mxu0 0.0
  %2148 = vmatprep.subr.mxu0 0.0
  %2149 = vmatpush1.msra.mxu0 0.0
  %2150 = vmatprep.subr.mxu0 0.0
  %2151 = vmatpush1.msra.mxu0 0.0
  %2152 = vmatprep.subr.mxu0 0.0
  %2153 = vmatpush1.msra.mxu0 0.0
  %2154 = vmatprep.subr.mxu0 0.0
  %2155 = vmatpush1.msra.mxu0 0.0
  %2156 = vmatprep.subr.mxu0 0.0
  %2157 = vmatpush1.msra.mxu0 0.0
  %2158 = vmatprep.subr.mxu0 0.0
  %2159 = vmatpush1.msra.mxu0 0.0
  %2160 = vmatprep.subr.mxu0 0.0
  %2161 = vmatpush1.msra.mxu0 0.0
  %2162 = vmatprep.subr.mxu0 0.0
  %2163 = vmatpush1.msra.mxu0 0.0
  %2164 = vmatprep.mubr.f32.mxu0 0.0
  %v2165 = vand.u32 %v1841, 4294901760
  %v2166 = vsub.f32 %v1841, %v2165
  %v2167 = vand.u32 %v2166, 4294901760
  %2168 = vmatmul.mubr.f32.gmra.mrb[0].mxu0 %v2167
  %v2169 = vpop.f32.mrb[0].mxu0
  %v2170 = vadd.f32 %v2092, %v2169
  %v2171 = vpop.f32.mrb[0].mxu0
  %v2172 = vadd.f32 %v2094, %v2171
  %2173 = vdwg.mxu0
  %v2174 = vand.u32 %v1832, 4294901760
  %v2175 = vsub.f32 %v1832, %v2174
  %v2176 = vand.u32 %v2175, 4294901760
  %2177 = vmatprep.subr.mxu0 %v2176
  %v2178 = vand.u32 %v1831, 4294901760
  %v2179 = vsub.f32 %v1831, %v2178
  %v2180 = vand.u32 %v2179, 4294901760
  %2181 = vmatpush1.msra.mxu0 %v2180
  %v2182 = vand.u32 %v1836, 4294901760
  %v2183 = vsub.f32 %v1836, %v2182
  %v2184 = vand.u32 %v2183, 4294901760
  %2185 = vmatprep.subr.mxu0 %v2184
  %v2186 = vand.u32 %v1835, 4294901760
  %v2187 = vsub.f32 %v1835, %v2186
  %v2188 = vand.u32 %v2187, 4294901760
  %2189 = vmatpush1.msra.mxu0 %v2188
  %2190 = vmatprep.subr.mxu0 0.0
  %2191 = vmatpush1.msra.mxu0 0.0
  %2192 = vmatprep.subr.mxu0 0.0
  %2193 = vmatpush1.msra.mxu0 0.0
  %2194 = vmatprep.subr.mxu0 0.0
  %2195 = vmatpush1.msra.mxu0 0.0
  %2196 = vmatprep.subr.mxu0 0.0
  %2197 = vmatpush1.msra.mxu0 0.0
  %2198 = vmatprep.subr.mxu0 0.0
  %2199 = vmatpush1.msra.mxu0 0.0
  %2200 = vmatprep.subr.mxu0 0.0
  %2201 = vmatpush1.msra.mxu0 0.0
  %2202 = vmatprep.subr.mxu0 0.0
  %2203 = vmatpush1.msra.mxu0 0.0
  %2204 = vmatprep.subr.mxu0 0.0
  %2205 = vmatpush1.msra.mxu0 0.0
  %2206 = vmatprep.subr.mxu0 0.0
  %2207 = vmatpush1.msra.mxu0 0.0
  %2208 = vmatprep.subr.mxu0 0.0
  %2209 = vmatpush1.msra.mxu0 0.0
  %2210 = vmatprep.subr.mxu0 0.0
  %2211 = vmatpush1.msra.mxu0 0.0
  %2212 = vmatprep.subr.mxu0 0.0
  %2213 = vmatpush1.msra.mxu0 0.0
  %2214 = vmatprep.subr.mxu0 0.0
  %2215 = vmatpush1.msra.mxu0 0.0
  %2216 = vmatprep.subr.mxu0 0.0
  %2217 = vmatpush1.msra.mxu0 0.0
  %2218 = vmatprep.subr.mxu0 0.0
  %2219 = vmatpush1.msra.mxu0 0.0
  %2220 = vmatprep.subr.mxu0 0.0
  %2221 = vmatpush1.msra.mxu0 0.0
  %2222 = vmatprep.subr.mxu0 0.0
  %2223 = vmatpush1.msra.mxu0 0.0
  %2224 = vmatprep.subr.mxu0 0.0
  %2225 = vmatpush1.msra.mxu0 0.0
  %2226 = vmatprep.subr.mxu0 0.0
  %2227 = vmatpush1.msra.mxu0 0.0
  %2228 = vmatprep.subr.mxu0 0.0
  %2229 = vmatpush1.msra.mxu0 0.0
  %2230 = vmatprep.subr.mxu0 0.0
  %2231 = vmatpush1.msra.mxu0 0.0
  %2232 = vmatprep.subr.mxu0 0.0
  %2233 = vmatpush1.msra.mxu0 0.0
  %2234 = vmatprep.subr.mxu0 0.0
  %2235 = vmatpush1.msra.mxu0 0.0
  %2236 = vmatprep.subr.mxu0 0.0
  %2237 = vmatpush1.msra.mxu0 0.0
  %2238 = vmatprep.subr.mxu0 0.0
  %2239 = vmatpush1.msra.mxu0 0.0
  %2240 = vmatprep.subr.mxu0 0.0
  %2241 = vmatpush1.msra.mxu0 0.0
  %2242 = vmatprep.subr.mxu0 0.0
  %2243 = vmatpush1.msra.mxu0 0.0
  %2244 = vmatprep.subr.mxu0 0.0
  %2245 = vmatpush1.msra.mxu0 0.0
  %2246 = vmatprep.subr.mxu0 0.0
  %2247 = vmatpush1.msra.mxu0 0.0
  %2248 = vmatprep.subr.mxu0 0.0
  %2249 = vmatpush1.msra.mxu0 0.0
  %2250 = vmatprep.mubr.f32.mxu0 0.0
  %v2251 = vand.u32 %v1841, 4294901760
  %2252 = vmatmul.mubr.f32.gmra.mrb[0].mxu0 %v2251
  %v2253 = vpop.f32.mrb[0].mxu0
  %v2254 = vadd.f32 %v2170, %v2253
  %v2255 = vpop.f32.mrb[0].mxu0
  %v2256 = vadd.f32 %v2172, %v2255
  %2257 = vdwg.mxu0
  %v2258 = vand.u32 %v1832, 4294901760
  %2259 = vmatprep.subr.mxu0 %v2258
  %v2260 = vand.u32 %v1831, 4294901760
  %2261 = vmatpush1.msra.mxu0 %v2260
  %v2262 = vand.u32 %v1836, 4294901760
  %2263 = vmatprep.subr.mxu0 %v2262
  %v2264 = vand.u32 %v1835, 4294901760
  %2265 = vmatpush1.msra.mxu0 %v2264
  %2266 = vmatprep.subr.mxu0 0.0
  %2267 = vmatpush1.msra.mxu0 0.0
  %2268 = vmatprep.subr.mxu0 0.0
  %2269 = vmatpush1.msra.mxu0 0.0
  %2270 = vmatprep.subr.mxu0 0.0
  %2271 = vmatpush1.msra.mxu0 0.0
  %2272 = vmatprep.subr.mxu0 0.0
  %2273 = vmatpush1.msra.mxu0 0.0
  %2274 = vmatprep.subr.mxu0 0.0
  %2275 = vmatpush1.msra.mxu0 0.0
  %2276 = vmatprep.subr.mxu0 0.0
  %2277 = vmatpush1.msra.mxu0 0.0
  %2278 = vmatprep.subr.mxu0 0.0
  %2279 = vmatpush1.msra.mxu0 0.0
  %2280 = vmatprep.subr.mxu0 0.0
  %2281 = vmatpush1.msra.mxu0 0.0
  %2282 = vmatprep.subr.mxu0 0.0
  %2283 = vmatpush1.msra.mxu0 0.0
  %2284 = vmatprep.subr.mxu0 0.0
  %2285 = vmatpush1.msra.mxu0 0.0
  %2286 = vmatprep.subr.mxu0 0.0
  %2287 = vmatpush1.msra.mxu0 0.0
  %2288 = vmatprep.subr.mxu0 0.0
  %2289 = vmatpush1.msra.mxu0 0.0
  %2290 = vmatprep.subr.mxu0 0.0
  %2291 = vmatpush1.msra.mxu0 0.0
  %2292 = vmatprep.subr.mxu0 0.0
  %2293 = vmatpush1.msra.mxu0 0.0
  %2294 = vmatprep.subr.mxu0 0.0
  %2295 = vmatpush1.msra.mxu0 0.0
  %2296 = vmatprep.subr.mxu0 0.0
  %2297 = vmatpush1.msra.mxu0 0.0
  %2298 = vmatprep.subr.mxu0 0.0
  %2299 = vmatpush1.msra.mxu0 0.0
  %2300 = vmatprep.subr.mxu0 0.0
  %2301 = vmatpush1.msra.mxu0 0.0
  %2302 = vmatprep.subr.mxu0 0.0
  %2303 = vmatpush1.msra.mxu0 0.0
  %2304 = vmatprep.subr.mxu0 0.0
  %2305 = vmatpush1.msra.mxu0 0.0
  %2306 = vmatprep.subr.mxu0 0.0
  %2307 = vmatpush1.msra.mxu0 0.0
  %2308 = vmatprep.subr.mxu0 0.0
  %2309 = vmatpush1.msra.mxu0 0.0
  %2310 = vmatprep.subr.mxu0 0.0
  %2311 = vmatpush1.msra.mxu0 0.0
  %2312 = vmatprep.subr.mxu0 0.0
  %2313 = vmatpush1.msra.mxu0 0.0
  %2314 = vmatprep.subr.mxu0 0.0
  %2315 = vmatpush1.msra.mxu0 0.0
  %2316 = vmatprep.subr.mxu0 0.0
  %2317 = vmatpush1.msra.mxu0 0.0
  %2318 = vmatprep.subr.mxu0 0.0
  %2319 = vmatpush1.msra.mxu0 0.0
  %2320 = vmatprep.subr.mxu0 0.0
  %2321 = vmatpush1.msra.mxu0 0.0
  %2322 = vmatprep.subr.mxu0 0.0
  %2323 = vmatpush1.msra.mxu0 0.0
  %2324 = vmatprep.subr.mxu0 0.0
  %2325 = vmatpush1.msra.mxu0 0.0
  %2326 = vmatprep.mubr.f32.mxu0 0.0
  %v2327 = vand.u32 %v1841, 4294901760
  %2328 = vmatmul.mubr.f32.gmra.mrb[0].mxu0 %v2327
  %v2329 = vpop.f32.mrb[0].mxu0
  %v2330 = vadd.f32 %v2254, %v2329
  %v2331 = vpop.f32.mrb[0].mxu0
  %v2332 = vadd.f32 %v2256, %v2331
  %2333 = vdwg.mxu0
  %v2334 = vand.u32 %v1834, 4294901760
  %2335 = vmatprep.subr.mxu0 %v2334
  %v2336 = vand.u32 %v1833, 4294901760
  %2337 = vmatpush1.msra.mxu0 %v2336
  %v2338 = vand.u32 %v1838, 4294901760
  %2339 = vmatprep.subr.mxu0 %v2338
  %v2340 = vand.u32 %v1837, 4294901760
  %2341 = vmatpush1.msra.mxu0 %v2340
  %2342 = vmatprep.subr.mxu0 0.0
  %2343 = vmatpush1.msra.mxu0 0.0
  %2344 = vmatprep.subr.mxu0 0.0
  %2345 = vmatpush1.msra.mxu0 0.0
  %2346 = vmatprep.subr.mxu0 0.0
  %2347 = vmatpush1.msra.mxu0 0.0
  %2348 = vmatprep.subr.mxu0 0.0
  %2349 = vmatpush1.msra.mxu0 0.0
  %2350 = vmatprep.subr.mxu0 0.0
  %2351 = vmatpush1.msra.mxu0 0.0
  %2352 = vmatprep.subr.mxu0 0.0
  %2353 = vmatpush1.msra.mxu0 0.0
  %2354 = vmatprep.subr.mxu0 0.0
  %2355 = vmatpush1.msra.mxu0 0.0
  %2356 = vmatprep.subr.mxu0 0.0
  %2357 = vmatpush1.msra.mxu0 0.0
  %2358 = vmatprep.subr.mxu0 0.0
  %2359 = vmatpush1.msra.mxu0 0.0
  %2360 = vmatprep.subr.mxu0 0.0
  %2361 = vmatpush1.msra.mxu0 0.0
  %2362 = vmatprep.subr.mxu0 0.0
  %2363 = vmatpush1.msra.mxu0 0.0
  %2364 = vmatprep.subr.mxu0 0.0
  %2365 = vmatpush1.msra.mxu0 0.0
  %2366 = vmatprep.subr.mxu0 0.0
  %2367 = vmatpush1.msra.mxu0 0.0
  %2368 = vmatprep.subr.mxu0 0.0
  %2369 = vmatpush1.msra.mxu0 0.0
  %2370 = vmatprep.subr.mxu0 0.0
  %2371 = vmatpush1.msra.mxu0 0.0
  %2372 = vmatprep.subr.mxu0 0.0
  %2373 = vmatpush1.msra.mxu0 0.0
  %2374 = vmatprep.subr.mxu0 0.0
  %2375 = vmatpush1.msra.mxu0 0.0
  %2376 = vmatprep.subr.mxu0 0.0
  %2377 = vmatpush1.msra.mxu0 0.0
  %2378 = vmatprep.subr.mxu0 0.0
  %2379 = vmatpush1.msra.mxu0 0.0
  %2380 = vmatprep.subr.mxu0 0.0
  %2381 = vmatpush1.msra.mxu0 0.0
  %2382 = vmatprep.subr.mxu0 0.0
  %2383 = vmatpush1.msra.mxu0 0.0
  %2384 = vmatprep.subr.mxu0 0.0
  %2385 = vmatpush1.msra.mxu0 0.0
  %2386 = vmatprep.subr.mxu0 0.0
  %2387 = vmatpush1.msra.mxu0 0.0
  %2388 = vmatprep.subr.mxu0 0.0
  %2389 = vmatpush1.msra.mxu0 0.0
  %2390 = vmatprep.subr.mxu0 0.0
  %2391 = vmatpush1.msra.mxu0 0.0
  %2392 = vmatprep.subr.mxu0 0.0
  %2393 = vmatpush1.msra.mxu0 0.0
  %2394 = vmatprep.subr.mxu0 0.0
  %2395 = vmatpush1.msra.mxu0 0.0
  %2396 = vmatprep.subr.mxu0 0.0
  %2397 = vmatpush1.msra.mxu0 0.0
  %2398 = vmatprep.subr.mxu0 0.0
  %2399 = vmatpush1.msra.mxu0 0.0
  %2400 = vmatprep.subr.mxu0 0.0
  %2401 = vmatpush1.msra.mxu0 0.0
  %2402 = vmatprep.mubr.f32.mxu0 0.0
  %v2403 = vand.u32 %v1841, 4294901760
  %v2404 = vsub.f32 %v1841, %v2403
  %v2405 = vand.u32 %v2404, 4294901760
  %v2406 = vsub.f32 %v2404, %v2405
  %v2407 = vand.u32 %v2406, 4294901760
  %2408 = vmatmul.mubr.f32.gmra.mrb[0].mxu0 %v2407
  %v2409 = vpop.f32.mrb[0].mxu0
  %v2410 = vadd.f32 0.0, %v2409
  %v2411 = vpop.f32.mrb[0].mxu0
  %v2412 = vadd.f32 0.0, %v2411
  %2413 = vdwg.mxu0
  %v2414 = vand.u32 %v1834, 4294901760
  %v2415 = vsub.f32 %v1834, %v2414
  %v2416 = vand.u32 %v2415, 4294901760
  %v2417 = vsub.f32 %v2415, %v2416
  %v2418 = vand.u32 %v2417, 4294901760
  %2419 = vmatprep.subr.mxu0 %v2418
  %v2420 = vand.u32 %v1833, 4294901760
  %v2421 = vsub.f32 %v1833, %v2420
  %v2422 = vand.u32 %v2421, 4294901760
  %v2423 = vsub.f32 %v2421, %v2422
  %v2424 = vand.u32 %v2423, 4294901760
  %2425 = vmatpush1.msra.mxu0 %v2424
  %v2426 = vand.u32 %v1838, 4294901760
  %v2427 = vsub.f32 %v1838, %v2426
  %v2428 = vand.u32 %v2427, 4294901760
  %v2429 = vsub.f32 %v2427, %v2428
  %v2430 = vand.u32 %v2429, 4294901760
  %2431 = vmatprep.subr.mxu0 %v2430
  %v2432 = vand.u32 %v1837, 4294901760
  %v2433 = vsub.f32 %v1837, %v2432
  %v2434 = vand.u32 %v2433, 4294901760
  %v2435 = vsub.f32 %v2433, %v2434
  %v2436 = vand.u32 %v2435, 4294901760
  %2437 = vmatpush1.msra.mxu0 %v2436
  %2438 = vmatprep.subr.mxu0 0.0
  %2439 = vmatpush1.msra.mxu0 0.0
  %2440 = vmatprep.subr.mxu0 0.0
  %2441 = vmatpush1.msra.mxu0 0.0
  %2442 = vmatprep.subr.mxu0 0.0
  %2443 = vmatpush1.msra.mxu0 0.0
  %2444 = vmatprep.subr.mxu0 0.0
  %2445 = vmatpush1.msra.mxu0 0.0
  %2446 = vmatprep.subr.mxu0 0.0
  %2447 = vmatpush1.msra.mxu0 0.0
  %2448 = vmatprep.subr.mxu0 0.0
  %2449 = vmatpush1.msra.mxu0 0.0
  %2450 = vmatprep.subr.mxu0 0.0
  %2451 = vmatpush1.msra.mxu0 0.0
  %2452 = vmatprep.subr.mxu0 0.0
  %2453 = vmatpush1.msra.mxu0 0.0
  %2454 = vmatprep.subr.mxu0 0.0
  %2455 = vmatpush1.msra.mxu0 0.0
  %2456 = vmatprep.subr.mxu0 0.0
  %2457 = vmatpush1.msra.mxu0 0.0
  %2458 = vmatprep.subr.mxu0 0.0
  %2459 = vmatpush1.msra.mxu0 0.0
  %2460 = vmatprep.subr.mxu0 0.0
  %2461 = vmatpush1.msra.mxu0 0.0
  %2462 = vmatprep.subr.mxu0 0.0
  %2463 = vmatpush1.msra.mxu0 0.0
  %2464 = vmatprep.subr.mxu0 0.0
  %2465 = vmatpush1.msra.mxu0 0.0
  %2466 = vmatprep.subr.mxu0 0.0
  %2467 = vmatpush1.msra.mxu0 0.0
  %2468 = vmatprep.subr.mxu0 0.0
  %2469 = vmatpush1.msra.mxu0 0.0
  %2470 = vmatprep.subr.mxu0 0.0
  %2471 = vmatpush1.msra.mxu0 0.0
  %2472 = vmatprep.subr.mxu0 0.0
  %2473 = vmatpush1.msra.mxu0 0.0
  %2474 = vmatprep.subr.mxu0 0.0
  %2475 = vmatpush1.msra.mxu0 0.0
  %2476 = vmatprep.subr.mxu0 0.0
  %2477 = vmatpush1.msra.mxu0 0.0
  %2478 = vmatprep.subr.mxu0 0.0
  %2479 = vmatpush1.msra.mxu0 0.0
  %2480 = vmatprep.subr.mxu0 0.0
  %2481 = vmatpush1.msra.mxu0 0.0
  %2482 = vmatprep.subr.mxu0 0.0
  %2483 = vmatpush1.msra.mxu0 0.0
  %2484 = vmatprep.subr.mxu0 0.0
  %2485 = vmatpush1.msra.mxu0 0.0
  %2486 = vmatprep.subr.mxu0 0.0
  %2487 = vmatpush1.msra.mxu0 0.0
  %2488 = vmatprep.subr.mxu0 0.0
  %2489 = vmatpush1.msra.mxu0 0.0
  %2490 = vmatprep.subr.mxu0 0.0
  %2491 = vmatpush1.msra.mxu0 0.0
  %2492 = vmatprep.subr.mxu0 0.0
  %2493 = vmatpush1.msra.mxu0 0.0
  %2494 = vmatprep.subr.mxu0 0.0
  %2495 = vmatpush1.msra.mxu0 0.0
  %2496 = vmatprep.subr.mxu0 0.0
  %2497 = vmatpush1.msra.mxu0 0.0
  %2498 = vmatprep.mubr.f32.mxu0 0.0
  %v2499 = vand.u32 %v1841, 4294901760
  %2500 = vmatmul.mubr.f32.gmra.mrb[0].mxu0 %v2499
  %v2501 = vpop.f32.mrb[0].mxu0
  %v2502 = vadd.f32 %v2410, %v2501
  %v2503 = vpop.f32.mrb[0].mxu0
  %v2504 = vadd.f32 %v2412, %v2503
  %2505 = vdwg.mxu0
  %v2506 = vand.u32 %v1834, 4294901760
  %v2507 = vsub.f32 %v1834, %v2506
  %2508 = vmatprep.subr.mxu0 %v2507
  %v2509 = vand.u32 %v1833, 4294901760
  %v2510 = vsub.f32 %v1833, %v2509
  %2511 = vmatpush1.msra.mxu0 %v2510
  %v2512 = vand.u32 %v1838, 4294901760
  %v2513 = vsub.f32 %v1838, %v2512
  %2514 = vmatprep.subr.mxu0 %v2513
  %v2515 = vand.u32 %v1837, 4294901760
  %v2516 = vsub.f32 %v1837, %v2515
  %2517 = vmatpush1.msra.mxu0 %v2516
  %2518 = vmatprep.subr.mxu0 0.0
  %2519 = vmatpush1.msra.mxu0 0.0
  %2520 = vmatprep.subr.mxu0 0.0
  %2521 = vmatpush1.msra.mxu0 0.0
  %2522 = vmatprep.subr.mxu0 0.0
  %2523 = vmatpush1.msra.mxu0 0.0
  %2524 = vmatprep.subr.mxu0 0.0
  %2525 = vmatpush1.msra.mxu0 0.0
  %2526 = vmatprep.subr.mxu0 0.0
  %2527 = vmatpush1.msra.mxu0 0.0
  %2528 = vmatprep.subr.mxu0 0.0
  %2529 = vmatpush1.msra.mxu0 0.0
  %2530 = vmatprep.subr.mxu0 0.0
  %2531 = vmatpush1.msra.mxu0 0.0
  %2532 = vmatprep.subr.mxu0 0.0
  %2533 = vmatpush1.msra.mxu0 0.0
  %2534 = vmatprep.subr.mxu0 0.0
  %2535 = vmatpush1.msra.mxu0 0.0
  %2536 = vmatprep.subr.mxu0 0.0
  %2537 = vmatpush1.msra.mxu0 0.0
  %2538 = vmatprep.subr.mxu0 0.0
  %2539 = vmatpush1.msra.mxu0 0.0
  %2540 = vmatprep.subr.mxu0 0.0
  %2541 = vmatpush1.msra.mxu0 0.0
  %2542 = vmatprep.subr.mxu0 0.0
  %2543 = vmatpush1.msra.mxu0 0.0
  %2544 = vmatprep.subr.mxu0 0.0
  %2545 = vmatpush1.msra.mxu0 0.0
  %2546 = vmatprep.subr.mxu0 0.0
  %2547 = vmatpush1.msra.mxu0 0.0
  %2548 = vmatprep.subr.mxu0 0.0
  %2549 = vmatpush1.msra.mxu0 0.0
  %2550 = vmatprep.subr.mxu0 0.0
  %2551 = vmatpush1.msra.mxu0 0.0
  %2552 = vmatprep.subr.mxu0 0.0
  %2553 = vmatpush1.msra.mxu0 0.0
  %2554 = vmatprep.subr.mxu0 0.0
  %2555 = vmatpush1.msra.mxu0 0.0
  %2556 = vmatprep.subr.mxu0 0.0
  %2557 = vmatpush1.msra.mxu0 0.0
  %2558 = vmatprep.subr.mxu0 0.0
  %2559 = vmatpush1.msra.mxu0 0.0
  %2560 = vmatprep.subr.mxu0 0.0
  %2561 = vmatpush1.msra.mxu0 0.0
  %2562 = vmatprep.subr.mxu0 0.0
  %2563 = vmatpush1.msra.mxu0 0.0
  %2564 = vmatprep.subr.mxu0 0.0
  %2565 = vmatpush1.msra.mxu0 0.0
  %2566 = vmatprep.subr.mxu0 0.0
  %2567 = vmatpush1.msra.mxu0 0.0
  %2568 = vmatprep.subr.mxu0 0.0
  %2569 = vmatpush1.msra.mxu0 0.0
  %2570 = vmatprep.subr.mxu0 0.0
  %2571 = vmatpush1.msra.mxu0 0.0
  %2572 = vmatprep.subr.mxu0 0.0
  %2573 = vmatpush1.msra.mxu0 0.0
  %2574 = vmatprep.subr.mxu0 0.0
  %2575 = vmatpush1.msra.mxu0 0.0
  %2576 = vmatprep.subr.mxu0 0.0
  %2577 = vmatpush1.msra.mxu0 0.0
  %2578 = vmatprep.mubr.f32.mxu0 0.0
  %v2579 = vand.u32 %v1841, 4294901760
  %v2580 = vsub.f32 %v1841, %v2579
  %2581 = vmatmul.mubr.f32.gmra.mrb[0].mxu0 %v2580
  %v2582 = vpop.f32.mrb[0].mxu0
  %v2583 = vadd.f32 %v2502, %v2582
  %v2584 = vpop.f32.mrb[0].mxu0
  %v2585 = vadd.f32 %v2504, %v2584
  %2586 = vdwg.mxu0
  %v2587 = vand.u32 %v1834, 4294901760
  %2588 = vmatprep.subr.mxu0 %v2587
  %v2589 = vand.u32 %v1833, 4294901760
  %2590 = vmatpush1.msra.mxu0 %v2589
  %v2591 = vand.u32 %v1838, 4294901760
  %2592 = vmatprep.subr.mxu0 %v2591
  %v2593 = vand.u32 %v1837, 4294901760
  %2594 = vmatpush1.msra.mxu0 %v2593
  %2595 = vmatprep.subr.mxu0 0.0
  %2596 = vmatpush1.msra.mxu0 0.0
  %2597 = vmatprep.subr.mxu0 0.0
  %2598 = vmatpush1.msra.mxu0 0.0
  %2599 = vmatprep.subr.mxu0 0.0
  %2600 = vmatpush1.msra.mxu0 0.0
  %2601 = vmatprep.subr.mxu0 0.0
  %2602 = vmatpush1.msra.mxu0 0.0
  %2603 = vmatprep.subr.mxu0 0.0
  %2604 = vmatpush1.msra.mxu0 0.0
  %2605 = vmatprep.subr.mxu0 0.0
  %2606 = vmatpush1.msra.mxu0 0.0
  %2607 = vmatprep.subr.mxu0 0.0
  %2608 = vmatpush1.msra.mxu0 0.0
  %2609 = vmatprep.subr.mxu0 0.0
  %2610 = vmatpush1.msra.mxu0 0.0
  %2611 = vmatprep.subr.mxu0 0.0
  %2612 = vmatpush1.msra.mxu0 0.0
  %2613 = vmatprep.subr.mxu0 0.0
  %2614 = vmatpush1.msra.mxu0 0.0
  %2615 = vmatprep.subr.mxu0 0.0
  %2616 = vmatpush1.msra.mxu0 0.0
  %2617 = vmatprep.subr.mxu0 0.0
  %2618 = vmatpush1.msra.mxu0 0.0
  %2619 = vmatprep.subr.mxu0 0.0
  %2620 = vmatpush1.msra.mxu0 0.0
  %2621 = vmatprep.subr.mxu0 0.0
  %2622 = vmatpush1.msra.mxu0 0.0
  %2623 = vmatprep.subr.mxu0 0.0
  %2624 = vmatpush1.msra.mxu0 0.0
  %2625 = vmatprep.subr.mxu0 0.0
  %2626 = vmatpush1.msra.mxu0 0.0
  %2627 = vmatprep.subr.mxu0 0.0
  %2628 = vmatpush1.msra.mxu0 0.0
  %2629 = vmatprep.subr.mxu0 0.0
  %2630 = vmatpush1.msra.mxu0 0.0
  %2631 = vmatprep.subr.mxu0 0.0
  %2632 = vmatpush1.msra.mxu0 0.0
  %2633 = vmatprep.subr.mxu0 0.0
  %2634 = vmatpush1.msra.mxu0 0.0
  %2635 = vmatprep.subr.mxu0 0.0
  %2636 = vmatpush1.msra.mxu0 0.0
  %2637 = vmatprep.subr.mxu0 0.0
  %2638 = vmatpush1.msra.mxu0 0.0
  %2639 = vmatprep.subr.mxu0 0.0
  %2640 = vmatpush1.msra.mxu0 0.0
  %2641 = vmatprep.subr.mxu0 0.0
  %2642 = vmatpush1.msra.mxu0 0.0
  %2643 = vmatprep.subr.mxu0 0.0
  %2644 = vmatpush1.msra.mxu0 0.0
  %2645 = vmatprep.subr.mxu0 0.0
  %2646 = vmatpush1.msra.mxu0 0.0
  %2647 = vmatprep.subr.mxu0 0.0
  %2648 = vmatpush1.msra.mxu0 0.0
  %2649 = vmatprep.subr.mxu0 0.0
  %2650 = vmatpush1.msra.mxu0 0.0
  %2651 = vmatprep.subr.mxu0 0.0
  %2652 = vmatpush1.msra.mxu0 0.0
  %2653 = vmatprep.subr.mxu0 0.0
  %2654 = vmatpush1.msra.mxu0 0.0
  %2655 = vmatprep.mubr.f32.mxu0 0.0
  %v2656 = vand.u32 %v1841, 4294901760
  %v2657 = vsub.f32 %v1841, %v2656
  %v2658 = vand.u32 %v2657, 4294901760
  %2659 = vmatmul.mubr.f32.gmra.mrb[0].mxu0 %v2658
  %v2660 = vpop.f32.mrb[0].mxu0
  %v2661 = vadd.f32 %v2583, %v2660
  %v2662 = vpop.f32.mrb[0].mxu0
  %v2663 = vadd.f32 %v2585, %v2662
  %2664 = vdwg.mxu0
  %v2665 = vand.u32 %v1834, 4294901760
  %v2666 = vsub.f32 %v1834, %v2665
  %v2667 = vand.u32 %v2666, 4294901760
  %2668 = vmatprep.subr.mxu0 %v2667
  %v2669 = vand.u32 %v1833, 4294901760
  %v2670 = vsub.f32 %v1833, %v2669
  %v2671 = vand.u32 %v2670, 4294901760
  %2672 = vmatpush1.msra.mxu0 %v2671
  %v2673 = vand.u32 %v1838, 4294901760
  %v2674 = vsub.f32 %v1838, %v2673
  %v2675 = vand.u32 %v2674, 4294901760
  %2676 = vmatprep.subr.mxu0 %v2675
  %v2677 = vand.u32 %v1837, 4294901760
  %v2678 = vsub.f32 %v1837, %v2677
  %v2679 = vand.u32 %v2678, 4294901760
  %2680 = vmatpush1.msra.mxu0 %v2679
  %2681 = vmatprep.subr.mxu0 0.0
  %2682 = vmatpush1.msra.mxu0 0.0
  %2683 = vmatprep.subr.mxu0 0.0
  %2684 = vmatpush1.msra.mxu0 0.0
  %2685 = vmatprep.subr.mxu0 0.0
  %2686 = vmatpush1.msra.mxu0 0.0
  %2687 = vmatprep.subr.mxu0 0.0
  %2688 = vmatpush1.msra.mxu0 0.0
  %2689 = vmatprep.subr.mxu0 0.0
  %2690 = vmatpush1.msra.mxu0 0.0
  %2691 = vmatprep.subr.mxu0 0.0
  %2692 = vmatpush1.msra.mxu0 0.0
  %2693 = vmatprep.subr.mxu0 0.0
  %2694 = vmatpush1.msra.mxu0 0.0
  %2695 = vmatprep.subr.mxu0 0.0
  %2696 = vmatpush1.msra.mxu0 0.0
  %2697 = vmatprep.subr.mxu0 0.0
  %2698 = vmatpush1.msra.mxu0 0.0
  %2699 = vmatprep.subr.mxu0 0.0
  %2700 = vmatpush1.msra.mxu0 0.0
  %2701 = vmatprep.subr.mxu0 0.0
  %2702 = vmatpush1.msra.mxu0 0.0
  %2703 = vmatprep.subr.mxu0 0.0
  %2704 = vmatpush1.msra.mxu0 0.0
  %2705 = vmatprep.subr.mxu0 0.0
  %2706 = vmatpush1.msra.mxu0 0.0
  %2707 = vmatprep.subr.mxu0 0.0
  %2708 = vmatpush1.msra.mxu0 0.0
  %2709 = vmatprep.subr.mxu0 0.0
  %2710 = vmatpush1.msra.mxu0 0.0
  %2711 = vmatprep.subr.mxu0 0.0
  %2712 = vmatpush1.msra.mxu0 0.0
  %2713 = vmatprep.subr.mxu0 0.0
  %2714 = vmatpush1.msra.mxu0 0.0
  %2715 = vmatprep.subr.mxu0 0.0
  %2716 = vmatpush1.msra.mxu0 0.0
  %2717 = vmatprep.subr.mxu0 0.0
  %2718 = vmatpush1.msra.mxu0 0.0
  %2719 = vmatprep.subr.mxu0 0.0
  %2720 = vmatpush1.msra.mxu0 0.0
  %2721 = vmatprep.subr.mxu0 0.0
  %2722 = vmatpush1.msra.mxu0 0.0
  %2723 = vmatprep.subr.mxu0 0.0
  %2724 = vmatpush1.msra.mxu0 0.0
  %2725 = vmatprep.subr.mxu0 0.0
  %2726 = vmatpush1.msra.mxu0 0.0
  %2727 = vmatprep.subr.mxu0 0.0
  %2728 = vmatpush1.msra.mxu0 0.0
  %2729 = vmatprep.subr.mxu0 0.0
  %2730 = vmatpush1.msra.mxu0 0.0
  %2731 = vmatprep.subr.mxu0 0.0
  %2732 = vmatpush1.msra.mxu0 0.0
  %2733 = vmatprep.subr.mxu0 0.0
  %2734 = vmatpush1.msra.mxu0 0.0
  %2735 = vmatprep.subr.mxu0 0.0
  %2736 = vmatpush1.msra.mxu0 0.0
  %2737 = vmatprep.subr.mxu0 0.0
  %2738 = vmatpush1.msra.mxu0 0.0
  %2739 = vmatprep.subr.mxu0 0.0
  %2740 = vmatpush1.msra.mxu0 0.0
  %2741 = vmatprep.mubr.f32.mxu0 0.0
  %v2742 = vand.u32 %v1841, 4294901760
  %2743 = vmatmul.mubr.f32.gmra.mrb[0].mxu0 %v2742
  %v2744 = vpop.f32.mrb[0].mxu0
  %v2745 = vadd.f32 %v2661, %v2744
  %v2746 = vpop.f32.mrb[0].mxu0
  %v2747 = vadd.f32 %v2663, %v2746
  %2748 = vdwg.mxu0
  %v2749 = vand.u32 %v1834, 4294901760
  %2750 = vmatprep.subr.mxu0 %v2749
  %v2751 = vand.u32 %v1833, 4294901760
  %2752 = vmatpush1.msra.mxu0 %v2751
  %v2753 = vand.u32 %v1838, 4294901760
  %2754 = vmatprep.subr.mxu0 %v2753
  %v2755 = vand.u32 %v1837, 4294901760
  %2756 = vmatpush1.msra.mxu0 %v2755
  %2757 = vmatprep.subr.mxu0 0.0
  %2758 = vmatpush1.msra.mxu0 0.0
  %2759 = vmatprep.subr.mxu0 0.0
  %2760 = vmatpush1.msra.mxu0 0.0
  %2761 = vmatprep.subr.mxu0 0.0
  %2762 = vmatpush1.msra.mxu0 0.0
  %2763 = vmatprep.subr.mxu0 0.0
  %2764 = vmatpush1.msra.mxu0 0.0
  %2765 = vmatprep.subr.mxu0 0.0
  %2766 = vmatpush1.msra.mxu0 0.0
  %2767 = vmatprep.subr.mxu0 0.0
  %2768 = vmatpush1.msra.mxu0 0.0
  %2769 = vmatprep.subr.mxu0 0.0
  %2770 = vmatpush1.msra.mxu0 0.0
  %2771 = vmatprep.subr.mxu0 0.0
  %2772 = vmatpush1.msra.mxu0 0.0
  %2773 = vmatprep.subr.mxu0 0.0
  %2774 = vmatpush1.msra.mxu0 0.0
  %2775 = vmatprep.subr.mxu0 0.0
  %2776 = vmatpush1.msra.mxu0 0.0
  %2777 = vmatprep.subr.mxu0 0.0
  %2778 = vmatpush1.msra.mxu0 0.0
  %2779 = vmatprep.subr.mxu0 0.0
  %2780 = vmatpush1.msra.mxu0 0.0
  %2781 = vmatprep.subr.mxu0 0.0
  %2782 = vmatpush1.msra.mxu0 0.0
  %2783 = vmatprep.subr.mxu0 0.0
  %2784 = vmatpush1.msra.mxu0 0.0
  %2785 = vmatprep.subr.mxu0 0.0
  %2786 = vmatpush1.msra.mxu0 0.0
  %2787 = vmatprep.subr.mxu0 0.0
  %2788 = vmatpush1.msra.mxu0 0.0
  %2789 = vmatprep.subr.mxu0 0.0
  %2790 = vmatpush1.msra.mxu0 0.0
  %2791 = vmatprep.subr.mxu0 0.0
  %2792 = vmatpush1.msra.mxu0 0.0
  %2793 = vmatprep.subr.mxu0 0.0
  %2794 = vmatpush1.msra.mxu0 0.0
  %2795 = vmatprep.subr.mxu0 0.0
  %2796 = vmatpush1.msra.mxu0 0.0
  %2797 = vmatprep.subr.mxu0 0.0
  %2798 = vmatpush1.msra.mxu0 0.0
  %2799 = vmatprep.subr.mxu0 0.0
  %2800 = vmatpush1.msra.mxu0 0.0
  %2801 = vmatprep.subr.mxu0 0.0
  %2802 = vmatpush1.msra.mxu0 0.0
  %2803 = vmatprep.subr.mxu0 0.0
  %2804 = vmatpush1.msra.mxu0 0.0
  %2805 = vmatprep.subr.mxu0 0.0
  %2806 = vmatpush1.msra.mxu0 0.0
  %2807 = vmatprep.subr.mxu0 0.0
  %2808 = vmatpush1.msra.mxu0 0.0
  %2809 = vmatprep.subr.mxu0 0.0
  %2810 = vmatpush1.msra.mxu0 0.0
  %2811 = vmatprep.subr.mxu0 0.0
  %2812 = vmatpush1.msra.mxu0 0.0
  %2813 = vmatprep.subr.mxu0 0.0
  %2814 = vmatpush1.msra.mxu0 0.0
  %2815 = vmatprep.subr.mxu0 0.0
  %2816 = vmatpush1.msra.mxu0 0.0
  %2817 = vmatprep.mubr.f32.mxu0 0.0
  %v2818 = vand.u32 %v1841, 4294901760
  %2819 = vmatmul.mubr.f32.gmra.mrb[0].mxu0 %v2818
  %v2820 = vpop.f32.mrb[0].mxu0
  %v2821 = vadd.f32 %v2745, %v2820
  %v2822 = vpop.f32.mrb[0].mxu0
  %v2823 = vadd.f32 %v2747, %v2822
  %2824 = vdwg.mxu0
  %v2829 = vcombine.low %v2330, %v2332
  %v2830 = vcombine.low %v2821, %v2823
  %v2832 = vunpack.c.l.s4 1966171168
  %v2833 = vunpack.c.0.s8 %v2832
  %v2834 = vlaneseq
  %v2835 = vshrl.u32 %v2834, 7
  %v2836 = vsub.s32 %v2833, %v2835
  %v2837 = vrot.slane %v2829, %v2836
  %v2839 = vunpack.c.l.s4 1966171168
  %v2840 = vunpack.c.0.s8 %v2839
  %v2841 = vlaneseq
  %v2842 = vshrl.u32 %v2841, 7
  %v2843 = vsub.s32 %v2840, %v2842
  %v2844 = vrot.slane %v2830, %v2843
  %v2845 = vcombine.low %v2837, %v2844
  %v2847 = vunpack.c.l.s4 1966171168
  %v2848 = vunpack.c.0.s8 %v2847
  %v2849 = vlaneseq
  %v2850 = vshrl.u32 %v2849, 7
  %v2851 = vsub.s32 %v2848, %v2850
  %v2852 = vrot.slane %v2845, %v2851
  %v2854 = vsub.f32 %v20, %v2852
  %v2855 = vmul.f32 %v2854, %v2854
  %v2857 = vlaneseq
  %v2858 = vshrl.u32 %v2857, 7
  %v2859 = vsub.s32 0, %v2858
  %v2860 = vrot.slane %v2855, %v2859
  %v2861 = vlaneseq
  %v2862 = vshrl.u32 %v2861, 7
  %v2863 = vsub.s32 1, %v2862
  %v2864 = vrot.slane %v2855, %v2863
  %v2865 = vlaneseq
  %v2866 = vshrl.u32 %v2865, 7
  %v2867 = vsub.s32 2, %v2866
  %v2868 = vrot.slane %v2855, %v2867
  %v2869 = vlaneseq
  %v2870 = vshrl.u32 %v2869, 7
  %v2871 = vsub.s32 3, %v2870
  %v2872 = vrot.slane %v2855, %v2871
  %2877 = vmatprep.subr.mxu0 0.0
  %v2878 = vand.u32 %v21, 4294901760
  %2879 = vmatpush1.msra.mxu0 %v2878
  %2880 = vmatprep.subr.mxu0 0.0
  %v2881 = vand.u32 %v22, 4294901760
  %2882 = vmatpush1.msra.mxu0 %v2881
  %2883 = vmatprep.subr.mxu0 0.0
  %v2884 = vand.u32 %v23, 4294901760
  %2885 = vmatpush1.msra.mxu0 %v2884
  %2886 = vmatprep.subr.mxu0 0.0
  %v2887 = vand.u32 %v24, 4294901760
  %2888 = vmatpush1.msra.mxu0 %v2887
  %2889 = vmatprep.subr.mxu0 0.0
  %v2890 = vand.u32 %v25, 4294901760
  %2891 = vmatpush1.msra.mxu0 %v2890
  %2892 = vmatprep.subr.mxu0 0.0
  %v2893 = vand.u32 %v26, 4294901760
  %2894 = vmatpush1.msra.mxu0 %v2893
  %2895 = vmatprep.subr.mxu0 0.0
  %v2896 = vand.u32 %v27, 4294901760
  %2897 = vmatpush1.msra.mxu0 %v2896
  %2898 = vmatprep.subr.mxu0 0.0
  %v2899 = vand.u32 %v28, 4294901760
  %2900 = vmatpush1.msra.mxu0 %v2899
  %2901 = vmatprep.subr.mxu0 0.0
  %v2902 = vand.u32 %v29, 4294901760
  %2903 = vmatpush1.msra.mxu0 %v2902
  %2904 = vmatprep.subr.mxu0 0.0
  %v2905 = vand.u32 %v30, 4294901760
  %2906 = vmatpush1.msra.mxu0 %v2905
  %2907 = vmatprep.subr.mxu0 0.0
  %v2908 = vand.u32 %v31, 4294901760
  %2909 = vmatpush1.msra.mxu0 %v2908
  %2910 = vmatprep.subr.mxu0 0.0
  %v2911 = vand.u32 %v32, 4294901760
  %2912 = vmatpush1.msra.mxu0 %v2911
  %2913 = vmatprep.subr.mxu0 0.0
  %v2914 = vand.u32 %v33, 4294901760
  %2915 = vmatpush1.msra.mxu0 %v2914
  %2916 = vmatprep.subr.mxu0 0.0
  %v2917 = vand.u32 %v34, 4294901760
  %2918 = vmatpush1.msra.mxu0 %v2917
  %2919 = vmatprep.subr.mxu0 0.0
  %v2920 = vand.u32 %v35, 4294901760
  %2921 = vmatpush1.msra.mxu0 %v2920
  %2922 = vmatprep.subr.mxu0 0.0
  %v2923 = vand.u32 %v36, 4294901760
  %2924 = vmatpush1.msra.mxu0 %v2923
  %2925 = vmatprep.subr.mxu0 0.0
  %v2926 = vand.u32 %v37, 4294901760
  %2927 = vmatpush1.msra.mxu0 %v2926
  %2928 = vmatprep.subr.mxu0 0.0
  %v2929 = vand.u32 %v38, 4294901760
  %2930 = vmatpush1.msra.mxu0 %v2929
  %2931 = vmatprep.subr.mxu0 0.0
  %v2932 = vand.u32 %v39, 4294901760
  %2933 = vmatpush1.msra.mxu0 %v2932
  %2934 = vmatprep.subr.mxu0 0.0
  %v2935 = vand.u32 %v40, 4294901760
  %2936 = vmatpush1.msra.mxu0 %v2935
  %2937 = vmatprep.subr.mxu0 0.0
  %v2938 = vand.u32 %v41, 4294901760
  %2939 = vmatpush1.msra.mxu0 %v2938
  %2940 = vmatprep.subr.mxu0 0.0
  %v2941 = vand.u32 %v42, 4294901760
  %2942 = vmatpush1.msra.mxu0 %v2941
  %2943 = vmatprep.subr.mxu0 0.0
  %v2944 = vand.u32 %v43, 4294901760
  %2945 = vmatpush1.msra.mxu0 %v2944
  %2946 = vmatprep.subr.mxu0 0.0
  %v2947 = vand.u32 %v44, 4294901760
  %2948 = vmatpush1.msra.mxu0 %v2947
  %2949 = vmatprep.subr.mxu0 0.0
  %v2950 = vand.u32 %v45, 4294901760
  %2951 = vmatpush1.msra.mxu0 %v2950
  %2952 = vmatprep.subr.mxu0 0.0
  %v2953 = vand.u32 %v46, 4294901760
  %2954 = vmatpush1.msra.mxu0 %v2953
  %2955 = vmatprep.subr.mxu0 0.0
  %v2956 = vand.u32 %v47, 4294901760
  %2957 = vmatpush1.msra.mxu0 %v2956
  %2958 = vmatprep.subr.mxu0 0.0
  %v2959 = vand.u32 %v48, 4294901760
  %2960 = vmatpush1.msra.mxu0 %v2959
  %2961 = vmatprep.subr.mxu0 0.0
  %v2962 = vand.u32 %v49, 4294901760
  %2963 = vmatpush1.msra.mxu0 %v2962
  %2964 = vmatprep.subr.mxu0 0.0
  %v2965 = vand.u32 %v50, 4294901760
  %2966 = vmatpush1.msra.mxu0 %v2965
  %2967 = vmatprep.subr.mxu0 0.0
  %v2968 = vand.u32 %v51, 4294901760
  %2969 = vmatpush1.msra.mxu0 %v2968
  %2970 = vmatprep.subr.mxu0 0.0
  %v2971 = vand.u32 %v52, 4294901760
  %2972 = vmatpush1.msra.mxu0 %v2971
  %v2973 = vand.u32 %v2864, 4294901760
  %v2974 = vsub.f32 %v2864, %v2973
  %v2975 = vand.u32 %v2974, 4294901760
  %v2976 = vsub.f32 %v2974, %v2975
  %v2977 = vand.u32 %v2976, 4294901760
  %2978 = vmatprep.mubr.f32.mxu0 %v2977
  %v2979 = vand.u32 %v2860, 4294901760
  %v2980 = vsub.f32 %v2860, %v2979
  %v2981 = vand.u32 %v2980, 4294901760
  %v2982 = vsub.f32 %v2980, %v2981
  %v2983 = vand.u32 %v2982, 4294901760
  %2984 = vmatmul.mubr.f32.gmra.mrb[0].mxu0 %v2983
  %v2985 = vpop.f32.mrb[0].mxu0
  %v2986 = vadd.f32 0.0, %v2985
  %v2987 = vpop.f32.mrb[0].mxu0
  %2988 = vdwg.mxu0
  %2989 = vmatprep.subr.mxu0 0.0
  %v2990 = vand.u32 %v21, 4294901760
  %v2991 = vsub.f32 %v21, %v2990
  %v2992 = vand.u32 %v2991, 4294901760
  %v2993 = vsub.f32 %v2991, %v2992
  %v2994 = vand.u32 %v2993, 4294901760
  %2995 = vmatpush1.msra.mxu0 %v2994
  %2996 = vmatprep.subr.mxu0 0.0
  %v2997 = vand.u32 %v22, 4294901760
  %v2998 = vsub.f32 %v22, %v2997
  %v2999 = vand.u32 %v2998, 4294901760
  %v3000 = vsub.f32 %v2998, %v2999
  %v3001 = vand.u32 %v3000, 4294901760
  %3002 = vmatpush1.msra.mxu0 %v3001
  %3003 = vmatprep.subr.mxu0 0.0
  %v3004 = vand.u32 %v23, 4294901760
  %v3005 = vsub.f32 %v23, %v3004
  %v3006 = vand.u32 %v3005, 4294901760
  %v3007 = vsub.f32 %v3005, %v3006
  %v3008 = vand.u32 %v3007, 4294901760
  %3009 = vmatpush1.msra.mxu0 %v3008
  %3010 = vmatprep.subr.mxu0 0.0
  %v3011 = vand.u32 %v24, 4294901760
  %v3012 = vsub.f32 %v24, %v3011
  %v3013 = vand.u32 %v3012, 4294901760
  %v3014 = vsub.f32 %v3012, %v3013
  %v3015 = vand.u32 %v3014, 4294901760
  %3016 = vmatpush1.msra.mxu0 %v3015
  %3017 = vmatprep.subr.mxu0 0.0
  %v3018 = vand.u32 %v25, 4294901760
  %v3019 = vsub.f32 %v25, %v3018
  %v3020 = vand.u32 %v3019, 4294901760
  %v3021 = vsub.f32 %v3019, %v3020
  %v3022 = vand.u32 %v3021, 4294901760
  %3023 = vmatpush1.msra.mxu0 %v3022
  %3024 = vmatprep.subr.mxu0 0.0
  %v3025 = vand.u32 %v26, 4294901760
  %v3026 = vsub.f32 %v26, %v3025
  %v3027 = vand.u32 %v3026, 4294901760
  %v3028 = vsub.f32 %v3026, %v3027
  %v3029 = vand.u32 %v3028, 4294901760
  %3030 = vmatpush1.msra.mxu0 %v3029
  %3031 = vmatprep.subr.mxu0 0.0
  %v3032 = vand.u32 %v27, 4294901760
  %v3033 = vsub.f32 %v27, %v3032
  %v3034 = vand.u32 %v3033, 4294901760
  %v3035 = vsub.f32 %v3033, %v3034
  %v3036 = vand.u32 %v3035, 4294901760
  %3037 = vmatpush1.msra.mxu0 %v3036
  %3038 = vmatprep.subr.mxu0 0.0
  %v3039 = vand.u32 %v28, 4294901760
  %v3040 = vsub.f32 %v28, %v3039
  %v3041 = vand.u32 %v3040, 4294901760
  %v3042 = vsub.f32 %v3040, %v3041
  %v3043 = vand.u32 %v3042, 4294901760
  %3044 = vmatpush1.msra.mxu0 %v3043
  %3045 = vmatprep.subr.mxu0 0.0
  %v3046 = vand.u32 %v29, 4294901760
  %v3047 = vsub.f32 %v29, %v3046
  %v3048 = vand.u32 %v3047, 4294901760
  %v3049 = vsub.f32 %v3047, %v3048
  %v3050 = vand.u32 %v3049, 4294901760
  %3051 = vmatpush1.msra.mxu0 %v3050
  %3052 = vmatprep.subr.mxu0 0.0
  %v3053 = vand.u32 %v30, 4294901760
  %v3054 = vsub.f32 %v30, %v3053
  %v3055 = vand.u32 %v3054, 4294901760
  %v3056 = vsub.f32 %v3054, %v3055
  %v3057 = vand.u32 %v3056, 4294901760
  %3058 = vmatpush1.msra.mxu0 %v3057
  %3059 = vmatprep.subr.mxu0 0.0
  %v3060 = vand.u32 %v31, 4294901760
  %v3061 = vsub.f32 %v31, %v3060
  %v3062 = vand.u32 %v3061, 4294901760
  %v3063 = vsub.f32 %v3061, %v3062
  %v3064 = vand.u32 %v3063, 4294901760
  %3065 = vmatpush1.msra.mxu0 %v3064
  %3066 = vmatprep.subr.mxu0 0.0
  %v3067 = vand.u32 %v32, 4294901760
  %v3068 = vsub.f32 %v32, %v3067
  %v3069 = vand.u32 %v3068, 4294901760
  %v3070 = vsub.f32 %v3068, %v3069
  %v3071 = vand.u32 %v3070, 4294901760
  %3072 = vmatpush1.msra.mxu0 %v3071
  %3073 = vmatprep.subr.mxu0 0.0
  %v3074 = vand.u32 %v33, 4294901760
  %v3075 = vsub.f32 %v33, %v3074
  %v3076 = vand.u32 %v3075, 4294901760
  %v3077 = vsub.f32 %v3075, %v3076
  %v3078 = vand.u32 %v3077, 4294901760
  %3079 = vmatpush1.msra.mxu0 %v3078
  %3080 = vmatprep.subr.mxu0 0.0
  %v3081 = vand.u32 %v34, 4294901760
  %v3082 = vsub.f32 %v34, %v3081
  %v3083 = vand.u32 %v3082, 4294901760
  %v3084 = vsub.f32 %v3082, %v3083
  %v3085 = vand.u32 %v3084, 4294901760
  %3086 = vmatpush1.msra.mxu0 %v3085
  %3087 = vmatprep.subr.mxu0 0.0
  %v3088 = vand.u32 %v35, 4294901760
  %v3089 = vsub.f32 %v35, %v3088
  %v3090 = vand.u32 %v3089, 4294901760
  %v3091 = vsub.f32 %v3089, %v3090
  %v3092 = vand.u32 %v3091, 4294901760
  %3093 = vmatpush1.msra.mxu0 %v3092
  %3094 = vmatprep.subr.mxu0 0.0
  %v3095 = vand.u32 %v36, 4294901760
  %v3096 = vsub.f32 %v36, %v3095
  %v3097 = vand.u32 %v3096, 4294901760
  %v3098 = vsub.f32 %v3096, %v3097
  %v3099 = vand.u32 %v3098, 4294901760
  %3100 = vmatpush1.msra.mxu0 %v3099
  %3101 = vmatprep.subr.mxu0 0.0
  %v3102 = vand.u32 %v37, 4294901760
  %v3103 = vsub.f32 %v37, %v3102
  %v3104 = vand.u32 %v3103, 4294901760
  %v3105 = vsub.f32 %v3103, %v3104
  %v3106 = vand.u32 %v3105, 4294901760
  %3107 = vmatpush1.msra.mxu0 %v3106
  %3108 = vmatprep.subr.mxu0 0.0
  %v3109 = vand.u32 %v38, 4294901760
  %v3110 = vsub.f32 %v38, %v3109
  %v3111 = vand.u32 %v3110, 4294901760
  %v3112 = vsub.f32 %v3110, %v3111
  %v3113 = vand.u32 %v3112, 4294901760
  %3114 = vmatpush1.msra.mxu0 %v3113
  %3115 = vmatprep.subr.mxu0 0.0
  %v3116 = vand.u32 %v39, 4294901760
  %v3117 = vsub.f32 %v39, %v3116
  %v3118 = vand.u32 %v3117, 4294901760
  %v3119 = vsub.f32 %v3117, %v3118
  %v3120 = vand.u32 %v3119, 4294901760
  %3121 = vmatpush1.msra.mxu0 %v3120
  %3122 = vmatprep.subr.mxu0 0.0
  %v3123 = vand.u32 %v40, 4294901760
  %v3124 = vsub.f32 %v40, %v3123
  %v3125 = vand.u32 %v3124, 4294901760
  %v3126 = vsub.f32 %v3124, %v3125
  %v3127 = vand.u32 %v3126, 4294901760
  %3128 = vmatpush1.msra.mxu0 %v3127
  %3129 = vmatprep.subr.mxu0 0.0
  %v3130 = vand.u32 %v41, 4294901760
  %v3131 = vsub.f32 %v41, %v3130
  %v3132 = vand.u32 %v3131, 4294901760
  %v3133 = vsub.f32 %v3131, %v3132
  %v3134 = vand.u32 %v3133, 4294901760
  %3135 = vmatpush1.msra.mxu0 %v3134
  %3136 = vmatprep.subr.mxu0 0.0
  %v3137 = vand.u32 %v42, 4294901760
  %v3138 = vsub.f32 %v42, %v3137
  %v3139 = vand.u32 %v3138, 4294901760
  %v3140 = vsub.f32 %v3138, %v3139
  %v3141 = vand.u32 %v3140, 4294901760
  %3142 = vmatpush1.msra.mxu0 %v3141
  %3143 = vmatprep.subr.mxu0 0.0
  %v3144 = vand.u32 %v43, 4294901760
  %v3145 = vsub.f32 %v43, %v3144
  %v3146 = vand.u32 %v3145, 4294901760
  %v3147 = vsub.f32 %v3145, %v3146
  %v3148 = vand.u32 %v3147, 4294901760
  %3149 = vmatpush1.msra.mxu0 %v3148
  %3150 = vmatprep.subr.mxu0 0.0
  %v3151 = vand.u32 %v44, 4294901760
  %v3152 = vsub.f32 %v44, %v3151
  %v3153 = vand.u32 %v3152, 4294901760
  %v3154 = vsub.f32 %v3152, %v3153
  %v3155 = vand.u32 %v3154, 4294901760
  %3156 = vmatpush1.msra.mxu0 %v3155
  %3157 = vmatprep.subr.mxu0 0.0
  %v3158 = vand.u32 %v45, 4294901760
  %v3159 = vsub.f32 %v45, %v3158
  %v3160 = vand.u32 %v3159, 4294901760
  %v3161 = vsub.f32 %v3159, %v3160
  %v3162 = vand.u32 %v3161, 4294901760
  %3163 = vmatpush1.msra.mxu0 %v3162
  %3164 = vmatprep.subr.mxu0 0.0
  %v3165 = vand.u32 %v46, 4294901760
  %v3166 = vsub.f32 %v46, %v3165
  %v3167 = vand.u32 %v3166, 4294901760
  %v3168 = vsub.f32 %v3166, %v3167
  %v3169 = vand.u32 %v3168, 4294901760
  %3170 = vmatpush1.msra.mxu0 %v3169
  %3171 = vmatprep.subr.mxu0 0.0
  %v3172 = vand.u32 %v47, 4294901760
  %v3173 = vsub.f32 %v47, %v3172
  %v3174 = vand.u32 %v3173, 4294901760
  %v3175 = vsub.f32 %v3173, %v3174
  %v3176 = vand.u32 %v3175, 4294901760
  %3177 = vmatpush1.msra.mxu0 %v3176
  %3178 = vmatprep.subr.mxu0 0.0
  %v3179 = vand.u32 %v48, 4294901760
  %v3180 = vsub.f32 %v48, %v3179
  %v3181 = vand.u32 %v3180, 4294901760
  %v3182 = vsub.f32 %v3180, %v3181
  %v3183 = vand.u32 %v3182, 4294901760
  %3184 = vmatpush1.msra.mxu0 %v3183
  %3185 = vmatprep.subr.mxu0 0.0
  %v3186 = vand.u32 %v49, 4294901760
  %v3187 = vsub.f32 %v49, %v3186
  %v3188 = vand.u32 %v3187, 4294901760
  %v3189 = vsub.f32 %v3187, %v3188
  %v3190 = vand.u32 %v3189, 4294901760
  %3191 = vmatpush1.msra.mxu0 %v3190
  %3192 = vmatprep.subr.mxu0 0.0
  %v3193 = vand.u32 %v50, 4294901760
  %v3194 = vsub.f32 %v50, %v3193
  %v3195 = vand.u32 %v3194, 4294901760
  %v3196 = vsub.f32 %v3194, %v3195
  %v3197 = vand.u32 %v3196, 4294901760
  %3198 = vmatpush1.msra.mxu0 %v3197
  %3199 = vmatprep.subr.mxu0 0.0
  %v3200 = vand.u32 %v51, 4294901760
  %v3201 = vsub.f32 %v51, %v3200
  %v3202 = vand.u32 %v3201, 4294901760
  %v3203 = vsub.f32 %v3201, %v3202
  %v3204 = vand.u32 %v3203, 4294901760
  %3205 = vmatpush1.msra.mxu0 %v3204
  %3206 = vmatprep.subr.mxu0 0.0
  %v3207 = vand.u32 %v52, 4294901760
  %v3208 = vsub.f32 %v52, %v3207
  %v3209 = vand.u32 %v3208, 4294901760
  %v3210 = vsub.f32 %v3208, %v3209
  %v3211 = vand.u32 %v3210, 4294901760
  %3212 = vmatpush1.msra.mxu0 %v3211
  %v3213 = vand.u32 %v2864, 4294901760
  %3214 = vmatprep.mubr.f32.mxu0 %v3213
  %v3215 = vand.u32 %v2860, 4294901760
  %3216 = vmatmul.mubr.f32.gmra.mrb[0].mxu0 %v3215
  %v3217 = vpop.f32.mrb[0].mxu0
  %v3218 = vadd.f32 %v2986, %v3217
  %v3219 = vpop.f32.mrb[0].mxu0
  %3220 = vdwg.mxu0
  %3221 = vmatprep.subr.mxu0 0.0
  %v3222 = vand.u32 %v21, 4294901760
  %v3223 = vsub.f32 %v21, %v3222
  %3224 = vmatpush1.msra.mxu0 %v3223
  %3225 = vmatprep.subr.mxu0 0.0
  %v3226 = vand.u32 %v22, 4294901760
  %v3227 = vsub.f32 %v22, %v3226
  %3228 = vmatpush1.msra.mxu0 %v3227
  %3229 = vmatprep.subr.mxu0 0.0
  %v3230 = vand.u32 %v23, 4294901760
  %v3231 = vsub.f32 %v23, %v3230
  %3232 = vmatpush1.msra.mxu0 %v3231
  %3233 = vmatprep.subr.mxu0 0.0
  %v3234 = vand.u32 %v24, 4294901760
  %v3235 = vsub.f32 %v24, %v3234
  %3236 = vmatpush1.msra.mxu0 %v3235
  %3237 = vmatprep.subr.mxu0 0.0
  %v3238 = vand.u32 %v25, 4294901760
  %v3239 = vsub.f32 %v25, %v3238
  %3240 = vmatpush1.msra.mxu0 %v3239
  %3241 = vmatprep.subr.mxu0 0.0
  %v3242 = vand.u32 %v26, 4294901760
  %v3243 = vsub.f32 %v26, %v3242
  %3244 = vmatpush1.msra.mxu0 %v3243
  %3245 = vmatprep.subr.mxu0 0.0
  %v3246 = vand.u32 %v27, 4294901760
  %v3247 = vsub.f32 %v27, %v3246
  %3248 = vmatpush1.msra.mxu0 %v3247
  %3249 = vmatprep.subr.mxu0 0.0
  %v3250 = vand.u32 %v28, 4294901760
  %v3251 = vsub.f32 %v28, %v3250
  %3252 = vmatpush1.msra.mxu0 %v3251
  %3253 = vmatprep.subr.mxu0 0.0
  %v3254 = vand.u32 %v29, 4294901760
  %v3255 = vsub.f32 %v29, %v3254
  %3256 = vmatpush1.msra.mxu0 %v3255
  %3257 = vmatprep.subr.mxu0 0.0
  %v3258 = vand.u32 %v30, 4294901760
  %v3259 = vsub.f32 %v30, %v3258
  %3260 = vmatpush1.msra.mxu0 %v3259
  %3261 = vmatprep.subr.mxu0 0.0
  %v3262 = vand.u32 %v31, 4294901760
  %v3263 = vsub.f32 %v31, %v3262
  %3264 = vmatpush1.msra.mxu0 %v3263
  %3265 = vmatprep.subr.mxu0 0.0
  %v3266 = vand.u32 %v32, 4294901760
  %v3267 = vsub.f32 %v32, %v3266
  %3268 = vmatpush1.msra.mxu0 %v3267
  %3269 = vmatprep.subr.mxu0 0.0
  %v3270 = vand.u32 %v33, 4294901760
  %v3271 = vsub.f32 %v33, %v3270
  %3272 = vmatpush1.msra.mxu0 %v3271
  %3273 = vmatprep.subr.mxu0 0.0
  %v3274 = vand.u32 %v34, 4294901760
  %v3275 = vsub.f32 %v34, %v3274
  %3276 = vmatpush1.msra.mxu0 %v3275
  %3277 = vmatprep.subr.mxu0 0.0
  %v3278 = vand.u32 %v35, 4294901760
  %v3279 = vsub.f32 %v35, %v3278
  %3280 = vmatpush1.msra.mxu0 %v3279
  %3281 = vmatprep.subr.mxu0 0.0
  %v3282 = vand.u32 %v36, 4294901760
  %v3283 = vsub.f32 %v36, %v3282
  %3284 = vmatpush1.msra.mxu0 %v3283
  %3285 = vmatprep.subr.mxu0 0.0
  %v3286 = vand.u32 %v37, 4294901760
  %v3287 = vsub.f32 %v37, %v3286
  %3288 = vmatpush1.msra.mxu0 %v3287
  %3289 = vmatprep.subr.mxu0 0.0
  %v3290 = vand.u32 %v38, 4294901760
  %v3291 = vsub.f32 %v38, %v3290
  %3292 = vmatpush1.msra.mxu0 %v3291
  %3293 = vmatprep.subr.mxu0 0.0
  %v3294 = vand.u32 %v39, 4294901760
  %v3295 = vsub.f32 %v39, %v3294
  %3296 = vmatpush1.msra.mxu0 %v3295
  %3297 = vmatprep.subr.mxu0 0.0
  %v3298 = vand.u32 %v40, 4294901760
  %v3299 = vsub.f32 %v40, %v3298
  %3300 = vmatpush1.msra.mxu0 %v3299
  %3301 = vmatprep.subr.mxu0 0.0
  %v3302 = vand.u32 %v41, 4294901760
  %v3303 = vsub.f32 %v41, %v3302
  %3304 = vmatpush1.msra.mxu0 %v3303
  %3305 = vmatprep.subr.mxu0 0.0
  %v3306 = vand.u32 %v42, 4294901760
  %v3307 = vsub.f32 %v42, %v3306
  %3308 = vmatpush1.msra.mxu0 %v3307
  %3309 = vmatprep.subr.mxu0 0.0
  %v3310 = vand.u32 %v43, 4294901760
  %v3311 = vsub.f32 %v43, %v3310
  %3312 = vmatpush1.msra.mxu0 %v3311
  %3313 = vmatprep.subr.mxu0 0.0
  %v3314 = vand.u32 %v44, 4294901760
  %v3315 = vsub.f32 %v44, %v3314
  %3316 = vmatpush1.msra.mxu0 %v3315
  %3317 = vmatprep.subr.mxu0 0.0
  %v3318 = vand.u32 %v45, 4294901760
  %v3319 = vsub.f32 %v45, %v3318
  %3320 = vmatpush1.msra.mxu0 %v3319
  %3321 = vmatprep.subr.mxu0 0.0
  %v3322 = vand.u32 %v46, 4294901760
  %v3323 = vsub.f32 %v46, %v3322
  %3324 = vmatpush1.msra.mxu0 %v3323
  %3325 = vmatprep.subr.mxu0 0.0
  %v3326 = vand.u32 %v47, 4294901760
  %v3327 = vsub.f32 %v47, %v3326
  %3328 = vmatpush1.msra.mxu0 %v3327
  %3329 = vmatprep.subr.mxu0 0.0
  %v3330 = vand.u32 %v48, 4294901760
  %v3331 = vsub.f32 %v48, %v3330
  %3332 = vmatpush1.msra.mxu0 %v3331
  %3333 = vmatprep.subr.mxu0 0.0
  %v3334 = vand.u32 %v49, 4294901760
  %v3335 = vsub.f32 %v49, %v3334
  %3336 = vmatpush1.msra.mxu0 %v3335
  %3337 = vmatprep.subr.mxu0 0.0
  %v3338 = vand.u32 %v50, 4294901760
  %v3339 = vsub.f32 %v50, %v3338
  %3340 = vmatpush1.msra.mxu0 %v3339
  %3341 = vmatprep.subr.mxu0 0.0
  %v3342 = vand.u32 %v51, 4294901760
  %v3343 = vsub.f32 %v51, %v3342
  %3344 = vmatpush1.msra.mxu0 %v3343
  %3345 = vmatprep.subr.mxu0 0.0
  %v3346 = vand.u32 %v52, 4294901760
  %v3347 = vsub.f32 %v52, %v3346
  %3348 = vmatpush1.msra.mxu0 %v3347
  %v3349 = vand.u32 %v2864, 4294901760
  %v3350 = vsub.f32 %v2864, %v3349
  %3351 = vmatprep.mubr.f32.mxu0 %v3350
  %v3352 = vand.u32 %v2860, 4294901760
  %v3353 = vsub.f32 %v2860, %v3352
  %3354 = vmatmul.mubr.f32.gmra.mrb[0].mxu0 %v3353
  %v3355 = vpop.f32.mrb[0].mxu0
  %v3356 = vadd.f32 %v3218, %v3355
  %v3357 = vpop.f32.mrb[0].mxu0
  %3358 = vdwg.mxu0
  %3359 = vmatprep.subr.mxu0 0.0
  %v3360 = vand.u32 %v21, 4294901760
  %3361 = vmatpush1.msra.mxu0 %v3360
  %3362 = vmatprep.subr.mxu0 0.0
  %v3363 = vand.u32 %v22, 4294901760
  %3364 = vmatpush1.msra.mxu0 %v3363
  %3365 = vmatprep.subr.mxu0 0.0
  %v3366 = vand.u32 %v23, 4294901760
  %3367 = vmatpush1.msra.mxu0 %v3366
  %3368 = vmatprep.subr.mxu0 0.0
  %v3369 = vand.u32 %v24, 4294901760
  %3370 = vmatpush1.msra.mxu0 %v3369
  %3371 = vmatprep.subr.mxu0 0.0
  %v3372 = vand.u32 %v25, 4294901760
  %3373 = vmatpush1.msra.mxu0 %v3372
  %3374 = vmatprep.subr.mxu0 0.0
  %v3375 = vand.u32 %v26, 4294901760
  %3376 = vmatpush1.msra.mxu0 %v3375
  %3377 = vmatprep.subr.mxu0 0.0
  %v3378 = vand.u32 %v27, 4294901760
  %3379 = vmatpush1.msra.mxu0 %v3378
  %3380 = vmatprep.subr.mxu0 0.0
  %v3381 = vand.u32 %v28, 4294901760
  %3382 = vmatpush1.msra.mxu0 %v3381
  %3383 = vmatprep.subr.mxu0 0.0
  %v3384 = vand.u32 %v29, 4294901760
  %3385 = vmatpush1.msra.mxu0 %v3384
  %3386 = vmatprep.subr.mxu0 0.0
  %v3387 = vand.u32 %v30, 4294901760
  %3388 = vmatpush1.msra.mxu0 %v3387
  %3389 = vmatprep.subr.mxu0 0.0
  %v3390 = vand.u32 %v31, 4294901760
  %3391 = vmatpush1.msra.mxu0 %v3390
  %3392 = vmatprep.subr.mxu0 0.0
  %v3393 = vand.u32 %v32, 4294901760
  %3394 = vmatpush1.msra.mxu0 %v3393
  %3395 = vmatprep.subr.mxu0 0.0
  %v3396 = vand.u32 %v33, 4294901760
  %3397 = vmatpush1.msra.mxu0 %v3396
  %3398 = vmatprep.subr.mxu0 0.0
  %v3399 = vand.u32 %v34, 4294901760
  %3400 = vmatpush1.msra.mxu0 %v3399
  %3401 = vmatprep.subr.mxu0 0.0
  %v3402 = vand.u32 %v35, 4294901760
  %3403 = vmatpush1.msra.mxu0 %v3402
  %3404 = vmatprep.subr.mxu0 0.0
  %v3405 = vand.u32 %v36, 4294901760
  %3406 = vmatpush1.msra.mxu0 %v3405
  %3407 = vmatprep.subr.mxu0 0.0
  %v3408 = vand.u32 %v37, 4294901760
  %3409 = vmatpush1.msra.mxu0 %v3408
  %3410 = vmatprep.subr.mxu0 0.0
  %v3411 = vand.u32 %v38, 4294901760
  %3412 = vmatpush1.msra.mxu0 %v3411
  %3413 = vmatprep.subr.mxu0 0.0
  %v3414 = vand.u32 %v39, 4294901760
  %3415 = vmatpush1.msra.mxu0 %v3414
  %3416 = vmatprep.subr.mxu0 0.0
  %v3417 = vand.u32 %v40, 4294901760
  %3418 = vmatpush1.msra.mxu0 %v3417
  %3419 = vmatprep.subr.mxu0 0.0
  %v3420 = vand.u32 %v41, 4294901760
  %3421 = vmatpush1.msra.mxu0 %v3420
  %3422 = vmatprep.subr.mxu0 0.0
  %v3423 = vand.u32 %v42, 4294901760
  %3424 = vmatpush1.msra.mxu0 %v3423
  %3425 = vmatprep.subr.mxu0 0.0
  %v3426 = vand.u32 %v43, 4294901760
  %3427 = vmatpush1.msra.mxu0 %v3426
  %3428 = vmatprep.subr.mxu0 0.0
  %v3429 = vand.u32 %v44, 4294901760
  %3430 = vmatpush1.msra.mxu0 %v3429
  %3431 = vmatprep.subr.mxu0 0.0
  %v3432 = vand.u32 %v45, 4294901760
  %3433 = vmatpush1.msra.mxu0 %v3432
  %3434 = vmatprep.subr.mxu0 0.0
  %v3435 = vand.u32 %v46, 4294901760
  %3436 = vmatpush1.msra.mxu0 %v3435
  %3437 = vmatprep.subr.mxu0 0.0
  %v3438 = vand.u32 %v47, 4294901760
  %3439 = vmatpush1.msra.mxu0 %v3438
  %3440 = vmatprep.subr.mxu0 0.0
  %v3441 = vand.u32 %v48, 4294901760
  %3442 = vmatpush1.msra.mxu0 %v3441
  %3443 = vmatprep.subr.mxu0 0.0
  %v3444 = vand.u32 %v49, 4294901760
  %3445 = vmatpush1.msra.mxu0 %v3444
  %3446 = vmatprep.subr.mxu0 0.0
  %v3447 = vand.u32 %v50, 4294901760
  %3448 = vmatpush1.msra.mxu0 %v3447
  %3449 = vmatprep.subr.mxu0 0.0
  %v3450 = vand.u32 %v51, 4294901760
  %3451 = vmatpush1.msra.mxu0 %v3450
  %3452 = vmatprep.subr.mxu0 0.0
  %v3453 = vand.u32 %v52, 4294901760
  %3454 = vmatpush1.msra.mxu0 %v3453
  %v3455 = vand.u32 %v2864, 4294901760
  %v3456 = vsub.f32 %v2864, %v3455
  %v3457 = vand.u32 %v3456, 4294901760
  %3458 = vmatprep.mubr.f32.mxu0 %v3457
  %v3459 = vand.u32 %v2860, 4294901760
  %v3460 = vsub.f32 %v2860, %v3459
  %v3461 = vand.u32 %v3460, 4294901760
  %3462 = vmatmul.mubr.f32.gmra.mrb[0].mxu0 %v3461
  %v3463 = vpop.f32.mrb[0].mxu0
  %v3464 = vadd.f32 %v3356, %v3463
  %v3465 = vpop.f32.mrb[0].mxu0
  %3466 = vdwg.mxu0
  %3467 = vmatprep.subr.mxu0 0.0
  %v3468 = vand.u32 %v21, 4294901760
  %v3469 = vsub.f32 %v21, %v3468
  %v3470 = vand.u32 %v3469, 4294901760
  %3471 = vmatpush1.msra.mxu0 %v3470
  %3472 = vmatprep.subr.mxu0 0.0
  %v3473 = vand.u32 %v22, 4294901760
  %v3474 = vsub.f32 %v22, %v3473
  %v3475 = vand.u32 %v3474, 4294901760
  %3476 = vmatpush1.msra.mxu0 %v3475
  %3477 = vmatprep.subr.mxu0 0.0
  %v3478 = vand.u32 %v23, 4294901760
  %v3479 = vsub.f32 %v23, %v3478
  %v3480 = vand.u32 %v3479, 4294901760
  %3481 = vmatpush1.msra.mxu0 %v3480
  %3482 = vmatprep.subr.mxu0 0.0
  %v3483 = vand.u32 %v24, 4294901760
  %v3484 = vsub.f32 %v24, %v3483
  %v3485 = vand.u32 %v3484, 4294901760
  %3486 = vmatpush1.msra.mxu0 %v3485
  %3487 = vmatprep.subr.mxu0 0.0
  %v3488 = vand.u32 %v25, 4294901760
  %v3489 = vsub.f32 %v25, %v3488
  %v3490 = vand.u32 %v3489, 4294901760
  %3491 = vmatpush1.msra.mxu0 %v3490
  %3492 = vmatprep.subr.mxu0 0.0
  %v3493 = vand.u32 %v26, 4294901760
  %v3494 = vsub.f32 %v26, %v3493
  %v3495 = vand.u32 %v3494, 4294901760
  %3496 = vmatpush1.msra.mxu0 %v3495
  %3497 = vmatprep.subr.mxu0 0.0
  %v3498 = vand.u32 %v27, 4294901760
  %v3499 = vsub.f32 %v27, %v3498
  %v3500 = vand.u32 %v3499, 4294901760
  %3501 = vmatpush1.msra.mxu0 %v3500
  %3502 = vmatprep.subr.mxu0 0.0
  %v3503 = vand.u32 %v28, 4294901760
  %v3504 = vsub.f32 %v28, %v3503
  %v3505 = vand.u32 %v3504, 4294901760
  %3506 = vmatpush1.msra.mxu0 %v3505
  %3507 = vmatprep.subr.mxu0 0.0
  %v3508 = vand.u32 %v29, 4294901760
  %v3509 = vsub.f32 %v29, %v3508
  %v3510 = vand.u32 %v3509, 4294901760
  %3511 = vmatpush1.msra.mxu0 %v3510
  %3512 = vmatprep.subr.mxu0 0.0
  %v3513 = vand.u32 %v30, 4294901760
  %v3514 = vsub.f32 %v30, %v3513
  %v3515 = vand.u32 %v3514, 4294901760
  %3516 = vmatpush1.msra.mxu0 %v3515
  %3517 = vmatprep.subr.mxu0 0.0
  %v3518 = vand.u32 %v31, 4294901760
  %v3519 = vsub.f32 %v31, %v3518
  %v3520 = vand.u32 %v3519, 4294901760
  %3521 = vmatpush1.msra.mxu0 %v3520
  %3522 = vmatprep.subr.mxu0 0.0
  %v3523 = vand.u32 %v32, 4294901760
  %v3524 = vsub.f32 %v32, %v3523
  %v3525 = vand.u32 %v3524, 4294901760
  %3526 = vmatpush1.msra.mxu0 %v3525
  %3527 = vmatprep.subr.mxu0 0.0
  %v3528 = vand.u32 %v33, 4294901760
  %v3529 = vsub.f32 %v33, %v3528
  %v3530 = vand.u32 %v3529, 4294901760
  %3531 = vmatpush1.msra.mxu0 %v3530
  %3532 = vmatprep.subr.mxu0 0.0
  %v3533 = vand.u32 %v34, 4294901760
  %v3534 = vsub.f32 %v34, %v3533
  %v3535 = vand.u32 %v3534, 4294901760
  %3536 = vmatpush1.msra.mxu0 %v3535
  %3537 = vmatprep.subr.mxu0 0.0
  %v3538 = vand.u32 %v35, 4294901760
  %v3539 = vsub.f32 %v35, %v3538
  %v3540 = vand.u32 %v3539, 4294901760
  %3541 = vmatpush1.msra.mxu0 %v3540
  %3542 = vmatprep.subr.mxu0 0.0
  %v3543 = vand.u32 %v36, 4294901760
  %v3544 = vsub.f32 %v36, %v3543
  %v3545 = vand.u32 %v3544, 4294901760
  %3546 = vmatpush1.msra.mxu0 %v3545
  %3547 = vmatprep.subr.mxu0 0.0
  %v3548 = vand.u32 %v37, 4294901760
  %v3549 = vsub.f32 %v37, %v3548
  %v3550 = vand.u32 %v3549, 4294901760
  %3551 = vmatpush1.msra.mxu0 %v3550
  %3552 = vmatprep.subr.mxu0 0.0
  %v3553 = vand.u32 %v38, 4294901760
  %v3554 = vsub.f32 %v38, %v3553
  %v3555 = vand.u32 %v3554, 4294901760
  %3556 = vmatpush1.msra.mxu0 %v3555
  %3557 = vmatprep.subr.mxu0 0.0
  %v3558 = vand.u32 %v39, 4294901760
  %v3559 = vsub.f32 %v39, %v3558
  %v3560 = vand.u32 %v3559, 4294901760
  %3561 = vmatpush1.msra.mxu0 %v3560
  %3562 = vmatprep.subr.mxu0 0.0
  %v3563 = vand.u32 %v40, 4294901760
  %v3564 = vsub.f32 %v40, %v3563
  %v3565 = vand.u32 %v3564, 4294901760
  %3566 = vmatpush1.msra.mxu0 %v3565
  %3567 = vmatprep.subr.mxu0 0.0
  %v3568 = vand.u32 %v41, 4294901760
  %v3569 = vsub.f32 %v41, %v3568
  %v3570 = vand.u32 %v3569, 4294901760
  %3571 = vmatpush1.msra.mxu0 %v3570
  %3572 = vmatprep.subr.mxu0 0.0
  %v3573 = vand.u32 %v42, 4294901760
  %v3574 = vsub.f32 %v42, %v3573
  %v3575 = vand.u32 %v3574, 4294901760
  %3576 = vmatpush1.msra.mxu0 %v3575
  %3577 = vmatprep.subr.mxu0 0.0
  %v3578 = vand.u32 %v43, 4294901760
  %v3579 = vsub.f32 %v43, %v3578
  %v3580 = vand.u32 %v3579, 4294901760
  %3581 = vmatpush1.msra.mxu0 %v3580
  %3582 = vmatprep.subr.mxu0 0.0
  %v3583 = vand.u32 %v44, 4294901760
  %v3584 = vsub.f32 %v44, %v3583
  %v3585 = vand.u32 %v3584, 4294901760
  %3586 = vmatpush1.msra.mxu0 %v3585
  %3587 = vmatprep.subr.mxu0 0.0
  %v3588 = vand.u32 %v45, 4294901760
  %v3589 = vsub.f32 %v45, %v3588
  %v3590 = vand.u32 %v3589, 4294901760
  %3591 = vmatpush1.msra.mxu0 %v3590
  %3592 = vmatprep.subr.mxu0 0.0
  %v3593 = vand.u32 %v46, 4294901760
  %v3594 = vsub.f32 %v46, %v3593
  %v3595 = vand.u32 %v3594, 4294901760
  %3596 = vmatpush1.msra.mxu0 %v3595
  %3597 = vmatprep.subr.mxu0 0.0
  %v3598 = vand.u32 %v47, 4294901760
  %v3599 = vsub.f32 %v47, %v3598
  %v3600 = vand.u32 %v3599, 4294901760
  %3601 = vmatpush1.msra.mxu0 %v3600
  %3602 = vmatprep.subr.mxu0 0.0
  %v3603 = vand.u32 %v48, 4294901760
  %v3604 = vsub.f32 %v48, %v3603
  %v3605 = vand.u32 %v3604, 4294901760
  %3606 = vmatpush1.msra.mxu0 %v3605
  %3607 = vmatprep.subr.mxu0 0.0
  %v3608 = vand.u32 %v49, 4294901760
  %v3609 = vsub.f32 %v49, %v3608
  %v3610 = vand.u32 %v3609, 4294901760
  %3611 = vmatpush1.msra.mxu0 %v3610
  %3612 = vmatprep.subr.mxu0 0.0
  %v3613 = vand.u32 %v50, 4294901760
  %v3614 = vsub.f32 %v50, %v3613
  %v3615 = vand.u32 %v3614, 4294901760
  %3616 = vmatpush1.msra.mxu0 %v3615
  %3617 = vmatprep.subr.mxu0 0.0
  %v3618 = vand.u32 %v51, 4294901760
  %v3619 = vsub.f32 %v51, %v3618
  %v3620 = vand.u32 %v3619, 4294901760
  %3621 = vmatpush1.msra.mxu0 %v3620
  %3622 = vmatprep.subr.mxu0 0.0
  %v3623 = vand.u32 %v52, 4294901760
  %v3624 = vsub.f32 %v52, %v3623
  %v3625 = vand.u32 %v3624, 4294901760
  %3626 = vmatpush1.msra.mxu0 %v3625
  %v3627 = vand.u32 %v2864, 4294901760
  %3628 = vmatprep.mubr.f32.mxu0 %v3627
  %v3629 = vand.u32 %v2860, 4294901760
  %3630 = vmatmul.mubr.f32.gmra.mrb[0].mxu0 %v3629
  %v3631 = vpop.f32.mrb[0].mxu0
  %v3632 = vadd.f32 %v3464, %v3631
  %v3633 = vpop.f32.mrb[0].mxu0
  %3634 = vdwg.mxu0
  %3635 = vmatprep.subr.mxu0 0.0
  %v3636 = vand.u32 %v21, 4294901760
  %3637 = vmatpush1.msra.mxu0 %v3636
  %3638 = vmatprep.subr.mxu0 0.0
  %v3639 = vand.u32 %v22, 4294901760
  %3640 = vmatpush1.msra.mxu0 %v3639
  %3641 = vmatprep.subr.mxu0 0.0
  %v3642 = vand.u32 %v23, 4294901760
  %3643 = vmatpush1.msra.mxu0 %v3642
  %3644 = vmatprep.subr.mxu0 0.0
  %v3645 = vand.u32 %v24, 4294901760
  %3646 = vmatpush1.msra.mxu0 %v3645
  %3647 = vmatprep.subr.mxu0 0.0
  %v3648 = vand.u32 %v25, 4294901760
  %3649 = vmatpush1.msra.mxu0 %v3648
  %3650 = vmatprep.subr.mxu0 0.0
  %v3651 = vand.u32 %v26, 4294901760
  %3652 = vmatpush1.msra.mxu0 %v3651
  %3653 = vmatprep.subr.mxu0 0.0
  %v3654 = vand.u32 %v27, 4294901760
  %3655 = vmatpush1.msra.mxu0 %v3654
  %3656 = vmatprep.subr.mxu0 0.0
  %v3657 = vand.u32 %v28, 4294901760
  %3658 = vmatpush1.msra.mxu0 %v3657
  %3659 = vmatprep.subr.mxu0 0.0
  %v3660 = vand.u32 %v29, 4294901760
  %3661 = vmatpush1.msra.mxu0 %v3660
  %3662 = vmatprep.subr.mxu0 0.0
  %v3663 = vand.u32 %v30, 4294901760
  %3664 = vmatpush1.msra.mxu0 %v3663
  %3665 = vmatprep.subr.mxu0 0.0
  %v3666 = vand.u32 %v31, 4294901760
  %3667 = vmatpush1.msra.mxu0 %v3666
  %3668 = vmatprep.subr.mxu0 0.0
  %v3669 = vand.u32 %v32, 4294901760
  %3670 = vmatpush1.msra.mxu0 %v3669
  %3671 = vmatprep.subr.mxu0 0.0
  %v3672 = vand.u32 %v33, 4294901760
  %3673 = vmatpush1.msra.mxu0 %v3672
  %3674 = vmatprep.subr.mxu0 0.0
  %v3675 = vand.u32 %v34, 4294901760
  %3676 = vmatpush1.msra.mxu0 %v3675
  %3677 = vmatprep.subr.mxu0 0.0
  %v3678 = vand.u32 %v35, 4294901760
  %3679 = vmatpush1.msra.mxu0 %v3678
  %3680 = vmatprep.subr.mxu0 0.0
  %v3681 = vand.u32 %v36, 4294901760
  %3682 = vmatpush1.msra.mxu0 %v3681
  %3683 = vmatprep.subr.mxu0 0.0
  %v3684 = vand.u32 %v37, 4294901760
  %3685 = vmatpush1.msra.mxu0 %v3684
  %3686 = vmatprep.subr.mxu0 0.0
  %v3687 = vand.u32 %v38, 4294901760
  %3688 = vmatpush1.msra.mxu0 %v3687
  %3689 = vmatprep.subr.mxu0 0.0
  %v3690 = vand.u32 %v39, 4294901760
  %3691 = vmatpush1.msra.mxu0 %v3690
  %3692 = vmatprep.subr.mxu0 0.0
  %v3693 = vand.u32 %v40, 4294901760
  %3694 = vmatpush1.msra.mxu0 %v3693
  %3695 = vmatprep.subr.mxu0 0.0
  %v3696 = vand.u32 %v41, 4294901760
  %3697 = vmatpush1.msra.mxu0 %v3696
  %3698 = vmatprep.subr.mxu0 0.0
  %v3699 = vand.u32 %v42, 4294901760
  %3700 = vmatpush1.msra.mxu0 %v3699
  %3701 = vmatprep.subr.mxu0 0.0
  %v3702 = vand.u32 %v43, 4294901760
  %3703 = vmatpush1.msra.mxu0 %v3702
  %3704 = vmatprep.subr.mxu0 0.0
  %v3705 = vand.u32 %v44, 4294901760
  %3706 = vmatpush1.msra.mxu0 %v3705
  %3707 = vmatprep.subr.mxu0 0.0
  %v3708 = vand.u32 %v45, 4294901760
  %3709 = vmatpush1.msra.mxu0 %v3708
  %3710 = vmatprep.subr.mxu0 0.0
  %v3711 = vand.u32 %v46, 4294901760
  %3712 = vmatpush1.msra.mxu0 %v3711
  %3713 = vmatprep.subr.mxu0 0.0
  %v3714 = vand.u32 %v47, 4294901760
  %3715 = vmatpush1.msra.mxu0 %v3714
  %3716 = vmatprep.subr.mxu0 0.0
  %v3717 = vand.u32 %v48, 4294901760
  %3718 = vmatpush1.msra.mxu0 %v3717
  %3719 = vmatprep.subr.mxu0 0.0
  %v3720 = vand.u32 %v49, 4294901760
  %3721 = vmatpush1.msra.mxu0 %v3720
  %3722 = vmatprep.subr.mxu0 0.0
  %v3723 = vand.u32 %v50, 4294901760
  %3724 = vmatpush1.msra.mxu0 %v3723
  %3725 = vmatprep.subr.mxu0 0.0
  %v3726 = vand.u32 %v51, 4294901760
  %3727 = vmatpush1.msra.mxu0 %v3726
  %3728 = vmatprep.subr.mxu0 0.0
  %v3729 = vand.u32 %v52, 4294901760
  %3730 = vmatpush1.msra.mxu0 %v3729
  %v3731 = vand.u32 %v2864, 4294901760
  %3732 = vmatprep.mubr.f32.mxu0 %v3731
  %v3733 = vand.u32 %v2860, 4294901760
  %3734 = vmatmul.mubr.f32.gmra.mrb[0].mxu0 %v3733
  %v3735 = vpop.f32.mrb[0].mxu0
  %v3736 = vadd.f32 %v3632, %v3735
  %v3737 = vpop.f32.mrb[0].mxu0
  %3738 = vdwg.mxu0
  %3739 = vmatprep.subr.mxu0 0.0
  %v3740 = vand.u32 %v53, 4294901760
  %3741 = vmatpush1.msra.mxu0 %v3740
  %3742 = vmatprep.subr.mxu0 0.0
  %v3743 = vand.u32 %v54, 4294901760
  %3744 = vmatpush1.msra.mxu0 %v3743
  %3745 = vmatprep.subr.mxu0 0.0
  %v3746 = vand.u32 %v55, 4294901760
  %3747 = vmatpush1.msra.mxu0 %v3746
  %3748 = vmatprep.subr.mxu0 0.0
  %v3749 = vand.u32 %v56, 4294901760
  %3750 = vmatpush1.msra.mxu0 %v3749
  %3751 = vmatprep.subr.mxu0 0.0
  %v3752 = vand.u32 %v57, 4294901760
  %3753 = vmatpush1.msra.mxu0 %v3752
  %3754 = vmatprep.subr.mxu0 0.0
  %v3755 = vand.u32 %v58, 4294901760
  %3756 = vmatpush1.msra.mxu0 %v3755
  %3757 = vmatprep.subr.mxu0 0.0
  %v3758 = vand.u32 %v59, 4294901760
  %3759 = vmatpush1.msra.mxu0 %v3758
  %3760 = vmatprep.subr.mxu0 0.0
  %v3761 = vand.u32 %v60, 4294901760
  %3762 = vmatpush1.msra.mxu0 %v3761
  %3763 = vmatprep.subr.mxu0 0.0
  %v3764 = vand.u32 %v61, 4294901760
  %3765 = vmatpush1.msra.mxu0 %v3764
  %3766 = vmatprep.subr.mxu0 0.0
  %v3767 = vand.u32 %v62, 4294901760
  %3768 = vmatpush1.msra.mxu0 %v3767
  %3769 = vmatprep.subr.mxu0 0.0
  %v3770 = vand.u32 %v63, 4294901760
  %3771 = vmatpush1.msra.mxu0 %v3770
  %3772 = vmatprep.subr.mxu0 0.0
  %v3773 = vand.u32 %v64, 4294901760
  %3774 = vmatpush1.msra.mxu0 %v3773
  %3775 = vmatprep.subr.mxu0 0.0
  %v3776 = vand.u32 %v65, 4294901760
  %3777 = vmatpush1.msra.mxu0 %v3776
  %3778 = vmatprep.subr.mxu0 0.0
  %v3779 = vand.u32 %v66, 4294901760
  %3780 = vmatpush1.msra.mxu0 %v3779
  %3781 = vmatprep.subr.mxu0 0.0
  %v3782 = vand.u32 %v67, 4294901760
  %3783 = vmatpush1.msra.mxu0 %v3782
  %3784 = vmatprep.subr.mxu0 0.0
  %v3785 = vand.u32 %v68, 4294901760
  %3786 = vmatpush1.msra.mxu0 %v3785
  %3787 = vmatprep.subr.mxu0 0.0
  %v3788 = vand.u32 %v69, 4294901760
  %3789 = vmatpush1.msra.mxu0 %v3788
  %3790 = vmatprep.subr.mxu0 0.0
  %v3791 = vand.u32 %v70, 4294901760
  %3792 = vmatpush1.msra.mxu0 %v3791
  %3793 = vmatprep.subr.mxu0 0.0
  %v3794 = vand.u32 %v71, 4294901760
  %3795 = vmatpush1.msra.mxu0 %v3794
  %3796 = vmatprep.subr.mxu0 0.0
  %v3797 = vand.u32 %v72, 4294901760
  %3798 = vmatpush1.msra.mxu0 %v3797
  %3799 = vmatprep.subr.mxu0 0.0
  %v3800 = vand.u32 %v73, 4294901760
  %3801 = vmatpush1.msra.mxu0 %v3800
  %3802 = vmatprep.subr.mxu0 0.0
  %v3803 = vand.u32 %v74, 4294901760
  %3804 = vmatpush1.msra.mxu0 %v3803
  %3805 = vmatprep.subr.mxu0 0.0
  %v3806 = vand.u32 %v75, 4294901760
  %3807 = vmatpush1.msra.mxu0 %v3806
  %3808 = vmatprep.subr.mxu0 0.0
  %v3809 = vand.u32 %v76, 4294901760
  %3810 = vmatpush1.msra.mxu0 %v3809
  %3811 = vmatprep.subr.mxu0 0.0
  %v3812 = vand.u32 %v77, 4294901760
  %3813 = vmatpush1.msra.mxu0 %v3812
  %3814 = vmatprep.subr.mxu0 0.0
  %v3815 = vand.u32 %v78, 4294901760
  %3816 = vmatpush1.msra.mxu0 %v3815
  %3817 = vmatprep.subr.mxu0 0.0
  %v3818 = vand.u32 %v79, 4294901760
  %3819 = vmatpush1.msra.mxu0 %v3818
  %3820 = vmatprep.subr.mxu0 0.0
  %v3821 = vand.u32 %v80, 4294901760
  %3822 = vmatpush1.msra.mxu0 %v3821
  %3823 = vmatprep.subr.mxu0 0.0
  %v3824 = vand.u32 %v81, 4294901760
  %3825 = vmatpush1.msra.mxu0 %v3824
  %3826 = vmatprep.subr.mxu0 0.0
  %v3827 = vand.u32 %v82, 4294901760
  %3828 = vmatpush1.msra.mxu0 %v3827
  %3829 = vmatprep.subr.mxu0 0.0
  %v3830 = vand.u32 %v83, 4294901760
  %3831 = vmatpush1.msra.mxu0 %v3830
  %3832 = vmatprep.subr.mxu0 0.0
  %v3833 = vand.u32 %v84, 4294901760
  %3834 = vmatpush1.msra.mxu0 %v3833
  %v3835 = vand.u32 %v2872, 4294901760
  %v3836 = vsub.f32 %v2872, %v3835
  %v3837 = vand.u32 %v3836, 4294901760
  %v3838 = vsub.f32 %v3836, %v3837
  %v3839 = vand.u32 %v3838, 4294901760
  %3840 = vmatprep.mubr.f32.mxu0 %v3839
  %v3841 = vand.u32 %v2868, 4294901760
  %v3842 = vsub.f32 %v2868, %v3841
  %v3843 = vand.u32 %v3842, 4294901760
  %v3844 = vsub.f32 %v3842, %v3843
  %v3845 = vand.u32 %v3844, 4294901760
  %3846 = vmatmul.mubr.f32.gmra.mrb[0].mxu0 %v3845
  %v3847 = vpop.f32.mrb[0].mxu0
  %v3848 = vadd.f32 %v3736, %v3847
  %v3849 = vpop.f32.mrb[0].mxu0
  %3850 = vdwg.mxu0
  %3851 = vmatprep.subr.mxu0 0.0
  %v3852 = vand.u32 %v53, 4294901760
  %v3853 = vsub.f32 %v53, %v3852
  %v3854 = vand.u32 %v3853, 4294901760
  %v3855 = vsub.f32 %v3853, %v3854
  %v3856 = vand.u32 %v3855, 4294901760
  %3857 = vmatpush1.msra.mxu0 %v3856
  %3858 = vmatprep.subr.mxu0 0.0
  %v3859 = vand.u32 %v54, 4294901760
  %v3860 = vsub.f32 %v54, %v3859
  %v3861 = vand.u32 %v3860, 4294901760
  %v3862 = vsub.f32 %v3860, %v3861
  %v3863 = vand.u32 %v3862, 4294901760
  %3864 = vmatpush1.msra.mxu0 %v3863
  %3865 = vmatprep.subr.mxu0 0.0
  %v3866 = vand.u32 %v55, 4294901760
  %v3867 = vsub.f32 %v55, %v3866
  %v3868 = vand.u32 %v3867, 4294901760
  %v3869 = vsub.f32 %v3867, %v3868
  %v3870 = vand.u32 %v3869, 4294901760
  %3871 = vmatpush1.msra.mxu0 %v3870
  %3872 = vmatprep.subr.mxu0 0.0
  %v3873 = vand.u32 %v56, 4294901760
  %v3874 = vsub.f32 %v56, %v3873
  %v3875 = vand.u32 %v3874, 4294901760
  %v3876 = vsub.f32 %v3874, %v3875
  %v3877 = vand.u32 %v3876, 4294901760
  %3878 = vmatpush1.msra.mxu0 %v3877
  %3879 = vmatprep.subr.mxu0 0.0
  %v3880 = vand.u32 %v57, 4294901760
  %v3881 = vsub.f32 %v57, %v3880
  %v3882 = vand.u32 %v3881, 4294901760
  %v3883 = vsub.f32 %v3881, %v3882
  %v3884 = vand.u32 %v3883, 4294901760
  %3885 = vmatpush1.msra.mxu0 %v3884
  %3886 = vmatprep.subr.mxu0 0.0
  %v3887 = vand.u32 %v58, 4294901760
  %v3888 = vsub.f32 %v58, %v3887
  %v3889 = vand.u32 %v3888, 4294901760
  %v3890 = vsub.f32 %v3888, %v3889
  %v3891 = vand.u32 %v3890, 4294901760
  %3892 = vmatpush1.msra.mxu0 %v3891
  %3893 = vmatprep.subr.mxu0 0.0
  %v3894 = vand.u32 %v59, 4294901760
  %v3895 = vsub.f32 %v59, %v3894
  %v3896 = vand.u32 %v3895, 4294901760
  %v3897 = vsub.f32 %v3895, %v3896
  %v3898 = vand.u32 %v3897, 4294901760
  %3899 = vmatpush1.msra.mxu0 %v3898
  %3900 = vmatprep.subr.mxu0 0.0
  %v3901 = vand.u32 %v60, 4294901760
  %v3902 = vsub.f32 %v60, %v3901
  %v3903 = vand.u32 %v3902, 4294901760
  %v3904 = vsub.f32 %v3902, %v3903
  %v3905 = vand.u32 %v3904, 4294901760
  %3906 = vmatpush1.msra.mxu0 %v3905
  %3907 = vmatprep.subr.mxu0 0.0
  %v3908 = vand.u32 %v61, 4294901760
  %v3909 = vsub.f32 %v61, %v3908
  %v3910 = vand.u32 %v3909, 4294901760
  %v3911 = vsub.f32 %v3909, %v3910
  %v3912 = vand.u32 %v3911, 4294901760
  %3913 = vmatpush1.msra.mxu0 %v3912
  %3914 = vmatprep.subr.mxu0 0.0
  %v3915 = vand.u32 %v62, 4294901760
  %v3916 = vsub.f32 %v62, %v3915
  %v3917 = vand.u32 %v3916, 4294901760
  %v3918 = vsub.f32 %v3916, %v3917
  %v3919 = vand.u32 %v3918, 4294901760
  %3920 = vmatpush1.msra.mxu0 %v3919
  %3921 = vmatprep.subr.mxu0 0.0
  %v3922 = vand.u32 %v63, 4294901760
  %v3923 = vsub.f32 %v63, %v3922
  %v3924 = vand.u32 %v3923, 4294901760
  %v3925 = vsub.f32 %v3923, %v3924
  %v3926 = vand.u32 %v3925, 4294901760
  %3927 = vmatpush1.msra.mxu0 %v3926
  %3928 = vmatprep.subr.mxu0 0.0
  %v3929 = vand.u32 %v64, 4294901760
  %v3930 = vsub.f32 %v64, %v3929
  %v3931 = vand.u32 %v3930, 4294901760
  %v3932 = vsub.f32 %v3930, %v3931
  %v3933 = vand.u32 %v3932, 4294901760
  %3934 = vmatpush1.msra.mxu0 %v3933
  %3935 = vmatprep.subr.mxu0 0.0
  %v3936 = vand.u32 %v65, 4294901760
  %v3937 = vsub.f32 %v65, %v3936
  %v3938 = vand.u32 %v3937, 4294901760
  %v3939 = vsub.f32 %v3937, %v3938
  %v3940 = vand.u32 %v3939, 4294901760
  %3941 = vmatpush1.msra.mxu0 %v3940
  %3942 = vmatprep.subr.mxu0 0.0
  %v3943 = vand.u32 %v66, 4294901760
  %v3944 = vsub.f32 %v66, %v3943
  %v3945 = vand.u32 %v3944, 4294901760
  %v3946 = vsub.f32 %v3944, %v3945
  %v3947 = vand.u32 %v3946, 4294901760
  %3948 = vmatpush1.msra.mxu0 %v3947
  %3949 = vmatprep.subr.mxu0 0.0
  %v3950 = vand.u32 %v67, 4294901760
  %v3951 = vsub.f32 %v67, %v3950
  %v3952 = vand.u32 %v3951, 4294901760
  %v3953 = vsub.f32 %v3951, %v3952
  %v3954 = vand.u32 %v3953, 4294901760
  %3955 = vmatpush1.msra.mxu0 %v3954
  %3956 = vmatprep.subr.mxu0 0.0
  %v3957 = vand.u32 %v68, 4294901760
  %v3958 = vsub.f32 %v68, %v3957
  %v3959 = vand.u32 %v3958, 4294901760
  %v3960 = vsub.f32 %v3958, %v3959
  %v3961 = vand.u32 %v3960, 4294901760
  %3962 = vmatpush1.msra.mxu0 %v3961
  %3963 = vmatprep.subr.mxu0 0.0
  %v3964 = vand.u32 %v69, 4294901760
  %v3965 = vsub.f32 %v69, %v3964
  %v3966 = vand.u32 %v3965, 4294901760
  %v3967 = vsub.f32 %v3965, %v3966
  %v3968 = vand.u32 %v3967, 4294901760
  %3969 = vmatpush1.msra.mxu0 %v3968
  %3970 = vmatprep.subr.mxu0 0.0
  %v3971 = vand.u32 %v70, 4294901760
  %v3972 = vsub.f32 %v70, %v3971
  %v3973 = vand.u32 %v3972, 4294901760
  %v3974 = vsub.f32 %v3972, %v3973
  %v3975 = vand.u32 %v3974, 4294901760
  %3976 = vmatpush1.msra.mxu0 %v3975
  %3977 = vmatprep.subr.mxu0 0.0
  %v3978 = vand.u32 %v71, 4294901760
  %v3979 = vsub.f32 %v71, %v3978
  %v3980 = vand.u32 %v3979, 4294901760
  %v3981 = vsub.f32 %v3979, %v3980
  %v3982 = vand.u32 %v3981, 4294901760
  %3983 = vmatpush1.msra.mxu0 %v3982
  %3984 = vmatprep.subr.mxu0 0.0
  %v3985 = vand.u32 %v72, 4294901760
  %v3986 = vsub.f32 %v72, %v3985
  %v3987 = vand.u32 %v3986, 4294901760
  %v3988 = vsub.f32 %v3986, %v3987
  %v3989 = vand.u32 %v3988, 4294901760
  %3990 = vmatpush1.msra.mxu0 %v3989
  %3991 = vmatprep.subr.mxu0 0.0
  %v3992 = vand.u32 %v73, 4294901760
  %v3993 = vsub.f32 %v73, %v3992
  %v3994 = vand.u32 %v3993, 4294901760
  %v3995 = vsub.f32 %v3993, %v3994
  %v3996 = vand.u32 %v3995, 4294901760
  %3997 = vmatpush1.msra.mxu0 %v3996
  %3998 = vmatprep.subr.mxu0 0.0
  %v3999 = vand.u32 %v74, 4294901760
  %v4000 = vsub.f32 %v74, %v3999
  %v4001 = vand.u32 %v4000, 4294901760
  %v4002 = vsub.f32 %v4000, %v4001
  %v4003 = vand.u32 %v4002, 4294901760
  %4004 = vmatpush1.msra.mxu0 %v4003
  %4005 = vmatprep.subr.mxu0 0.0
  %v4006 = vand.u32 %v75, 4294901760
  %v4007 = vsub.f32 %v75, %v4006
  %v4008 = vand.u32 %v4007, 4294901760
  %v4009 = vsub.f32 %v4007, %v4008
  %v4010 = vand.u32 %v4009, 4294901760
  %4011 = vmatpush1.msra.mxu0 %v4010
  %4012 = vmatprep.subr.mxu0 0.0
  %v4013 = vand.u32 %v76, 4294901760
  %v4014 = vsub.f32 %v76, %v4013
  %v4015 = vand.u32 %v4014, 4294901760
  %v4016 = vsub.f32 %v4014, %v4015
  %v4017 = vand.u32 %v4016, 4294901760
  %4018 = vmatpush1.msra.mxu0 %v4017
  %4019 = vmatprep.subr.mxu0 0.0
  %v4020 = vand.u32 %v77, 4294901760
  %v4021 = vsub.f32 %v77, %v4020
  %v4022 = vand.u32 %v4021, 4294901760
  %v4023 = vsub.f32 %v4021, %v4022
  %v4024 = vand.u32 %v4023, 4294901760
  %4025 = vmatpush1.msra.mxu0 %v4024
  %4026 = vmatprep.subr.mxu0 0.0
  %v4027 = vand.u32 %v78, 4294901760
  %v4028 = vsub.f32 %v78, %v4027
  %v4029 = vand.u32 %v4028, 4294901760
  %v4030 = vsub.f32 %v4028, %v4029
  %v4031 = vand.u32 %v4030, 4294901760
  %4032 = vmatpush1.msra.mxu0 %v4031
  %4033 = vmatprep.subr.mxu0 0.0
  %v4034 = vand.u32 %v79, 4294901760
  %v4035 = vsub.f32 %v79, %v4034
  %v4036 = vand.u32 %v4035, 4294901760
  %v4037 = vsub.f32 %v4035, %v4036
  %v4038 = vand.u32 %v4037, 4294901760
  %4039 = vmatpush1.msra.mxu0 %v4038
  %4040 = vmatprep.subr.mxu0 0.0
  %v4041 = vand.u32 %v80, 4294901760
  %v4042 = vsub.f32 %v80, %v4041
  %v4043 = vand.u32 %v4042, 4294901760
  %v4044 = vsub.f32 %v4042, %v4043
  %v4045 = vand.u32 %v4044, 4294901760
  %4046 = vmatpush1.msra.mxu0 %v4045
  %4047 = vmatprep.subr.mxu0 0.0
  %v4048 = vand.u32 %v81, 4294901760
  %v4049 = vsub.f32 %v81, %v4048
  %v4050 = vand.u32 %v4049, 4294901760
  %v4051 = vsub.f32 %v4049, %v4050
  %v4052 = vand.u32 %v4051, 4294901760
  %4053 = vmatpush1.msra.mxu0 %v4052
  %4054 = vmatprep.subr.mxu0 0.0
  %v4055 = vand.u32 %v82, 4294901760
  %v4056 = vsub.f32 %v82, %v4055
  %v4057 = vand.u32 %v4056, 4294901760
  %v4058 = vsub.f32 %v4056, %v4057
  %v4059 = vand.u32 %v4058, 4294901760
  %4060 = vmatpush1.msra.mxu0 %v4059
  %4061 = vmatprep.subr.mxu0 0.0
  %v4062 = vand.u32 %v83, 4294901760
  %v4063 = vsub.f32 %v83, %v4062
  %v4064 = vand.u32 %v4063, 4294901760
  %v4065 = vsub.f32 %v4063, %v4064
  %v4066 = vand.u32 %v4065, 4294901760
  %4067 = vmatpush1.msra.mxu0 %v4066
  %4068 = vmatprep.subr.mxu0 0.0
  %v4069 = vand.u32 %v84, 4294901760
  %v4070 = vsub.f32 %v84, %v4069
  %v4071 = vand.u32 %v4070, 4294901760
  %v4072 = vsub.f32 %v4070, %v4071
  %v4073 = vand.u32 %v4072, 4294901760
  %4074 = vmatpush1.msra.mxu0 %v4073
  %v4075 = vand.u32 %v2872, 4294901760
  %4076 = vmatprep.mubr.f32.mxu0 %v4075
  %v4077 = vand.u32 %v2868, 4294901760
  %4078 = vmatmul.mubr.f32.gmra.mrb[0].mxu0 %v4077
  %v4079 = vpop.f32.mrb[0].mxu0
  %v4080 = vadd.f32 %v3848, %v4079
  %v4081 = vpop.f32.mrb[0].mxu0
  %4082 = vdwg.mxu0
  %4083 = vmatprep.subr.mxu0 0.0
  %v4084 = vand.u32 %v53, 4294901760
  %v4085 = vsub.f32 %v53, %v4084
  %4086 = vmatpush1.msra.mxu0 %v4085
  %4087 = vmatprep.subr.mxu0 0.0
  %v4088 = vand.u32 %v54, 4294901760
  %v4089 = vsub.f32 %v54, %v4088
  %4090 = vmatpush1.msra.mxu0 %v4089
  %4091 = vmatprep.subr.mxu0 0.0
  %v4092 = vand.u32 %v55, 4294901760
  %v4093 = vsub.f32 %v55, %v4092
  %4094 = vmatpush1.msra.mxu0 %v4093
  %4095 = vmatprep.subr.mxu0 0.0
  %v4096 = vand.u32 %v56, 4294901760
  %v4097 = vsub.f32 %v56, %v4096
  %4098 = vmatpush1.msra.mxu0 %v4097
  %4099 = vmatprep.subr.mxu0 0.0
  %v4100 = vand.u32 %v57, 4294901760
  %v4101 = vsub.f32 %v57, %v4100
  %4102 = vmatpush1.msra.mxu0 %v4101
  %4103 = vmatprep.subr.mxu0 0.0
  %v4104 = vand.u32 %v58, 4294901760
  %v4105 = vsub.f32 %v58, %v4104
  %4106 = vmatpush1.msra.mxu0 %v4105
  %4107 = vmatprep.subr.mxu0 0.0
  %v4108 = vand.u32 %v59, 4294901760
  %v4109 = vsub.f32 %v59, %v4108
  %4110 = vmatpush1.msra.mxu0 %v4109
  %4111 = vmatprep.subr.mxu0 0.0
  %v4112 = vand.u32 %v60, 4294901760
  %v4113 = vsub.f32 %v60, %v4112
  %4114 = vmatpush1.msra.mxu0 %v4113
  %4115 = vmatprep.subr.mxu0 0.0
  %v4116 = vand.u32 %v61, 4294901760
  %v4117 = vsub.f32 %v61, %v4116
  %4118 = vmatpush1.msra.mxu0 %v4117
  %4119 = vmatprep.subr.mxu0 0.0
  %v4120 = vand.u32 %v62, 4294901760
  %v4121 = vsub.f32 %v62, %v4120
  %4122 = vmatpush1.msra.mxu0 %v4121
  %4123 = vmatprep.subr.mxu0 0.0
  %v4124 = vand.u32 %v63, 4294901760
  %v4125 = vsub.f32 %v63, %v4124
  %4126 = vmatpush1.msra.mxu0 %v4125
  %4127 = vmatprep.subr.mxu0 0.0
  %v4128 = vand.u32 %v64, 4294901760
  %v4129 = vsub.f32 %v64, %v4128
  %4130 = vmatpush1.msra.mxu0 %v4129
  %4131 = vmatprep.subr.mxu0 0.0
  %v4132 = vand.u32 %v65, 4294901760
  %v4133 = vsub.f32 %v65, %v4132
  %4134 = vmatpush1.msra.mxu0 %v4133
  %4135 = vmatprep.subr.mxu0 0.0
  %v4136 = vand.u32 %v66, 4294901760
  %v4137 = vsub.f32 %v66, %v4136
  %4138 = vmatpush1.msra.mxu0 %v4137
  %4139 = vmatprep.subr.mxu0 0.0
  %v4140 = vand.u32 %v67, 4294901760
  %v4141 = vsub.f32 %v67, %v4140
  %4142 = vmatpush1.msra.mxu0 %v4141
  %4143 = vmatprep.subr.mxu0 0.0
  %v4144 = vand.u32 %v68, 4294901760
  %v4145 = vsub.f32 %v68, %v4144
  %4146 = vmatpush1.msra.mxu0 %v4145
  %4147 = vmatprep.subr.mxu0 0.0
  %v4148 = vand.u32 %v69, 4294901760
  %v4149 = vsub.f32 %v69, %v4148
  %4150 = vmatpush1.msra.mxu0 %v4149
  %4151 = vmatprep.subr.mxu0 0.0
  %v4152 = vand.u32 %v70, 4294901760
  %v4153 = vsub.f32 %v70, %v4152
  %4154 = vmatpush1.msra.mxu0 %v4153
  %4155 = vmatprep.subr.mxu0 0.0
  %v4156 = vand.u32 %v71, 4294901760
  %v4157 = vsub.f32 %v71, %v4156
  %4158 = vmatpush1.msra.mxu0 %v4157
  %4159 = vmatprep.subr.mxu0 0.0
  %v4160 = vand.u32 %v72, 4294901760
  %v4161 = vsub.f32 %v72, %v4160
  %4162 = vmatpush1.msra.mxu0 %v4161
  %4163 = vmatprep.subr.mxu0 0.0
  %v4164 = vand.u32 %v73, 4294901760
  %v4165 = vsub.f32 %v73, %v4164
  %4166 = vmatpush1.msra.mxu0 %v4165
  %4167 = vmatprep.subr.mxu0 0.0
  %v4168 = vand.u32 %v74, 4294901760
  %v4169 = vsub.f32 %v74, %v4168
  %4170 = vmatpush1.msra.mxu0 %v4169
  %4171 = vmatprep.subr.mxu0 0.0
  %v4172 = vand.u32 %v75, 4294901760
  %v4173 = vsub.f32 %v75, %v4172
  %4174 = vmatpush1.msra.mxu0 %v4173
  %4175 = vmatprep.subr.mxu0 0.0
  %v4176 = vand.u32 %v76, 4294901760
  %v4177 = vsub.f32 %v76, %v4176
  %4178 = vmatpush1.msra.mxu0 %v4177
  %4179 = vmatprep.subr.mxu0 0.0
  %v4180 = vand.u32 %v77, 4294901760
  %v4181 = vsub.f32 %v77, %v4180
  %4182 = vmatpush1.msra.mxu0 %v4181
  %4183 = vmatprep.subr.mxu0 0.0
  %v4184 = vand.u32 %v78, 4294901760
  %v4185 = vsub.f32 %v78, %v4184
  %4186 = vmatpush1.msra.mxu0 %v4185
  %4187 = vmatprep.subr.mxu0 0.0
  %v4188 = vand.u32 %v79, 4294901760
  %v4189 = vsub.f32 %v79, %v4188
  %4190 = vmatpush1.msra.mxu0 %v4189
  %4191 = vmatprep.subr.mxu0 0.0
  %v4192 = vand.u32 %v80, 4294901760
  %v4193 = vsub.f32 %v80, %v4192
  %4194 = vmatpush1.msra.mxu0 %v4193
  %4195 = vmatprep.subr.mxu0 0.0
  %v4196 = vand.u32 %v81, 4294901760
  %v4197 = vsub.f32 %v81, %v4196
  %4198 = vmatpush1.msra.mxu0 %v4197
  %4199 = vmatprep.subr.mxu0 0.0
  %v4200 = vand.u32 %v82, 4294901760
  %v4201 = vsub.f32 %v82, %v4200
  %4202 = vmatpush1.msra.mxu0 %v4201
  %4203 = vmatprep.subr.mxu0 0.0
  %v4204 = vand.u32 %v83, 4294901760
  %v4205 = vsub.f32 %v83, %v4204
  %4206 = vmatpush1.msra.mxu0 %v4205
  %4207 = vmatprep.subr.mxu0 0.0
  %v4208 = vand.u32 %v84, 4294901760
  %v4209 = vsub.f32 %v84, %v4208
  %4210 = vmatpush1.msra.mxu0 %v4209
  %v4211 = vand.u32 %v2872, 4294901760
  %v4212 = vsub.f32 %v2872, %v4211
  %4213 = vmatprep.mubr.f32.mxu0 %v4212
  %v4214 = vand.u32 %v2868, 4294901760
  %v4215 = vsub.f32 %v2868, %v4214
  %4216 = vmatmul.mubr.f32.gmra.mrb[0].mxu0 %v4215
  %v4217 = vpop.f32.mrb[0].mxu0
  %v4218 = vadd.f32 %v4080, %v4217
  %v4219 = vpop.f32.mrb[0].mxu0
  %4220 = vdwg.mxu0
  %4221 = vmatprep.subr.mxu0 0.0
  %v4222 = vand.u32 %v53, 4294901760
  %4223 = vmatpush1.msra.mxu0 %v4222
  %4224 = vmatprep.subr.mxu0 0.0
  %v4225 = vand.u32 %v54, 4294901760
  %4226 = vmatpush1.msra.mxu0 %v4225
  %4227 = vmatprep.subr.mxu0 0.0
  %v4228 = vand.u32 %v55, 4294901760
  %4229 = vmatpush1.msra.mxu0 %v4228
  %4230 = vmatprep.subr.mxu0 0.0
  %v4231 = vand.u32 %v56, 4294901760
  %4232 = vmatpush1.msra.mxu0 %v4231
  %4233 = vmatprep.subr.mxu0 0.0
  %v4234 = vand.u32 %v57, 4294901760
  %4235 = vmatpush1.msra.mxu0 %v4234
  %4236 = vmatprep.subr.mxu0 0.0
  %v4237 = vand.u32 %v58, 4294901760
  %4238 = vmatpush1.msra.mxu0 %v4237
  %4239 = vmatprep.subr.mxu0 0.0
  %v4240 = vand.u32 %v59, 4294901760
  %4241 = vmatpush1.msra.mxu0 %v4240
  %4242 = vmatprep.subr.mxu0 0.0
  %v4243 = vand.u32 %v60, 4294901760
  %4244 = vmatpush1.msra.mxu0 %v4243
  %4245 = vmatprep.subr.mxu0 0.0
  %v4246 = vand.u32 %v61, 4294901760
  %4247 = vmatpush1.msra.mxu0 %v4246
  %4248 = vmatprep.subr.mxu0 0.0
  %v4249 = vand.u32 %v62, 4294901760
  %4250 = vmatpush1.msra.mxu0 %v4249
  %4251 = vmatprep.subr.mxu0 0.0
  %v4252 = vand.u32 %v63, 4294901760
  %4253 = vmatpush1.msra.mxu0 %v4252
  %4254 = vmatprep.subr.mxu0 0.0
  %v4255 = vand.u32 %v64, 4294901760
  %4256 = vmatpush1.msra.mxu0 %v4255
  %4257 = vmatprep.subr.mxu0 0.0
  %v4258 = vand.u32 %v65, 4294901760
  %4259 = vmatpush1.msra.mxu0 %v4258
  %4260 = vmatprep.subr.mxu0 0.0
  %v4261 = vand.u32 %v66, 4294901760
  %4262 = vmatpush1.msra.mxu0 %v4261
  %4263 = vmatprep.subr.mxu0 0.0
  %v4264 = vand.u32 %v67, 4294901760
  %4265 = vmatpush1.msra.mxu0 %v4264
  %4266 = vmatprep.subr.mxu0 0.0
  %v4267 = vand.u32 %v68, 4294901760
  %4268 = vmatpush1.msra.mxu0 %v4267
  %4269 = vmatprep.subr.mxu0 0.0
  %v4270 = vand.u32 %v69, 4294901760
  %4271 = vmatpush1.msra.mxu0 %v4270
  %4272 = vmatprep.subr.mxu0 0.0
  %v4273 = vand.u32 %v70, 4294901760
  %4274 = vmatpush1.msra.mxu0 %v4273
  %4275 = vmatprep.subr.mxu0 0.0
  %v4276 = vand.u32 %v71, 4294901760
  %4277 = vmatpush1.msra.mxu0 %v4276
  %4278 = vmatprep.subr.mxu0 0.0
  %v4279 = vand.u32 %v72, 4294901760
  %4280 = vmatpush1.msra.mxu0 %v4279
  %4281 = vmatprep.subr.mxu0 0.0
  %v4282 = vand.u32 %v73, 4294901760
  %4283 = vmatpush1.msra.mxu0 %v4282
  %4284 = vmatprep.subr.mxu0 0.0
  %v4285 = vand.u32 %v74, 4294901760
  %4286 = vmatpush1.msra.mxu0 %v4285
  %4287 = vmatprep.subr.mxu0 0.0
  %v4288 = vand.u32 %v75, 4294901760
  %4289 = vmatpush1.msra.mxu0 %v4288
  %4290 = vmatprep.subr.mxu0 0.0
  %v4291 = vand.u32 %v76, 4294901760
  %4292 = vmatpush1.msra.mxu0 %v4291
  %4293 = vmatprep.subr.mxu0 0.0
  %v4294 = vand.u32 %v77, 4294901760
  %4295 = vmatpush1.msra.mxu0 %v4294
  %4296 = vmatprep.subr.mxu0 0.0
  %v4297 = vand.u32 %v78, 4294901760
  %4298 = vmatpush1.msra.mxu0 %v4297
  %4299 = vmatprep.subr.mxu0 0.0
  %v4300 = vand.u32 %v79, 4294901760
  %4301 = vmatpush1.msra.mxu0 %v4300
  %4302 = vmatprep.subr.mxu0 0.0
  %v4303 = vand.u32 %v80, 4294901760
  %4304 = vmatpush1.msra.mxu0 %v4303
  %4305 = vmatprep.subr.mxu0 0.0
  %v4306 = vand.u32 %v81, 4294901760
  %4307 = vmatpush1.msra.mxu0 %v4306
  %4308 = vmatprep.subr.mxu0 0.0
  %v4309 = vand.u32 %v82, 4294901760
  %4310 = vmatpush1.msra.mxu0 %v4309
  %4311 = vmatprep.subr.mxu0 0.0
  %v4312 = vand.u32 %v83, 4294901760
  %4313 = vmatpush1.msra.mxu0 %v4312
  %4314 = vmatprep.subr.mxu0 0.0
  %v4315 = vand.u32 %v84, 4294901760
  %4316 = vmatpush1.msra.mxu0 %v4315
  %v4317 = vand.u32 %v2872, 4294901760
  %v4318 = vsub.f32 %v2872, %v4317
  %v4319 = vand.u32 %v4318, 4294901760
  %4320 = vmatprep.mubr.f32.mxu0 %v4319
  %v4321 = vand.u32 %v2868, 4294901760
  %v4322 = vsub.f32 %v2868, %v4321
  %v4323 = vand.u32 %v4322, 4294901760
  %4324 = vmatmul.mubr.f32.gmra.mrb[0].mxu0 %v4323
  %v4325 = vpop.f32.mrb[0].mxu0
  %v4326 = vadd.f32 %v4218, %v4325
  %v4327 = vpop.f32.mrb[0].mxu0
  %4328 = vdwg.mxu0
  %4329 = vmatprep.subr.mxu0 0.0
  %v4330 = vand.u32 %v53, 4294901760
  %v4331 = vsub.f32 %v53, %v4330
  %v4332 = vand.u32 %v4331, 4294901760
  %4333 = vmatpush1.msra.mxu0 %v4332
  %4334 = vmatprep.subr.mxu0 0.0
  %v4335 = vand.u32 %v54, 4294901760
  %v4336 = vsub.f32 %v54, %v4335
  %v4337 = vand.u32 %v4336, 4294901760
  %4338 = vmatpush1.msra.mxu0 %v4337
  %4339 = vmatprep.subr.mxu0 0.0
  %v4340 = vand.u32 %v55, 4294901760
  %v4341 = vsub.f32 %v55, %v4340
  %v4342 = vand.u32 %v4341, 4294901760
  %4343 = vmatpush1.msra.mxu0 %v4342
  %4344 = vmatprep.subr.mxu0 0.0
  %v4345 = vand.u32 %v56, 4294901760
  %v4346 = vsub.f32 %v56, %v4345
  %v4347 = vand.u32 %v4346, 4294901760
  %4348 = vmatpush1.msra.mxu0 %v4347
  %4349 = vmatprep.subr.mxu0 0.0
  %v4350 = vand.u32 %v57, 4294901760
  %v4351 = vsub.f32 %v57, %v4350
  %v4352 = vand.u32 %v4351, 4294901760
  %4353 = vmatpush1.msra.mxu0 %v4352
  %4354 = vmatprep.subr.mxu0 0.0
  %v4355 = vand.u32 %v58, 4294901760
  %v4356 = vsub.f32 %v58, %v4355
  %v4357 = vand.u32 %v4356, 4294901760
  %4358 = vmatpush1.msra.mxu0 %v4357
  %4359 = vmatprep.subr.mxu0 0.0
  %v4360 = vand.u32 %v59, 4294901760
  %v4361 = vsub.f32 %v59, %v4360
  %v4362 = vand.u32 %v4361, 4294901760
  %4363 = vmatpush1.msra.mxu0 %v4362
  %4364 = vmatprep.subr.mxu0 0.0
  %v4365 = vand.u32 %v60, 4294901760
  %v4366 = vsub.f32 %v60, %v4365
  %v4367 = vand.u32 %v4366, 4294901760
  %4368 = vmatpush1.msra.mxu0 %v4367
  %4369 = vmatprep.subr.mxu0 0.0
  %v4370 = vand.u32 %v61, 4294901760
  %v4371 = vsub.f32 %v61, %v4370
  %v4372 = vand.u32 %v4371, 4294901760
  %4373 = vmatpush1.msra.mxu0 %v4372
  %4374 = vmatprep.subr.mxu0 0.0
  %v4375 = vand.u32 %v62, 4294901760
  %v4376 = vsub.f32 %v62, %v4375
  %v4377 = vand.u32 %v4376, 4294901760
  %4378 = vmatpush1.msra.mxu0 %v4377
  %4379 = vmatprep.subr.mxu0 0.0
  %v4380 = vand.u32 %v63, 4294901760
  %v4381 = vsub.f32 %v63, %v4380
  %v4382 = vand.u32 %v4381, 4294901760
  %4383 = vmatpush1.msra.mxu0 %v4382
  %4384 = vmatprep.subr.mxu0 0.0
  %v4385 = vand.u32 %v64, 4294901760
  %v4386 = vsub.f32 %v64, %v4385
  %v4387 = vand.u32 %v4386, 4294901760
  %4388 = vmatpush1.msra.mxu0 %v4387
  %4389 = vmatprep.subr.mxu0 0.0
  %v4390 = vand.u32 %v65, 4294901760
  %v4391 = vsub.f32 %v65, %v4390
  %v4392 = vand.u32 %v4391, 4294901760
  %4393 = vmatpush1.msra.mxu0 %v4392
  %4394 = vmatprep.subr.mxu0 0.0
  %v4395 = vand.u32 %v66, 4294901760
  %v4396 = vsub.f32 %v66, %v4395
  %v4397 = vand.u32 %v4396, 4294901760
  %4398 = vmatpush1.msra.mxu0 %v4397
  %4399 = vmatprep.subr.mxu0 0.0
  %v4400 = vand.u32 %v67, 4294901760
  %v4401 = vsub.f32 %v67, %v4400
  %v4402 = vand.u32 %v4401, 4294901760
  %4403 = vmatpush1.msra.mxu0 %v4402
  %4404 = vmatprep.subr.mxu0 0.0
  %v4405 = vand.u32 %v68, 4294901760
  %v4406 = vsub.f32 %v68, %v4405
  %v4407 = vand.u32 %v4406, 4294901760
  %4408 = vmatpush1.msra.mxu0 %v4407
  %4409 = vmatprep.subr.mxu0 0.0
  %v4410 = vand.u32 %v69, 4294901760
  %v4411 = vsub.f32 %v69, %v4410
  %v4412 = vand.u32 %v4411, 4294901760
  %4413 = vmatpush1.msra.mxu0 %v4412
  %4414 = vmatprep.subr.mxu0 0.0
  %v4415 = vand.u32 %v70, 4294901760
  %v4416 = vsub.f32 %v70, %v4415
  %v4417 = vand.u32 %v4416, 4294901760
  %4418 = vmatpush1.msra.mxu0 %v4417
  %4419 = vmatprep.subr.mxu0 0.0
  %v4420 = vand.u32 %v71, 4294901760
  %v4421 = vsub.f32 %v71, %v4420
  %v4422 = vand.u32 %v4421, 4294901760
  %4423 = vmatpush1.msra.mxu0 %v4422
  %4424 = vmatprep.subr.mxu0 0.0
  %v4425 = vand.u32 %v72, 4294901760
  %v4426 = vsub.f32 %v72, %v4425
  %v4427 = vand.u32 %v4426, 4294901760
  %4428 = vmatpush1.msra.mxu0 %v4427
  %4429 = vmatprep.subr.mxu0 0.0
  %v4430 = vand.u32 %v73, 4294901760
  %v4431 = vsub.f32 %v73, %v4430
  %v4432 = vand.u32 %v4431, 4294901760
  %4433 = vmatpush1.msra.mxu0 %v4432
  %4434 = vmatprep.subr.mxu0 0.0
  %v4435 = vand.u32 %v74, 4294901760
  %v4436 = vsub.f32 %v74, %v4435
  %v4437 = vand.u32 %v4436, 4294901760
  %4438 = vmatpush1.msra.mxu0 %v4437
  %4439 = vmatprep.subr.mxu0 0.0
  %v4440 = vand.u32 %v75, 4294901760
  %v4441 = vsub.f32 %v75, %v4440
  %v4442 = vand.u32 %v4441, 4294901760
  %4443 = vmatpush1.msra.mxu0 %v4442
  %4444 = vmatprep.subr.mxu0 0.0
  %v4445 = vand.u32 %v76, 4294901760
  %v4446 = vsub.f32 %v76, %v4445
  %v4447 = vand.u32 %v4446, 4294901760
  %4448 = vmatpush1.msra.mxu0 %v4447
  %4449 = vmatprep.subr.mxu0 0.0
  %v4450 = vand.u32 %v77, 4294901760
  %v4451 = vsub.f32 %v77, %v4450
  %v4452 = vand.u32 %v4451, 4294901760
  %4453 = vmatpush1.msra.mxu0 %v4452
  %4454 = vmatprep.subr.mxu0 0.0
  %v4455 = vand.u32 %v78, 4294901760
  %v4456 = vsub.f32 %v78, %v4455
  %v4457 = vand.u32 %v4456, 4294901760
  %4458 = vmatpush1.msra.mxu0 %v4457
  %4459 = vmatprep.subr.mxu0 0.0
  %v4460 = vand.u32 %v79, 4294901760
  %v4461 = vsub.f32 %v79, %v4460
  %v4462 = vand.u32 %v4461, 4294901760
  %4463 = vmatpush1.msra.mxu0 %v4462
  %4464 = vmatprep.subr.mxu0 0.0
  %v4465 = vand.u32 %v80, 4294901760
  %v4466 = vsub.f32 %v80, %v4465
  %v4467 = vand.u32 %v4466, 4294901760
  %4468 = vmatpush1.msra.mxu0 %v4467
  %4469 = vmatprep.subr.mxu0 0.0
  %v4470 = vand.u32 %v81, 4294901760
  %v4471 = vsub.f32 %v81, %v4470
  %v4472 = vand.u32 %v4471, 4294901760
  %4473 = vmatpush1.msra.mxu0 %v4472
  %4474 = vmatprep.subr.mxu0 0.0
  %v4475 = vand.u32 %v82, 4294901760
  %v4476 = vsub.f32 %v82, %v4475
  %v4477 = vand.u32 %v4476, 4294901760
  %4478 = vmatpush1.msra.mxu0 %v4477
  %4479 = vmatprep.subr.mxu0 0.0
  %v4480 = vand.u32 %v83, 4294901760
  %v4481 = vsub.f32 %v83, %v4480
  %v4482 = vand.u32 %v4481, 4294901760
  %4483 = vmatpush1.msra.mxu0 %v4482
  %4484 = vmatprep.subr.mxu0 0.0
  %v4485 = vand.u32 %v84, 4294901760
  %v4486 = vsub.f32 %v84, %v4485
  %v4487 = vand.u32 %v4486, 4294901760
  %4488 = vmatpush1.msra.mxu0 %v4487
  %v4489 = vand.u32 %v2872, 4294901760
  %4490 = vmatprep.mubr.f32.mxu0 %v4489
  %v4491 = vand.u32 %v2868, 4294901760
  %4492 = vmatmul.mubr.f32.gmra.mrb[0].mxu0 %v4491
  %v4493 = vpop.f32.mrb[0].mxu0
  %v4494 = vadd.f32 %v4326, %v4493
  %v4495 = vpop.f32.mrb[0].mxu0
  %4496 = vdwg.mxu0
  %4497 = vmatprep.subr.mxu0 0.0
  %v4498 = vand.u32 %v53, 4294901760
  %4499 = vmatpush1.msra.mxu0 %v4498
  %4500 = vmatprep.subr.mxu0 0.0
  %v4501 = vand.u32 %v54, 4294901760
  %4502 = vmatpush1.msra.mxu0 %v4501
  %4503 = vmatprep.subr.mxu0 0.0
  %v4504 = vand.u32 %v55, 4294901760
  %4505 = vmatpush1.msra.mxu0 %v4504
  %4506 = vmatprep.subr.mxu0 0.0
  %v4507 = vand.u32 %v56, 4294901760
  %4508 = vmatpush1.msra.mxu0 %v4507
  %4509 = vmatprep.subr.mxu0 0.0
  %v4510 = vand.u32 %v57, 4294901760
  %4511 = vmatpush1.msra.mxu0 %v4510
  %4512 = vmatprep.subr.mxu0 0.0
  %v4513 = vand.u32 %v58, 4294901760
  %4514 = vmatpush1.msra.mxu0 %v4513
  %4515 = vmatprep.subr.mxu0 0.0
  %v4516 = vand.u32 %v59, 4294901760
  %4517 = vmatpush1.msra.mxu0 %v4516
  %4518 = vmatprep.subr.mxu0 0.0
  %v4519 = vand.u32 %v60, 4294901760
  %4520 = vmatpush1.msra.mxu0 %v4519
  %4521 = vmatprep.subr.mxu0 0.0
  %v4522 = vand.u32 %v61, 4294901760
  %4523 = vmatpush1.msra.mxu0 %v4522
  %4524 = vmatprep.subr.mxu0 0.0
  %v4525 = vand.u32 %v62, 4294901760
  %4526 = vmatpush1.msra.mxu0 %v4525
  %4527 = vmatprep.subr.mxu0 0.0
  %v4528 = vand.u32 %v63, 4294901760
  %4529 = vmatpush1.msra.mxu0 %v4528
  %4530 = vmatprep.subr.mxu0 0.0
  %v4531 = vand.u32 %v64, 4294901760
  %4532 = vmatpush1.msra.mxu0 %v4531
  %4533 = vmatprep.subr.mxu0 0.0
  %v4534 = vand.u32 %v65, 4294901760
  %4535 = vmatpush1.msra.mxu0 %v4534
  %4536 = vmatprep.subr.mxu0 0.0
  %v4537 = vand.u32 %v66, 4294901760
  %4538 = vmatpush1.msra.mxu0 %v4537
  %4539 = vmatprep.subr.mxu0 0.0
  %v4540 = vand.u32 %v67, 4294901760
  %4541 = vmatpush1.msra.mxu0 %v4540
  %4542 = vmatprep.subr.mxu0 0.0
  %v4543 = vand.u32 %v68, 4294901760
  %4544 = vmatpush1.msra.mxu0 %v4543
  %4545 = vmatprep.subr.mxu0 0.0
  %v4546 = vand.u32 %v69, 4294901760
  %4547 = vmatpush1.msra.mxu0 %v4546
  %4548 = vmatprep.subr.mxu0 0.0
  %v4549 = vand.u32 %v70, 4294901760
  %4550 = vmatpush1.msra.mxu0 %v4549
  %4551 = vmatprep.subr.mxu0 0.0
  %v4552 = vand.u32 %v71, 4294901760
  %4553 = vmatpush1.msra.mxu0 %v4552
  %4554 = vmatprep.subr.mxu0 0.0
  %v4555 = vand.u32 %v72, 4294901760
  %4556 = vmatpush1.msra.mxu0 %v4555
  %4557 = vmatprep.subr.mxu0 0.0
  %v4558 = vand.u32 %v73, 4294901760
  %4559 = vmatpush1.msra.mxu0 %v4558
  %4560 = vmatprep.subr.mxu0 0.0
  %v4561 = vand.u32 %v74, 4294901760
  %4562 = vmatpush1.msra.mxu0 %v4561
  %4563 = vmatprep.subr.mxu0 0.0
  %v4564 = vand.u32 %v75, 4294901760
  %4565 = vmatpush1.msra.mxu0 %v4564
  %4566 = vmatprep.subr.mxu0 0.0
  %v4567 = vand.u32 %v76, 4294901760
  %4568 = vmatpush1.msra.mxu0 %v4567
  %4569 = vmatprep.subr.mxu0 0.0
  %v4570 = vand.u32 %v77, 4294901760
  %4571 = vmatpush1.msra.mxu0 %v4570
  %4572 = vmatprep.subr.mxu0 0.0
  %v4573 = vand.u32 %v78, 4294901760
  %4574 = vmatpush1.msra.mxu0 %v4573
  %4575 = vmatprep.subr.mxu0 0.0
  %v4576 = vand.u32 %v79, 4294901760
  %4577 = vmatpush1.msra.mxu0 %v4576
  %4578 = vmatprep.subr.mxu0 0.0
  %v4579 = vand.u32 %v80, 4294901760
  %4580 = vmatpush1.msra.mxu0 %v4579
  %4581 = vmatprep.subr.mxu0 0.0
  %v4582 = vand.u32 %v81, 4294901760
  %4583 = vmatpush1.msra.mxu0 %v4582
  %4584 = vmatprep.subr.mxu0 0.0
  %v4585 = vand.u32 %v82, 4294901760
  %4586 = vmatpush1.msra.mxu0 %v4585
  %4587 = vmatprep.subr.mxu0 0.0
  %v4588 = vand.u32 %v83, 4294901760
  %4589 = vmatpush1.msra.mxu0 %v4588
  %4590 = vmatprep.subr.mxu0 0.0
  %v4591 = vand.u32 %v84, 4294901760
  %4592 = vmatpush1.msra.mxu0 %v4591
  %v4593 = vand.u32 %v2872, 4294901760
  %4594 = vmatprep.mubr.f32.mxu0 %v4593
  %v4595 = vand.u32 %v2868, 4294901760
  %4596 = vmatmul.mubr.f32.gmra.mrb[0].mxu0 %v4595
  %v4597 = vpop.f32.mrb[0].mxu0
  %v4598 = vadd.f32 %v4494, %v4597
  %v4599 = vpop.f32.mrb[0].mxu0
  %4600 = vdwg.mxu0
  %v4601 = vmul.f32 %v4598, 0.03125
  %v4602 = vadd.f32 %v4601, 1e-05
  %v4603 = vrsqrt.pop %v4602
  %v4605 = vsel %vm1839, %v4603, 0
  %v4607 = vand.u32 %v1832, 4294901760
  %4608 = vmatprep.subr.mxu0 %v4607
  %v4609 = vand.u32 %v1831, 4294901760
  %4610 = vmatpush1.msra.mxu0 %v4609
  %v4611 = vand.u32 %v1836, 4294901760
  %4612 = vmatprep.subr.mxu0 %v4611
  %v4613 = vand.u32 %v1835, 4294901760
  %4614 = vmatpush1.msra.mxu0 %v4613
  %4615 = vmatprep.subr.mxu0 0.0
  %4616 = vmatpush1.msra.mxu0 0.0
  %4617 = vmatprep.subr.mxu0 0.0
  %4618 = vmatpush1.msra.mxu0 0.0
  %4619 = vmatprep.subr.mxu0 0.0
  %4620 = vmatpush1.msra.mxu0 0.0
  %4621 = vmatprep.subr.mxu0 0.0
  %4622 = vmatpush1.msra.mxu0 0.0
  %4623 = vmatprep.subr.mxu0 0.0
  %4624 = vmatpush1.msra.mxu0 0.0
  %4625 = vmatprep.subr.mxu0 0.0
  %4626 = vmatpush1.msra.mxu0 0.0
  %4627 = vmatprep.subr.mxu0 0.0
  %4628 = vmatpush1.msra.mxu0 0.0
  %4629 = vmatprep.subr.mxu0 0.0
  %4630 = vmatpush1.msra.mxu0 0.0
  %4631 = vmatprep.subr.mxu0 0.0
  %4632 = vmatpush1.msra.mxu0 0.0
  %4633 = vmatprep.subr.mxu0 0.0
  %4634 = vmatpush1.msra.mxu0 0.0
  %4635 = vmatprep.subr.mxu0 0.0
  %4636 = vmatpush1.msra.mxu0 0.0
  %4637 = vmatprep.subr.mxu0 0.0
  %4638 = vmatpush1.msra.mxu0 0.0
  %4639 = vmatprep.subr.mxu0 0.0
  %4640 = vmatpush1.msra.mxu0 0.0
  %4641 = vmatprep.subr.mxu0 0.0
  %4642 = vmatpush1.msra.mxu0 0.0
  %4643 = vmatprep.subr.mxu0 0.0
  %4644 = vmatpush1.msra.mxu0 0.0
  %4645 = vmatprep.subr.mxu0 0.0
  %4646 = vmatpush1.msra.mxu0 0.0
  %4647 = vmatprep.subr.mxu0 0.0
  %4648 = vmatpush1.msra.mxu0 0.0
  %4649 = vmatprep.subr.mxu0 0.0
  %4650 = vmatpush1.msra.mxu0 0.0
  %4651 = vmatprep.subr.mxu0 0.0
  %4652 = vmatpush1.msra.mxu0 0.0
  %4653 = vmatprep.subr.mxu0 0.0
  %4654 = vmatpush1.msra.mxu0 0.0
  %4655 = vmatprep.subr.mxu0 0.0
  %4656 = vmatpush1.msra.mxu0 0.0
  %4657 = vmatprep.subr.mxu0 0.0
  %4658 = vmatpush1.msra.mxu0 0.0
  %4659 = vmatprep.subr.mxu0 0.0
  %4660 = vmatpush1.msra.mxu0 0.0
  %4661 = vmatprep.subr.mxu0 0.0
  %4662 = vmatpush1.msra.mxu0 0.0
  %4663 = vmatprep.subr.mxu0 0.0
  %4664 = vmatpush1.msra.mxu0 0.0
  %4665 = vmatprep.subr.mxu0 0.0
  %4666 = vmatpush1.msra.mxu0 0.0
  %4667 = vmatprep.subr.mxu0 0.0
  %4668 = vmatpush1.msra.mxu0 0.0
  %4669 = vmatprep.subr.mxu0 0.0
  %4670 = vmatpush1.msra.mxu0 0.0
  %4671 = vmatprep.subr.mxu0 0.0
  %4672 = vmatpush1.msra.mxu0 0.0
  %4673 = vmatprep.subr.mxu0 0.0
  %4674 = vmatpush1.msra.mxu0 0.0
  %4675 = vmatprep.mubr.f32.mxu0 0.0
  %v4676 = vand.u32 %v4605, 4294901760
  %v4677 = vsub.f32 %v4605, %v4676
  %v4678 = vand.u32 %v4677, 4294901760
  %v4679 = vsub.f32 %v4677, %v4678
  %v4680 = vand.u32 %v4679, 4294901760
  %4681 = vmatmul.mubr.f32.gmra.mrb[0].mxu0 %v4680
  %v4682 = vpop.f32.mrb[0].mxu0
  %v4683 = vadd.f32 0.0, %v4682
  %v4684 = vpop.f32.mrb[0].mxu0
  %v4685 = vadd.f32 0.0, %v4684
  %4686 = vdwg.mxu0
  %v4687 = vand.u32 %v1832, 4294901760
  %v4688 = vsub.f32 %v1832, %v4687
  %v4689 = vand.u32 %v4688, 4294901760
  %v4690 = vsub.f32 %v4688, %v4689
  %v4691 = vand.u32 %v4690, 4294901760
  %4692 = vmatprep.subr.mxu0 %v4691
  %v4693 = vand.u32 %v1831, 4294901760
  %v4694 = vsub.f32 %v1831, %v4693
  %v4695 = vand.u32 %v4694, 4294901760
  %v4696 = vsub.f32 %v4694, %v4695
  %v4697 = vand.u32 %v4696, 4294901760
  %4698 = vmatpush1.msra.mxu0 %v4697
  %v4699 = vand.u32 %v1836, 4294901760
  %v4700 = vsub.f32 %v1836, %v4699
  %v4701 = vand.u32 %v4700, 4294901760
  %v4702 = vsub.f32 %v4700, %v4701
  %v4703 = vand.u32 %v4702, 4294901760
  %4704 = vmatprep.subr.mxu0 %v4703
  %v4705 = vand.u32 %v1835, 4294901760
  %v4706 = vsub.f32 %v1835, %v4705
  %v4707 = vand.u32 %v4706, 4294901760
  %v4708 = vsub.f32 %v4706, %v4707
  %v4709 = vand.u32 %v4708, 4294901760
  %4710 = vmatpush1.msra.mxu0 %v4709
  %4711 = vmatprep.subr.mxu0 0.0
  %4712 = vmatpush1.msra.mxu0 0.0
  %4713 = vmatprep.subr.mxu0 0.0
  %4714 = vmatpush1.msra.mxu0 0.0
  %4715 = vmatprep.subr.mxu0 0.0
  %4716 = vmatpush1.msra.mxu0 0.0
  %4717 = vmatprep.subr.mxu0 0.0
  %4718 = vmatpush1.msra.mxu0 0.0
  %4719 = vmatprep.subr.mxu0 0.0
  %4720 = vmatpush1.msra.mxu0 0.0
  %4721 = vmatprep.subr.mxu0 0.0
  %4722 = vmatpush1.msra.mxu0 0.0
  %4723 = vmatprep.subr.mxu0 0.0
  %4724 = vmatpush1.msra.mxu0 0.0
  %4725 = vmatprep.subr.mxu0 0.0
  %4726 = vmatpush1.msra.mxu0 0.0
  %4727 = vmatprep.subr.mxu0 0.0
  %4728 = vmatpush1.msra.mxu0 0.0
  %4729 = vmatprep.subr.mxu0 0.0
  %4730 = vmatpush1.msra.mxu0 0.0
  %4731 = vmatprep.subr.mxu0 0.0
  %4732 = vmatpush1.msra.mxu0 0.0
  %4733 = vmatprep.subr.mxu0 0.0
  %4734 = vmatpush1.msra.mxu0 0.0
  %4735 = vmatprep.subr.mxu0 0.0
  %4736 = vmatpush1.msra.mxu0 0.0
  %4737 = vmatprep.subr.mxu0 0.0
  %4738 = vmatpush1.msra.mxu0 0.0
  %4739 = vmatprep.subr.mxu0 0.0
  %4740 = vmatpush1.msra.mxu0 0.0
  %4741 = vmatprep.subr.mxu0 0.0
  %4742 = vmatpush1.msra.mxu0 0.0
  %4743 = vmatprep.subr.mxu0 0.0
  %4744 = vmatpush1.msra.mxu0 0.0
  %4745 = vmatprep.subr.mxu0 0.0
  %4746 = vmatpush1.msra.mxu0 0.0
  %4747 = vmatprep.subr.mxu0 0.0
  %4748 = vmatpush1.msra.mxu0 0.0
  %4749 = vmatprep.subr.mxu0 0.0
  %4750 = vmatpush1.msra.mxu0 0.0
  %4751 = vmatprep.subr.mxu0 0.0
  %4752 = vmatpush1.msra.mxu0 0.0
  %4753 = vmatprep.subr.mxu0 0.0
  %4754 = vmatpush1.msra.mxu0 0.0
  %4755 = vmatprep.subr.mxu0 0.0
  %4756 = vmatpush1.msra.mxu0 0.0
  %4757 = vmatprep.subr.mxu0 0.0
  %4758 = vmatpush1.msra.mxu0 0.0
  %4759 = vmatprep.subr.mxu0 0.0
  %4760 = vmatpush1.msra.mxu0 0.0
  %4761 = vmatprep.subr.mxu0 0.0
  %4762 = vmatpush1.msra.mxu0 0.0
  %4763 = vmatprep.subr.mxu0 0.0
  %4764 = vmatpush1.msra.mxu0 0.0
  %4765 = vmatprep.subr.mxu0 0.0
  %4766 = vmatpush1.msra.mxu0 0.0
  %4767 = vmatprep.subr.mxu0 0.0
  %4768 = vmatpush1.msra.mxu0 0.0
  %4769 = vmatprep.subr.mxu0 0.0
  %4770 = vmatpush1.msra.mxu0 0.0
  %4771 = vmatprep.mubr.f32.mxu0 0.0
  %v4772 = vand.u32 %v4605, 4294901760
  %4773 = vmatmul.mubr.f32.gmra.mrb[0].mxu0 %v4772
  %v4774 = vpop.f32.mrb[0].mxu0
  %v4775 = vadd.f32 %v4683, %v4774
  %v4776 = vpop.f32.mrb[0].mxu0
  %v4777 = vadd.f32 %v4685, %v4776
  %4778 = vdwg.mxu0
  %v4779 = vand.u32 %v1832, 4294901760
  %v4780 = vsub.f32 %v1832, %v4779
  %4781 = vmatprep.subr.mxu0 %v4780
  %v4782 = vand.u32 %v1831, 4294901760
  %v4783 = vsub.f32 %v1831, %v4782
  %4784 = vmatpush1.msra.mxu0 %v4783
  %v4785 = vand.u32 %v1836, 4294901760
  %v4786 = vsub.f32 %v1836, %v4785
  %4787 = vmatprep.subr.mxu0 %v4786
  %v4788 = vand.u32 %v1835, 4294901760
  %v4789 = vsub.f32 %v1835, %v4788
  %4790 = vmatpush1.msra.mxu0 %v4789
  %4791 = vmatprep.subr.mxu0 0.0
  %4792 = vmatpush1.msra.mxu0 0.0
  %4793 = vmatprep.subr.mxu0 0.0
  %4794 = vmatpush1.msra.mxu0 0.0
  %4795 = vmatprep.subr.mxu0 0.0
  %4796 = vmatpush1.msra.mxu0 0.0
  %4797 = vmatprep.subr.mxu0 0.0
  %4798 = vmatpush1.msra.mxu0 0.0
  %4799 = vmatprep.subr.mxu0 0.0
  %4800 = vmatpush1.msra.mxu0 0.0
  %4801 = vmatprep.subr.mxu0 0.0
  %4802 = vmatpush1.msra.mxu0 0.0
  %4803 = vmatprep.subr.mxu0 0.0
  %4804 = vmatpush1.msra.mxu0 0.0
  %4805 = vmatprep.subr.mxu0 0.0
  %4806 = vmatpush1.msra.mxu0 0.0
  %4807 = vmatprep.subr.mxu0 0.0
  %4808 = vmatpush1.msra.mxu0 0.0
  %4809 = vmatprep.subr.mxu0 0.0
  %4810 = vmatpush1.msra.mxu0 0.0
  %4811 = vmatprep.subr.mxu0 0.0
  %4812 = vmatpush1.msra.mxu0 0.0
  %4813 = vmatprep.subr.mxu0 0.0
  %4814 = vmatpush1.msra.mxu0 0.0
  %4815 = vmatprep.subr.mxu0 0.0
  %4816 = vmatpush1.msra.mxu0 0.0
  %4817 = vmatprep.subr.mxu0 0.0
  %4818 = vmatpush1.msra.mxu0 0.0
  %4819 = vmatprep.subr.mxu0 0.0
  %4820 = vmatpush1.msra.mxu0 0.0
  %4821 = vmatprep.subr.mxu0 0.0
  %4822 = vmatpush1.msra.mxu0 0.0
  %4823 = vmatprep.subr.mxu0 0.0
  %4824 = vmatpush1.msra.mxu0 0.0
  %4825 = vmatprep.subr.mxu0 0.0
  %4826 = vmatpush1.msra.mxu0 0.0
  %4827 = vmatprep.subr.mxu0 0.0
  %4828 = vmatpush1.msra.mxu0 0.0
  %4829 = vmatprep.subr.mxu0 0.0
  %4830 = vmatpush1.msra.mxu0 0.0
  %4831 = vmatprep.subr.mxu0 0.0
  %4832 = vmatpush1.msra.mxu0 0.0
  %4833 = vmatprep.subr.mxu0 0.0
  %4834 = vmatpush1.msra.mxu0 0.0
  %4835 = vmatprep.subr.mxu0 0.0
  %4836 = vmatpush1.msra.mxu0 0.0
  %4837 = vmatprep.subr.mxu0 0.0
  %4838 = vmatpush1.msra.mxu0 0.0
  %4839 = vmatprep.subr.mxu0 0.0
  %4840 = vmatpush1.msra.mxu0 0.0
  %4841 = vmatprep.subr.mxu0 0.0
  %4842 = vmatpush1.msra.mxu0 0.0
  %4843 = vmatprep.subr.mxu0 0.0
  %4844 = vmatpush1.msra.mxu0 0.0
  %4845 = vmatprep.subr.mxu0 0.0
  %4846 = vmatpush1.msra.mxu0 0.0
  %4847 = vmatprep.subr.mxu0 0.0
  %4848 = vmatpush1.msra.mxu0 0.0
  %4849 = vmatprep.subr.mxu0 0.0
  %4850 = vmatpush1.msra.mxu0 0.0
  %4851 = vmatprep.mubr.f32.mxu0 0.0
  %v4852 = vand.u32 %v4605, 4294901760
  %v4853 = vsub.f32 %v4605, %v4852
  %4854 = vmatmul.mubr.f32.gmra.mrb[0].mxu0 %v4853
  %v4855 = vpop.f32.mrb[0].mxu0
  %v4856 = vadd.f32 %v4775, %v4855
  %v4857 = vpop.f32.mrb[0].mxu0
  %v4858 = vadd.f32 %v4777, %v4857
  %4859 = vdwg.mxu0
  %v4860 = vand.u32 %v1832, 4294901760
  %4861 = vmatprep.subr.mxu0 %v4860
  %v4862 = vand.u32 %v1831, 4294901760
  %4863 = vmatpush1.msra.mxu0 %v4862
  %v4864 = vand.u32 %v1836, 4294901760
  %4865 = vmatprep.subr.mxu0 %v4864
  %v4866 = vand.u32 %v1835, 4294901760
  %4867 = vmatpush1.msra.mxu0 %v4866
  %4868 = vmatprep.subr.mxu0 0.0
  %4869 = vmatpush1.msra.mxu0 0.0
  %4870 = vmatprep.subr.mxu0 0.0
  %4871 = vmatpush1.msra.mxu0 0.0
  %4872 = vmatprep.subr.mxu0 0.0
  %4873 = vmatpush1.msra.mxu0 0.0
  %4874 = vmatprep.subr.mxu0 0.0
  %4875 = vmatpush1.msra.mxu0 0.0
  %4876 = vmatprep.subr.mxu0 0.0
  %4877 = vmatpush1.msra.mxu0 0.0
  %4878 = vmatprep.subr.mxu0 0.0
  %4879 = vmatpush1.msra.mxu0 0.0
  %4880 = vmatprep.subr.mxu0 0.0
  %4881 = vmatpush1.msra.mxu0 0.0
  %4882 = vmatprep.subr.mxu0 0.0
  %4883 = vmatpush1.msra.mxu0 0.0
  %4884 = vmatprep.subr.mxu0 0.0
  %4885 = vmatpush1.msra.mxu0 0.0
  %4886 = vmatprep.subr.mxu0 0.0
  %4887 = vmatpush1.msra.mxu0 0.0
  %4888 = vmatprep.subr.mxu0 0.0
  %4889 = vmatpush1.msra.mxu0 0.0
  %4890 = vmatprep.subr.mxu0 0.0
  %4891 = vmatpush1.msra.mxu0 0.0
  %4892 = vmatprep.subr.mxu0 0.0
  %4893 = vmatpush1.msra.mxu0 0.0
  %4894 = vmatprep.subr.mxu0 0.0
  %4895 = vmatpush1.msra.mxu0 0.0
  %4896 = vmatprep.subr.mxu0 0.0
  %4897 = vmatpush1.msra.mxu0 0.0
  %4898 = vmatprep.subr.mxu0 0.0
  %4899 = vmatpush1.msra.mxu0 0.0
  %4900 = vmatprep.subr.mxu0 0.0
  %4901 = vmatpush1.msra.mxu0 0.0
  %4902 = vmatprep.subr.mxu0 0.0
  %4903 = vmatpush1.msra.mxu0 0.0
  %4904 = vmatprep.subr.mxu0 0.0
  %4905 = vmatpush1.msra.mxu0 0.0
  %4906 = vmatprep.subr.mxu0 0.0
  %4907 = vmatpush1.msra.mxu0 0.0
  %4908 = vmatprep.subr.mxu0 0.0
  %4909 = vmatpush1.msra.mxu0 0.0
  %4910 = vmatprep.subr.mxu0 0.0
  %4911 = vmatpush1.msra.mxu0 0.0
  %4912 = vmatprep.subr.mxu0 0.0
  %4913 = vmatpush1.msra.mxu0 0.0
  %4914 = vmatprep.subr.mxu0 0.0
  %4915 = vmatpush1.msra.mxu0 0.0
  %4916 = vmatprep.subr.mxu0 0.0
  %4917 = vmatpush1.msra.mxu0 0.0
  %4918 = vmatprep.subr.mxu0 0.0
  %4919 = vmatpush1.msra.mxu0 0.0
  %4920 = vmatprep.subr.mxu0 0.0
  %4921 = vmatpush1.msra.mxu0 0.0
  %4922 = vmatprep.subr.mxu0 0.0
  %4923 = vmatpush1.msra.mxu0 0.0
  %4924 = vmatprep.subr.mxu0 0.0
  %4925 = vmatpush1.msra.mxu0 0.0
  %4926 = vmatprep.subr.mxu0 0.0
  %4927 = vmatpush1.msra.mxu0 0.0
  %4928 = vmatprep.mubr.f32.mxu0 0.0
  %v4929 = vand.u32 %v4605, 4294901760
  %v4930 = vsub.f32 %v4605, %v4929
  %v4931 = vand.u32 %v4930, 4294901760
  %4932 = vmatmul.mubr.f32.gmra.mrb[0].mxu0 %v4931
  %v4933 = vpop.f32.mrb[0].mxu0
  %v4934 = vadd.f32 %v4856, %v4933
  %v4935 = vpop.f32.mrb[0].mxu0
  %v4936 = vadd.f32 %v4858, %v4935
  %4937 = vdwg.mxu0
  %v4938 = vand.u32 %v1832, 4294901760
  %v4939 = vsub.f32 %v1832, %v4938
  %v4940 = vand.u32 %v4939, 4294901760
  %4941 = vmatprep.subr.mxu0 %v4940
  %v4942 = vand.u32 %v1831, 4294901760
  %v4943 = vsub.f32 %v1831, %v4942
  %v4944 = vand.u32 %v4943, 4294901760
  %4945 = vmatpush1.msra.mxu0 %v4944
  %v4946 = vand.u32 %v1836, 4294901760
  %v4947 = vsub.f32 %v1836, %v4946
  %v4948 = vand.u32 %v4947, 4294901760
  %4949 = vmatprep.subr.mxu0 %v4948
  %v4950 = vand.u32 %v1835, 4294901760
  %v4951 = vsub.f32 %v1835, %v4950
  %v4952 = vand.u32 %v4951, 4294901760
  %4953 = vmatpush1.msra.mxu0 %v4952
  %4954 = vmatprep.subr.mxu0 0.0
  %4955 = vmatpush1.msra.mxu0 0.0
  %4956 = vmatprep.subr.mxu0 0.0
  %4957 = vmatpush1.msra.mxu0 0.0
  %4958 = vmatprep.subr.mxu0 0.0
  %4959 = vmatpush1.msra.mxu0 0.0
  %4960 = vmatprep.subr.mxu0 0.0
  %4961 = vmatpush1.msra.mxu0 0.0
  %4962 = vmatprep.subr.mxu0 0.0
  %4963 = vmatpush1.msra.mxu0 0.0
  %4964 = vmatprep.subr.mxu0 0.0
  %4965 = vmatpush1.msra.mxu0 0.0
  %4966 = vmatprep.subr.mxu0 0.0
  %4967 = vmatpush1.msra.mxu0 0.0
  %4968 = vmatprep.subr.mxu0 0.0
  %4969 = vmatpush1.msra.mxu0 0.0
  %4970 = vmatprep.subr.mxu0 0.0
  %4971 = vmatpush1.msra.mxu0 0.0
  %4972 = vmatprep.subr.mxu0 0.0
  %4973 = vmatpush1.msra.mxu0 0.0
  %4974 = vmatprep.subr.mxu0 0.0
  %4975 = vmatpush1.msra.mxu0 0.0
  %4976 = vmatprep.subr.mxu0 0.0
  %4977 = vmatpush1.msra.mxu0 0.0
  %4978 = vmatprep.subr.mxu0 0.0
  %4979 = vmatpush1.msra.mxu0 0.0
  %4980 = vmatprep.subr.mxu0 0.0
  %4981 = vmatpush1.msra.mxu0 0.0
  %4982 = vmatprep.subr.mxu0 0.0
  %4983 = vmatpush1.msra.mxu0 0.0
  %4984 = vmatprep.subr.mxu0 0.0
  %4985 = vmatpush1.msra.mxu0 0.0
  %4986 = vmatprep.subr.mxu0 0.0
  %4987 = vmatpush1.msra.mxu0 0.0
  %4988 = vmatprep.subr.mxu0 0.0
  %4989 = vmatpush1.msra.mxu0 0.0
  %4990 = vmatprep.subr.mxu0 0.0
  %4991 = vmatpush1.msra.mxu0 0.0
  %4992 = vmatprep.subr.mxu0 0.0
  %4993 = vmatpush1.msra.mxu0 0.0
  %4994 = vmatprep.subr.mxu0 0.0
  %4995 = vmatpush1.msra.mxu0 0.0
  %4996 = vmatprep.subr.mxu0 0.0
  %4997 = vmatpush1.msra.mxu0 0.0
  %4998 = vmatprep.subr.mxu0 0.0
  %4999 = vmatpush1.msra.mxu0 0.0
  %5000 = vmatprep.subr.mxu0 0.0
  %5001 = vmatpush1.msra.mxu0 0.0
  %5002 = vmatprep.subr.mxu0 0.0
  %5003 = vmatpush1.msra.mxu0 0.0
  %5004 = vmatprep.subr.mxu0 0.0
  %5005 = vmatpush1.msra.mxu0 0.0
  %5006 = vmatprep.subr.mxu0 0.0
  %5007 = vmatpush1.msra.mxu0 0.0
  %5008 = vmatprep.subr.mxu0 0.0
  %5009 = vmatpush1.msra.mxu0 0.0
  %5010 = vmatprep.subr.mxu0 0.0
  %5011 = vmatpush1.msra.mxu0 0.0
  %5012 = vmatprep.subr.mxu0 0.0
  %5013 = vmatpush1.msra.mxu0 0.0
  %5014 = vmatprep.mubr.f32.mxu0 0.0
  %v5015 = vand.u32 %v4605, 4294901760
  %5016 = vmatmul.mubr.f32.gmra.mrb[0].mxu0 %v5015
  %v5017 = vpop.f32.mrb[0].mxu0
  %v5018 = vadd.f32 %v4934, %v5017
  %v5019 = vpop.f32.mrb[0].mxu0
  %v5020 = vadd.f32 %v4936, %v5019
  %5021 = vdwg.mxu0
  %v5022 = vand.u32 %v1832, 4294901760
  %5023 = vmatprep.subr.mxu0 %v5022
  %v5024 = vand.u32 %v1831, 4294901760
  %5025 = vmatpush1.msra.mxu0 %v5024
  %v5026 = vand.u32 %v1836, 4294901760
  %5027 = vmatprep.subr.mxu0 %v5026
  %v5028 = vand.u32 %v1835, 4294901760
  %5029 = vmatpush1.msra.mxu0 %v5028
  %5030 = vmatprep.subr.mxu0 0.0
  %5031 = vmatpush1.msra.mxu0 0.0
  %5032 = vmatprep.subr.mxu0 0.0
  %5033 = vmatpush1.msra.mxu0 0.0
  %5034 = vmatprep.subr.mxu0 0.0
  %5035 = vmatpush1.msra.mxu0 0.0
  %5036 = vmatprep.subr.mxu0 0.0
  %5037 = vmatpush1.msra.mxu0 0.0
  %5038 = vmatprep.subr.mxu0 0.0
  %5039 = vmatpush1.msra.mxu0 0.0
  %5040 = vmatprep.subr.mxu0 0.0
  %5041 = vmatpush1.msra.mxu0 0.0
  %5042 = vmatprep.subr.mxu0 0.0
  %5043 = vmatpush1.msra.mxu0 0.0
  %5044 = vmatprep.subr.mxu0 0.0
  %5045 = vmatpush1.msra.mxu0 0.0
  %5046 = vmatprep.subr.mxu0 0.0
  %5047 = vmatpush1.msra.mxu0 0.0
  %5048 = vmatprep.subr.mxu0 0.0
  %5049 = vmatpush1.msra.mxu0 0.0
  %5050 = vmatprep.subr.mxu0 0.0
  %5051 = vmatpush1.msra.mxu0 0.0
  %5052 = vmatprep.subr.mxu0 0.0
  %5053 = vmatpush1.msra.mxu0 0.0
  %5054 = vmatprep.subr.mxu0 0.0
  %5055 = vmatpush1.msra.mxu0 0.0
  %5056 = vmatprep.subr.mxu0 0.0
  %5057 = vmatpush1.msra.mxu0 0.0
  %5058 = vmatprep.subr.mxu0 0.0
  %5059 = vmatpush1.msra.mxu0 0.0
  %5060 = vmatprep.subr.mxu0 0.0
  %5061 = vmatpush1.msra.mxu0 0.0
  %5062 = vmatprep.subr.mxu0 0.0
  %5063 = vmatpush1.msra.mxu0 0.0
  %5064 = vmatprep.subr.mxu0 0.0
  %5065 = vmatpush1.msra.mxu0 0.0
  %5066 = vmatprep.subr.mxu0 0.0
  %5067 = vmatpush1.msra.mxu0 0.0
  %5068 = vmatprep.subr.mxu0 0.0
  %5069 = vmatpush1.msra.mxu0 0.0
  %5070 = vmatprep.subr.mxu0 0.0
  %5071 = vmatpush1.msra.mxu0 0.0
  %5072 = vmatprep.subr.mxu0 0.0
  %5073 = vmatpush1.msra.mxu0 0.0
  %5074 = vmatprep.subr.mxu0 0.0
  %5075 = vmatpush1.msra.mxu0 0.0
  %5076 = vmatprep.subr.mxu0 0.0
  %5077 = vmatpush1.msra.mxu0 0.0
  %5078 = vmatprep.subr.mxu0 0.0
  %5079 = vmatpush1.msra.mxu0 0.0
  %5080 = vmatprep.subr.mxu0 0.0
  %5081 = vmatpush1.msra.mxu0 0.0
  %5082 = vmatprep.subr.mxu0 0.0
  %5083 = vmatpush1.msra.mxu0 0.0
  %5084 = vmatprep.subr.mxu0 0.0
  %5085 = vmatpush1.msra.mxu0 0.0
  %5086 = vmatprep.subr.mxu0 0.0
  %5087 = vmatpush1.msra.mxu0 0.0
  %5088 = vmatprep.subr.mxu0 0.0
  %5089 = vmatpush1.msra.mxu0 0.0
  %5090 = vmatprep.mubr.f32.mxu0 0.0
  %v5091 = vand.u32 %v4605, 4294901760
  %5092 = vmatmul.mubr.f32.gmra.mrb[0].mxu0 %v5091
  %v5093 = vpop.f32.mrb[0].mxu0
  %v5094 = vadd.f32 %v5018, %v5093
  %v5095 = vpop.f32.mrb[0].mxu0
  %v5096 = vadd.f32 %v5020, %v5095
  %5097 = vdwg.mxu0
  %v5098 = vand.u32 %v1834, 4294901760
  %5099 = vmatprep.subr.mxu0 %v5098
  %v5100 = vand.u32 %v1833, 4294901760
  %5101 = vmatpush1.msra.mxu0 %v5100
  %v5102 = vand.u32 %v1838, 4294901760
  %5103 = vmatprep.subr.mxu0 %v5102
  %v5104 = vand.u32 %v1837, 4294901760
  %5105 = vmatpush1.msra.mxu0 %v5104
  %5106 = vmatprep.subr.mxu0 0.0
  %5107 = vmatpush1.msra.mxu0 0.0
  %5108 = vmatprep.subr.mxu0 0.0
  %5109 = vmatpush1.msra.mxu0 0.0
  %5110 = vmatprep.subr.mxu0 0.0
  %5111 = vmatpush1.msra.mxu0 0.0
  %5112 = vmatprep.subr.mxu0 0.0
  %5113 = vmatpush1.msra.mxu0 0.0
  %5114 = vmatprep.subr.mxu0 0.0
  %5115 = vmatpush1.msra.mxu0 0.0
  %5116 = vmatprep.subr.mxu0 0.0
  %5117 = vmatpush1.msra.mxu0 0.0
  %5118 = vmatprep.subr.mxu0 0.0
  %5119 = vmatpush1.msra.mxu0 0.0
  %5120 = vmatprep.subr.mxu0 0.0
  %5121 = vmatpush1.msra.mxu0 0.0
  %5122 = vmatprep.subr.mxu0 0.0
  %5123 = vmatpush1.msra.mxu0 0.0
  %5124 = vmatprep.subr.mxu0 0.0
  %5125 = vmatpush1.msra.mxu0 0.0
  %5126 = vmatprep.subr.mxu0 0.0
  %5127 = vmatpush1.msra.mxu0 0.0
  %5128 = vmatprep.subr.mxu0 0.0
  %5129 = vmatpush1.msra.mxu0 0.0
  %5130 = vmatprep.subr.mxu0 0.0
  %5131 = vmatpush1.msra.mxu0 0.0
  %5132 = vmatprep.subr.mxu0 0.0
  %5133 = vmatpush1.msra.mxu0 0.0
  %5134 = vmatprep.subr.mxu0 0.0
  %5135 = vmatpush1.msra.mxu0 0.0
  %5136 = vmatprep.subr.mxu0 0.0
  %5137 = vmatpush1.msra.mxu0 0.0
  %5138 = vmatprep.subr.mxu0 0.0
  %5139 = vmatpush1.msra.mxu0 0.0
  %5140 = vmatprep.subr.mxu0 0.0
  %5141 = vmatpush1.msra.mxu0 0.0
  %5142 = vmatprep.subr.mxu0 0.0
  %5143 = vmatpush1.msra.mxu0 0.0
  %5144 = vmatprep.subr.mxu0 0.0
  %5145 = vmatpush1.msra.mxu0 0.0
  %5146 = vmatprep.subr.mxu0 0.0
  %5147 = vmatpush1.msra.mxu0 0.0
  %5148 = vmatprep.subr.mxu0 0.0
  %5149 = vmatpush1.msra.mxu0 0.0
  %5150 = vmatprep.subr.mxu0 0.0
  %5151 = vmatpush1.msra.mxu0 0.0
  %5152 = vmatprep.subr.mxu0 0.0
  %5153 = vmatpush1.msra.mxu0 0.0
  %5154 = vmatprep.subr.mxu0 0.0
  %5155 = vmatpush1.msra.mxu0 0.0
  %5156 = vmatprep.subr.mxu0 0.0
  %5157 = vmatpush1.msra.mxu0 0.0
  %5158 = vmatprep.subr.mxu0 0.0
  %5159 = vmatpush1.msra.mxu0 0.0
  %5160 = vmatprep.subr.mxu0 0.0
  %5161 = vmatpush1.msra.mxu0 0.0
  %5162 = vmatprep.subr.mxu0 0.0
  %5163 = vmatpush1.msra.mxu0 0.0
  %5164 = vmatprep.subr.mxu0 0.0
  %5165 = vmatpush1.msra.mxu0 0.0
  %5166 = vmatprep.mubr.f32.mxu0 0.0
  %v5167 = vand.u32 %v4605, 4294901760
  %v5168 = vsub.f32 %v4605, %v5167
  %v5169 = vand.u32 %v5168, 4294901760
  %v5170 = vsub.f32 %v5168, %v5169
  %v5171 = vand.u32 %v5170, 4294901760
  %5172 = vmatmul.mubr.f32.gmra.mrb[0].mxu0 %v5171
  %v5173 = vpop.f32.mrb[0].mxu0
  %v5174 = vadd.f32 0.0, %v5173
  %v5175 = vpop.f32.mrb[0].mxu0
  %v5176 = vadd.f32 0.0, %v5175
  %5177 = vdwg.mxu0
  %v5178 = vand.u32 %v1834, 4294901760
  %v5179 = vsub.f32 %v1834, %v5178
  %v5180 = vand.u32 %v5179, 4294901760
  %v5181 = vsub.f32 %v5179, %v5180
  %v5182 = vand.u32 %v5181, 4294901760
  %5183 = vmatprep.subr.mxu0 %v5182
  %v5184 = vand.u32 %v1833, 4294901760
  %v5185 = vsub.f32 %v1833, %v5184
  %v5186 = vand.u32 %v5185, 4294901760
  %v5187 = vsub.f32 %v5185, %v5186
  %v5188 = vand.u32 %v5187, 4294901760
  %5189 = vmatpush1.msra.mxu0 %v5188
  %v5190 = vand.u32 %v1838, 4294901760
  %v5191 = vsub.f32 %v1838, %v5190
  %v5192 = vand.u32 %v5191, 4294901760
  %v5193 = vsub.f32 %v5191, %v5192
  %v5194 = vand.u32 %v5193, 4294901760
  %5195 = vmatprep.subr.mxu0 %v5194
  %v5196 = vand.u32 %v1837, 4294901760
  %v5197 = vsub.f32 %v1837, %v5196
  %v5198 = vand.u32 %v5197, 4294901760
  %v5199 = vsub.f32 %v5197, %v5198
  %v5200 = vand.u32 %v5199, 4294901760
  %5201 = vmatpush1.msra.mxu0 %v5200
  %5202 = vmatprep.subr.mxu0 0.0
  %5203 = vmatpush1.msra.mxu0 0.0
  %5204 = vmatprep.subr.mxu0 0.0
  %5205 = vmatpush1.msra.mxu0 0.0
  %5206 = vmatprep.subr.mxu0 0.0
  %5207 = vmatpush1.msra.mxu0 0.0
  %5208 = vmatprep.subr.mxu0 0.0
  %5209 = vmatpush1.msra.mxu0 0.0
  %5210 = vmatprep.subr.mxu0 0.0
  %5211 = vmatpush1.msra.mxu0 0.0
  %5212 = vmatprep.subr.mxu0 0.0
  %5213 = vmatpush1.msra.mxu0 0.0
  %5214 = vmatprep.subr.mxu0 0.0
  %5215 = vmatpush1.msra.mxu0 0.0
  %5216 = vmatprep.subr.mxu0 0.0
  %5217 = vmatpush1.msra.mxu0 0.0
  %5218 = vmatprep.subr.mxu0 0.0
  %5219 = vmatpush1.msra.mxu0 0.0
  %5220 = vmatprep.subr.mxu0 0.0
  %5221 = vmatpush1.msra.mxu0 0.0
  %5222 = vmatprep.subr.mxu0 0.0
  %5223 = vmatpush1.msra.mxu0 0.0
  %5224 = vmatprep.subr.mxu0 0.0
  %5225 = vmatpush1.msra.mxu0 0.0
  %5226 = vmatprep.subr.mxu0 0.0
  %5227 = vmatpush1.msra.mxu0 0.0
  %5228 = vmatprep.subr.mxu0 0.0
  %5229 = vmatpush1.msra.mxu0 0.0
  %5230 = vmatprep.subr.mxu0 0.0
  %5231 = vmatpush1.msra.mxu0 0.0
  %5232 = vmatprep.subr.mxu0 0.0
  %5233 = vmatpush1.msra.mxu0 0.0
  %5234 = vmatprep.subr.mxu0 0.0
  %5235 = vmatpush1.msra.mxu0 0.0
  %5236 = vmatprep.subr.mxu0 0.0
  %5237 = vmatpush1.msra.mxu0 0.0
  %5238 = vmatprep.subr.mxu0 0.0
  %5239 = vmatpush1.msra.mxu0 0.0
  %5240 = vmatprep.subr.mxu0 0.0
  %5241 = vmatpush1.msra.mxu0 0.0
  %5242 = vmatprep.subr.mxu0 0.0
  %5243 = vmatpush1.msra.mxu0 0.0
  %5244 = vmatprep.subr.mxu0 0.0
  %5245 = vmatpush1.msra.mxu0 0.0
  %5246 = vmatprep.subr.mxu0 0.0
  %5247 = vmatpush1.msra.mxu0 0.0
  %5248 = vmatprep.subr.mxu0 0.0
  %5249 = vmatpush1.msra.mxu0 0.0
  %5250 = vmatprep.subr.mxu0 0.0
  %5251 = vmatpush1.msra.mxu0 0.0
  %5252 = vmatprep.subr.mxu0 0.0
  %5253 = vmatpush1.msra.mxu0 0.0
  %5254 = vmatprep.subr.mxu0 0.0
  %5255 = vmatpush1.msra.mxu0 0.0
  %5256 = vmatprep.subr.mxu0 0.0
  %5257 = vmatpush1.msra.mxu0 0.0
  %5258 = vmatprep.subr.mxu0 0.0
  %5259 = vmatpush1.msra.mxu0 0.0
  %5260 = vmatprep.subr.mxu0 0.0
  %5261 = vmatpush1.msra.mxu0 0.0
  %5262 = vmatprep.mubr.f32.mxu0 0.0
  %v5263 = vand.u32 %v4605, 4294901760
  %5264 = vmatmul.mubr.f32.gmra.mrb[0].mxu0 %v5263
  %v5265 = vpop.f32.mrb[0].mxu0
  %v5266 = vadd.f32 %v5174, %v5265
  %v5267 = vpop.f32.mrb[0].mxu0
  %v5268 = vadd.f32 %v5176, %v5267
  %5269 = vdwg.mxu0
  %v5270 = vand.u32 %v1834, 4294901760
  %v5271 = vsub.f32 %v1834, %v5270
  %5272 = vmatprep.subr.mxu0 %v5271
  %v5273 = vand.u32 %v1833, 4294901760
  %v5274 = vsub.f32 %v1833, %v5273
  %5275 = vmatpush1.msra.mxu0 %v5274
  %v5276 = vand.u32 %v1838, 4294901760
  %v5277 = vsub.f32 %v1838, %v5276
  %5278 = vmatprep.subr.mxu0 %v5277
  %v5279 = vand.u32 %v1837, 4294901760
  %v5280 = vsub.f32 %v1837, %v5279
  %5281 = vmatpush1.msra.mxu0 %v5280
  %5282 = vmatprep.subr.mxu0 0.0
  %5283 = vmatpush1.msra.mxu0 0.0
  %5284 = vmatprep.subr.mxu0 0.0
  %5285 = vmatpush1.msra.mxu0 0.0
  %5286 = vmatprep.subr.mxu0 0.0
  %5287 = vmatpush1.msra.mxu0 0.0
  %5288 = vmatprep.subr.mxu0 0.0
  %5289 = vmatpush1.msra.mxu0 0.0
  %5290 = vmatprep.subr.mxu0 0.0
  %5291 = vmatpush1.msra.mxu0 0.0
  %5292 = vmatprep.subr.mxu0 0.0
  %5293 = vmatpush1.msra.mxu0 0.0
  %5294 = vmatprep.subr.mxu0 0.0
  %5295 = vmatpush1.msra.mxu0 0.0
  %5296 = vmatprep.subr.mxu0 0.0
  %5297 = vmatpush1.msra.mxu0 0.0
  %5298 = vmatprep.subr.mxu0 0.0
  %5299 = vmatpush1.msra.mxu0 0.0
  %5300 = vmatprep.subr.mxu0 0.0
  %5301 = vmatpush1.msra.mxu0 0.0
  %5302 = vmatprep.subr.mxu0 0.0
  %5303 = vmatpush1.msra.mxu0 0.0
  %5304 = vmatprep.subr.mxu0 0.0
  %5305 = vmatpush1.msra.mxu0 0.0
  %5306 = vmatprep.subr.mxu0 0.0
  %5307 = vmatpush1.msra.mxu0 0.0
  %5308 = vmatprep.subr.mxu0 0.0
  %5309 = vmatpush1.msra.mxu0 0.0
  %5310 = vmatprep.subr.mxu0 0.0
  %5311 = vmatpush1.msra.mxu0 0.0
  %5312 = vmatprep.subr.mxu0 0.0
  %5313 = vmatpush1.msra.mxu0 0.0
  %5314 = vmatprep.subr.mxu0 0.0
  %5315 = vmatpush1.msra.mxu0 0.0
  %5316 = vmatprep.subr.mxu0 0.0
  %5317 = vmatpush1.msra.mxu0 0.0
  %5318 = vmatprep.subr.mxu0 0.0
  %5319 = vmatpush1.msra.mxu0 0.0
  %5320 = vmatprep.subr.mxu0 0.0
  %5321 = vmatpush1.msra.mxu0 0.0
  %5322 = vmatprep.subr.mxu0 0.0
  %5323 = vmatpush1.msra.mxu0 0.0
  %5324 = vmatprep.subr.mxu0 0.0
  %5325 = vmatpush1.msra.mxu0 0.0
  %5326 = vmatprep.subr.mxu0 0.0
  %5327 = vmatpush1.msra.mxu0 0.0
  %5328 = vmatprep.subr.mxu0 0.0
  %5329 = vmatpush1.msra.mxu0 0.0
  %5330 = vmatprep.subr.mxu0 0.0
  %5331 = vmatpush1.msra.mxu0 0.0
  %5332 = vmatprep.subr.mxu0 0.0
  %5333 = vmatpush1.msra.mxu0 0.0
  %5334 = vmatprep.subr.mxu0 0.0
  %5335 = vmatpush1.msra.mxu0 0.0
  %5336 = vmatprep.subr.mxu0 0.0
  %5337 = vmatpush1.msra.mxu0 0.0
  %5338 = vmatprep.subr.mxu0 0.0
  %5339 = vmatpush1.msra.mxu0 0.0
  %5340 = vmatprep.subr.mxu0 0.0
  %5341 = vmatpush1.msra.mxu0 0.0
  %5342 = vmatprep.mubr.f32.mxu0 0.0
  %v5343 = vand.u32 %v4605, 4294901760
  %v5344 = vsub.f32 %v4605, %v5343
  %5345 = vmatmul.mubr.f32.gmra.mrb[0].mxu0 %v5344
  %v5346 = vpop.f32.mrb[0].mxu0
  %v5347 = vadd.f32 %v5266, %v5346
  %v5348 = vpop.f32.mrb[0].mxu0
  %v5349 = vadd.f32 %v5268, %v5348
  %5350 = vdwg.mxu0
  %v5351 = vand.u32 %v1834, 4294901760
  %5352 = vmatprep.subr.mxu0 %v5351
  %v5353 = vand.u32 %v1833, 4294901760
  %5354 = vmatpush1.msra.mxu0 %v5353
  %v5355 = vand.u32 %v1838, 4294901760
  %5356 = vmatprep.subr.mxu0 %v5355
  %v5357 = vand.u32 %v1837, 4294901760
  %5358 = vmatpush1.msra.mxu0 %v5357
  %5359 = vmatprep.subr.mxu0 0.0
  %5360 = vmatpush1.msra.mxu0 0.0
  %5361 = vmatprep.subr.mxu0 0.0
  %5362 = vmatpush1.msra.mxu0 0.0
  %5363 = vmatprep.subr.mxu0 0.0
  %5364 = vmatpush1.msra.mxu0 0.0
  %5365 = vmatprep.subr.mxu0 0.0
  %5366 = vmatpush1.msra.mxu0 0.0
  %5367 = vmatprep.subr.mxu0 0.0
  %5368 = vmatpush1.msra.mxu0 0.0
  %5369 = vmatprep.subr.mxu0 0.0
  %5370 = vmatpush1.msra.mxu0 0.0
  %5371 = vmatprep.subr.mxu0 0.0
  %5372 = vmatpush1.msra.mxu0 0.0
  %5373 = vmatprep.subr.mxu0 0.0
  %5374 = vmatpush1.msra.mxu0 0.0
  %5375 = vmatprep.subr.mxu0 0.0
  %5376 = vmatpush1.msra.mxu0 0.0
  %5377 = vmatprep.subr.mxu0 0.0
  %5378 = vmatpush1.msra.mxu0 0.0
  %5379 = vmatprep.subr.mxu0 0.0
  %5380 = vmatpush1.msra.mxu0 0.0
  %5381 = vmatprep.subr.mxu0 0.0
  %5382 = vmatpush1.msra.mxu0 0.0
  %5383 = vmatprep.subr.mxu0 0.0
  %5384 = vmatpush1.msra.mxu0 0.0
  %5385 = vmatprep.subr.mxu0 0.0
  %5386 = vmatpush1.msra.mxu0 0.0
  %5387 = vmatprep.subr.mxu0 0.0
  %5388 = vmatpush1.msra.mxu0 0.0
  %5389 = vmatprep.subr.mxu0 0.0
  %5390 = vmatpush1.msra.mxu0 0.0
  %5391 = vmatprep.subr.mxu0 0.0
  %5392 = vmatpush1.msra.mxu0 0.0
  %5393 = vmatprep.subr.mxu0 0.0
  %5394 = vmatpush1.msra.mxu0 0.0
  %5395 = vmatprep.subr.mxu0 0.0
  %5396 = vmatpush1.msra.mxu0 0.0
  %5397 = vmatprep.subr.mxu0 0.0
  %5398 = vmatpush1.msra.mxu0 0.0
  %5399 = vmatprep.subr.mxu0 0.0
  %5400 = vmatpush1.msra.mxu0 0.0
  %5401 = vmatprep.subr.mxu0 0.0
  %5402 = vmatpush1.msra.mxu0 0.0
  %5403 = vmatprep.subr.mxu0 0.0
  %5404 = vmatpush1.msra.mxu0 0.0
  %5405 = vmatprep.subr.mxu0 0.0
  %5406 = vmatpush1.msra.mxu0 0.0
  %5407 = vmatprep.subr.mxu0 0.0
  %5408 = vmatpush1.msra.mxu0 0.0
  %5409 = vmatprep.subr.mxu0 0.0
  %5410 = vmatpush1.msra.mxu0 0.0
  %5411 = vmatprep.subr.mxu0 0.0
  %5412 = vmatpush1.msra.mxu0 0.0
  %5413 = vmatprep.subr.mxu0 0.0
  %5414 = vmatpush1.msra.mxu0 0.0
  %5415 = vmatprep.subr.mxu0 0.0
  %5416 = vmatpush1.msra.mxu0 0.0
  %5417 = vmatprep.subr.mxu0 0.0
  %5418 = vmatpush1.msra.mxu0 0.0
  %5419 = vmatprep.mubr.f32.mxu0 0.0
  %v5420 = vand.u32 %v4605, 4294901760
  %v5421 = vsub.f32 %v4605, %v5420
  %v5422 = vand.u32 %v5421, 4294901760
  %5423 = vmatmul.mubr.f32.gmra.mrb[0].mxu0 %v5422
  %v5424 = vpop.f32.mrb[0].mxu0
  %v5425 = vadd.f32 %v5347, %v5424
  %v5426 = vpop.f32.mrb[0].mxu0
  %v5427 = vadd.f32 %v5349, %v5426
  %5428 = vdwg.mxu0
  %v5429 = vand.u32 %v1834, 4294901760
  %v5430 = vsub.f32 %v1834, %v5429
  %v5431 = vand.u32 %v5430, 4294901760
  %5432 = vmatprep.subr.mxu0 %v5431
  %v5433 = vand.u32 %v1833, 4294901760
  %v5434 = vsub.f32 %v1833, %v5433
  %v5435 = vand.u32 %v5434, 4294901760
  %5436 = vmatpush1.msra.mxu0 %v5435
  %v5437 = vand.u32 %v1838, 4294901760
  %v5438 = vsub.f32 %v1838, %v5437
  %v5439 = vand.u32 %v5438, 4294901760
  %5440 = vmatprep.subr.mxu0 %v5439
  %v5441 = vand.u32 %v1837, 4294901760
  %v5442 = vsub.f32 %v1837, %v5441
  %v5443 = vand.u32 %v5442, 4294901760
  %5444 = vmatpush1.msra.mxu0 %v5443
  %5445 = vmatprep.subr.mxu0 0.0
  %5446 = vmatpush1.msra.mxu0 0.0
  %5447 = vmatprep.subr.mxu0 0.0
  %5448 = vmatpush1.msra.mxu0 0.0
  %5449 = vmatprep.subr.mxu0 0.0
  %5450 = vmatpush1.msra.mxu0 0.0
  %5451 = vmatprep.subr.mxu0 0.0
  %5452 = vmatpush1.msra.mxu0 0.0
  %5453 = vmatprep.subr.mxu0 0.0
  %5454 = vmatpush1.msra.mxu0 0.0
  %5455 = vmatprep.subr.mxu0 0.0
  %5456 = vmatpush1.msra.mxu0 0.0
  %5457 = vmatprep.subr.mxu0 0.0
  %5458 = vmatpush1.msra.mxu0 0.0
  %5459 = vmatprep.subr.mxu0 0.0
  %5460 = vmatpush1.msra.mxu0 0.0
  %5461 = vmatprep.subr.mxu0 0.0
  %5462 = vmatpush1.msra.mxu0 0.0
  %5463 = vmatprep.subr.mxu0 0.0
  %5464 = vmatpush1.msra.mxu0 0.0
  %5465 = vmatprep.subr.mxu0 0.0
  %5466 = vmatpush1.msra.mxu0 0.0
  %5467 = vmatprep.subr.mxu0 0.0
  %5468 = vmatpush1.msra.mxu0 0.0
  %5469 = vmatprep.subr.mxu0 0.0
  %5470 = vmatpush1.msra.mxu0 0.0
  %5471 = vmatprep.subr.mxu0 0.0
  %5472 = vmatpush1.msra.mxu0 0.0
  %5473 = vmatprep.subr.mxu0 0.0
  %5474 = vmatpush1.msra.mxu0 0.0
  %5475 = vmatprep.subr.mxu0 0.0
  %5476 = vmatpush1.msra.mxu0 0.0
  %5477 = vmatprep.subr.mxu0 0.0
  %5478 = vmatpush1.msra.mxu0 0.0
  %5479 = vmatprep.subr.mxu0 0.0
  %5480 = vmatpush1.msra.mxu0 0.0
  %5481 = vmatprep.subr.mxu0 0.0
  %5482 = vmatpush1.msra.mxu0 0.0
  %5483 = vmatprep.subr.mxu0 0.0
  %5484 = vmatpush1.msra.mxu0 0.0
  %5485 = vmatprep.subr.mxu0 0.0
  %5486 = vmatpush1.msra.mxu0 0.0
  %5487 = vmatprep.subr.mxu0 0.0
  %5488 = vmatpush1.msra.mxu0 0.0
  %5489 = vmatprep.subr.mxu0 0.0
  %5490 = vmatpush1.msra.mxu0 0.0
  %5491 = vmatprep.subr.mxu0 0.0
  %5492 = vmatpush1.msra.mxu0 0.0
  %5493 = vmatprep.subr.mxu0 0.0
  %5494 = vmatpush1.msra.mxu0 0.0
  %5495 = vmatprep.subr.mxu0 0.0
  %5496 = vmatpush1.msra.mxu0 0.0
  %5497 = vmatprep.subr.mxu0 0.0
  %5498 = vmatpush1.msra.mxu0 0.0
  %5499 = vmatprep.subr.mxu0 0.0
  %5500 = vmatpush1.msra.mxu0 0.0
  %5501 = vmatprep.subr.mxu0 0.0
  %5502 = vmatpush1.msra.mxu0 0.0
  %5503 = vmatprep.subr.mxu0 0.0
  %5504 = vmatpush1.msra.mxu0 0.0
  %5505 = vmatprep.mubr.f32.mxu0 0.0
  %v5506 = vand.u32 %v4605, 4294901760
  %5507 = vmatmul.mubr.f32.gmra.mrb[0].mxu0 %v5506
  %v5508 = vpop.f32.mrb[0].mxu0
  %v5509 = vadd.f32 %v5425, %v5508
  %v5510 = vpop.f32.mrb[0].mxu0
  %v5511 = vadd.f32 %v5427, %v5510
  %5512 = vdwg.mxu0
  %v5513 = vand.u32 %v1834, 4294901760
  %5514 = vmatprep.subr.mxu0 %v5513
  %v5515 = vand.u32 %v1833, 4294901760
  %5516 = vmatpush1.msra.mxu0 %v5515
  %v5517 = vand.u32 %v1838, 4294901760
  %5518 = vmatprep.subr.mxu0 %v5517
  %v5519 = vand.u32 %v1837, 4294901760
  %5520 = vmatpush1.msra.mxu0 %v5519
  %5521 = vmatprep.subr.mxu0 0.0
  %5522 = vmatpush1.msra.mxu0 0.0
  %5523 = vmatprep.subr.mxu0 0.0
  %5524 = vmatpush1.msra.mxu0 0.0
  %5525 = vmatprep.subr.mxu0 0.0
  %5526 = vmatpush1.msra.mxu0 0.0
  %5527 = vmatprep.subr.mxu0 0.0
  %5528 = vmatpush1.msra.mxu0 0.0
  %5529 = vmatprep.subr.mxu0 0.0
  %5530 = vmatpush1.msra.mxu0 0.0
  %5531 = vmatprep.subr.mxu0 0.0
  %5532 = vmatpush1.msra.mxu0 0.0
  %5533 = vmatprep.subr.mxu0 0.0
  %5534 = vmatpush1.msra.mxu0 0.0
  %5535 = vmatprep.subr.mxu0 0.0
  %5536 = vmatpush1.msra.mxu0 0.0
  %5537 = vmatprep.subr.mxu0 0.0
  %5538 = vmatpush1.msra.mxu0 0.0
  %5539 = vmatprep.subr.mxu0 0.0
  %5540 = vmatpush1.msra.mxu0 0.0
  %5541 = vmatprep.subr.mxu0 0.0
  %5542 = vmatpush1.msra.mxu0 0.0
  %5543 = vmatprep.subr.mxu0 0.0
  %5544 = vmatpush1.msra.mxu0 0.0
  %5545 = vmatprep.subr.mxu0 0.0
  %5546 = vmatpush1.msra.mxu0 0.0
  %5547 = vmatprep.subr.mxu0 0.0
  %5548 = vmatpush1.msra.mxu0 0.0
  %5549 = vmatprep.subr.mxu0 0.0
  %5550 = vmatpush1.msra.mxu0 0.0
  %5551 = vmatprep.subr.mxu0 0.0
  %5552 = vmatpush1.msra.mxu0 0.0
  %5553 = vmatprep.subr.mxu0 0.0
  %5554 = vmatpush1.msra.mxu0 0.0
  %5555 = vmatprep.subr.mxu0 0.0
  %5556 = vmatpush1.msra.mxu0 0.0
  %5557 = vmatprep.subr.mxu0 0.0
  %5558 = vmatpush1.msra.mxu0 0.0
  %5559 = vmatprep.subr.mxu0 0.0
  %5560 = vmatpush1.msra.mxu0 0.0
  %5561 = vmatprep.subr.mxu0 0.0
  %5562 = vmatpush1.msra.mxu0 0.0
  %5563 = vmatprep.subr.mxu0 0.0
  %5564 = vmatpush1.msra.mxu0 0.0
  %5565 = vmatprep.subr.mxu0 0.0
  %5566 = vmatpush1.msra.mxu0 0.0
  %5567 = vmatprep.subr.mxu0 0.0
  %5568 = vmatpush1.msra.mxu0 0.0
  %5569 = vmatprep.subr.mxu0 0.0
  %5570 = vmatpush1.msra.mxu0 0.0
  %5571 = vmatprep.subr.mxu0 0.0
  %5572 = vmatpush1.msra.mxu0 0.0
  %5573 = vmatprep.subr.mxu0 0.0
  %5574 = vmatpush1.msra.mxu0 0.0
  %5575 = vmatprep.subr.mxu0 0.0
  %5576 = vmatpush1.msra.mxu0 0.0
  %5577 = vmatprep.subr.mxu0 0.0
  %5578 = vmatpush1.msra.mxu0 0.0
  %5579 = vmatprep.subr.mxu0 0.0
  %5580 = vmatpush1.msra.mxu0 0.0
  %5581 = vmatprep.mubr.f32.mxu0 0.0
  %v5582 = vand.u32 %v4605, 4294901760
  %5583 = vmatmul.mubr.f32.gmra.mrb[0].mxu0 %v5582
  %v5584 = vpop.f32.mrb[0].mxu0
  %v5585 = vadd.f32 %v5509, %v5584
  %v5586 = vpop.f32.mrb[0].mxu0
  %v5587 = vadd.f32 %v5511, %v5586
  %5588 = vdwg.mxu0
  %v5593 = vcombine.low %v5094, %v5096
  %v5594 = vcombine.low %v5585, %v5587
  %v5596 = vunpack.c.l.s4 1966171168
  %v5597 = vunpack.c.0.s8 %v5596
  %v5598 = vlaneseq
  %v5599 = vshrl.u32 %v5598, 7
  %v5600 = vsub.s32 %v5597, %v5599
  %v5601 = vrot.slane %v5593, %v5600
  %v5603 = vunpack.c.l.s4 1966171168
  %v5604 = vunpack.c.0.s8 %v5603
  %v5605 = vlaneseq
  %v5606 = vshrl.u32 %v5605, 7
  %v5607 = vsub.s32 %v5604, %v5606
  %v5608 = vrot.slane %v5594, %v5607
  %v5609 = vcombine.low %v5601, %v5608
  %v5611 = vunpack.c.l.s4 1966171168
  %v5612 = vunpack.c.0.s8 %v5611
  %v5613 = vlaneseq
  %v5614 = vshrl.u32 %v5613, 7
  %v5615 = vsub.s32 %v5612, %v5614
  %v5616 = vrot.slane %v5609, %v5615
  %v5618 = vmul.f32 %v2854, %v5616
  %v5619 = vld [vmem:[%s1] sm:$0xf]
  %v5620 = vmul.f32 %v5618, %v5619
  %v5621 = vld [vmem:[%s2] sm:$0xf]
  %v5622 = vadd.f32 %v5620, %v5621
  %v5623 = vlaneseq
  %vm5624 = vcmp.ge.s32.totalorder %v5623, 0
  %vm5625 = vcmp.lt.s32.totalorder %v5623, 512
  %vm5626 = vmand %vm5624, %vm5625
  %5627 = vst.msk [vmem:[%s5] sm:$0xf] %vm5626, %v5622
  // Predicated region
  $region22: #{layernorm_pallas.1} parent=0 // pred_check
    _
  $region23: #{layernorm_pallas.1} parent=0 // pred_check_branch
    %5629 = sbr.rel (0) target = $region25
  $region24: #{layernorm_pallas.1} parent=0 // pred_region
    _
  $region25: #{layernorm_pallas.1} parent=0 // pred_fallthru
    _
  // Predicated region
  $region26: #{layernorm_pallas.1} parent=0 // pred_check
    _
  $region27: #{layernorm_pallas.1} parent=0 // pred_check_branch
    %5631 = sbr.rel (0) target = $region29
  $region28: #{layernorm_pallas.1} parent=0 // pred_region
    _
  $region29: #{layernorm_pallas.1} parent=0 // pred_fallthru
    _

</llo_original>
